<compile_context>
chip_gen: v5e
topology: v5e:2x2
jax: 0.10.0
libtpu: 0.0.40
codegen_flags: <defaults>
</compile_context>

<pallas_src>
import math
import functools

import jax
import jax.numpy as jnp
from jax import lax
from jax.experimental import pallas as pl
from jax.experimental.pallas import tpu as pltpu

# ----------------------------- small config ---------------------------------
MEL = 8          # mel_channels
DIM = 32         # dim
MLP = 4          # mlp_factor
INTER = DIM * MLP
COND_DIM = 16    # condition_dim
NUM_LAYERS = 4   # num_layers (small for the demo)
DIL_CYCLE = 4    # dilation_cycle
B = 2
T = 16

DILATIONS = tuple(2 ** (i % DIL_CYCLE) for i in range(NUM_LAYERS))


# ------------------------- shared helpers -----------------------------------
def _gelu(x):
    # tanh-approximate GELU: one EUP tanh instead of a ~10-op VALU erf polynomial.
    return 0.5 * x * (1.0 + jnp.tanh(0.7978845608028654 * (x + 0.044715 * x * x * x)))


# ------------------------------ fused kernel ---------------------------------
def _fused_kernel(xcat_ref, dadd_ref, slabW_ref, wc_ref, p1_ref, w32_ref, o_ref, *,
                  dilations, bt, t, mel, cdim, c, inter, offs):
    f32 = jnp.float32
    bf16 = jnp.bfloat16

    def mm(a, b):
        # bf16 MXU operands, f32 accumulation: single-pass MXU on v5e/v6e/v7x.
        return jnp.dot(a.astype(bf16), b.astype(bf16), preferred_element_type=f32)

    nin = mel + cdim
    xcat = xcat_ref[...]                                        # [BT, MEL+COND]

    # merged input_projection + conditioner first 1x1 conv (block-diagonal weight).
    # Conditioner columns come first, so both slices below are 128-lane-tile aligned.
    h0 = _gelu(mm(xcat, slabW_ref[offs["wW"]:offs["wW"] + nin, :])
               + slabW_ref[offs["bW"]:offs["bW"] + 1, :])       # [BT, INTER+C]
    cmid = h0[:, :inter]                                        # [BT, INTER]
    x = h0[:, inter:inter + c]                                  # [BT, C]

    # conditioner_projection second 1x1 conv
    cc = (mm(cmid, w32_ref[offs["cw2"]:offs["cw2"] + inter, :])
          + w32_ref[offs["cb2"]:offs["cb2"] + 1, :])            # [BT, C]

    # all layers' condition projections at once + precomputed diffusion-step terms
    add_all = mm(cc, wc_ref[...]) + dadd_ref[...]               # [BT, L*C]

    # within-batch time index for the depthwise-conv boundary masks
    t_idx = lax.broadcasted_iota(jnp.int32, (bt, 1), 0) % t

    for l, dil in enumerate(dilations):
        resid = x
        xa = x + add_all[:, l * c:(l + 1) * c]

        # depthwise dilated conv (kernel=7, groups=C, "same" zero padding),
        # register-resident: tap k reads xa[t + (k-3)*dil]; pltpu.roll keeps the
        # shifted taps in vregs (XLU slot), the iota mask zeroes rows whose tap
        # falls outside [0, T) of the same batch element.
        acc = (jnp.zeros((bt, c), f32)
               + w32_ref[offs["dwb"] + l:offs["dwb"] + l + 1, :])
        for k in range(7):
            off = (k - 3) * dil
            if abs(off) >= t:            # tap lies entirely in the zero padding
                continue
            wrow = w32_ref[offs["dww"] + l * 7 + k:offs["dww"] + l * 7 + k + 1, :]
            if off == 0:
                tap = xa
            else:
                tap = pltpu.roll(xa, shift=(-off) % bt, axis=0)
                valid = jnp.logical_and(t_idx + off >= 0, t_idx + off < t)
                tap = jnp.where(valid, tap, 0.0)
            acc = acc + tap * wrow

        # LayerNorm over channels (eps=1e-6), single-pass variance; affine folded
        # into pwconv1 at parameter-prep time.
        mu = jnp.mean(acc, axis=-1, keepdims=True)
        var = jnp.maximum(jnp.mean(acc * acc, axis=-1, keepdims=True) - mu * mu, 0.0)
        xn = (acc - mu) * lax.rsqrt(var + 1e-6)

        # pwconv1 (+folded LN affine) -> GELU -> pwconv2 (+folded gamma) -> residual
        h = _gelu(mm(xn, p1_ref[offs["p1w"] + l * c:offs["p1w"] + (l + 1) * c, :])
                  + p1_ref[offs["p1b"] + l:offs["p1b"] + l + 1, :])
        x = (resid
             + mm(h, w32_ref[offs["p2w"] + l * inter:offs["p2w"] + (l + 1) * inter, :])
             + w32_ref[offs["p2b"] + l:offs["p2b"] + l + 1, :])

    # output_projection: 1x1 conv -> GELU -> 1x1 conv (second conv column-padded MEL->C)
    y = _gelu(mm(x, w32_ref[offs["ow1"]:offs["ow1"] + c, :])
              + w32_ref[offs["ob1"]:offs["ob1"] + 1, :])
    y = (mm(y, w32_ref[offs["ow2"]:offs["ow2"] + c, :])
         + w32_ref[offs["ob2"]:offs["ob2"] + 1, :])
    # TODO(synk): lane-dense / transposed output block at production T (MEL=8 lanes
    #             forces masked vst here; negligible at these demo sizes).
    o_ref[...] = y[:, :mel].astype(o_ref.dtype)


# ------------------------------ parameters ----------------------------------
def init_params(key):
    keys = iter(jax.random.split(key, 96))

    def w(shape, scale=0.05):
        return jax.random.normal(next(keys), shape, jnp.float32) * scale

    params = {
        # input_projection: Conv1d(MEL, DIM, 1)
        "in_w": w((MEL, DIM)), "in_b": w((1, DIM)),
        # diffusion_embedding MLP: Linear(DIM, INTER), GELU, Linear(INTER, DIM)
        "demb_w1": w((DIM, INTER)), "demb_b1": w((1, INTER)),
        "demb_w2": w((INTER, DIM)), "demb_b2": w((1, DIM)),
        # conditioner_projection: Conv1d(COND_DIM, INTER, 1), GELU, Conv1d(INTER, DIM, 1)
        "cond_w1": w((COND_DIM, INTER)), "cond_b1": w((1, INTER)),
        "cond_w2": w((INTER, DIM)), "cond_b2": w((1, DIM)),
        # output_projection: Conv1d(DIM, DIM, 1), GELU, Conv1d(DIM, MEL, 1)
        "out_w1": w((DIM, DIM)), "out_b1": w((1, DIM)),
        "out_w2": w((DIM, MEL)), "out_b2": w((1, MEL)),
        "layers": [],
    }
    for _ in range(NUM_LAYERS):
        params["layers"].append({
            "dsp_w": w((DIM, DIM)), "dsp_b": w((1, DIM)),
            "cp_w": w((DIM, DIM)), "cp_b": w((1, DIM)),
            # dw_w[k, c] == PyTorch depthwise Conv1d weight[c, 0, k] (transpose on import).
            "dw_w": w((7, DIM)), "dw_b": w((1, DIM)),
            # Non-trivial LN-affine / gamma values so the folding paths are actually
            # exercised by the numeric check (PyTorch init would be g=1, b=0, gamma=1e-6,
            # but these are learnable parameters).
            "ln_g": 1.0 + w((1, DIM), 0.1),
            "ln_b": w((1, DIM), 0.1),
            "pw1_w": w((DIM, INTER)), "pw1_b": w((1, INTER)),
            "pw2_w": w((INTER, DIM)), "pw2_b": w((1, DIM)),
            "gamma": 0.1 + w((1, DIM), 0.02),
        })
    return params


# ------------------------- weight-slab preparation ---------------------------
def _pad_rows(x, mult=8):
    pad = (-x.shape[0]) % mult
    if pad:
        x = jnp.concatenate([x, jnp.zeros((pad, x.shape[1]), x.dtype)], axis=0)
    return x


def _stack_rows(pieces):
    """Stack equal-width 2-D pieces into one slab; each section starts 8-row aligned."""
    offs, rows, cur = [], [], 0
    for p in pieces:
        offs.append(cur)
        pp = _pad_rows(p)
        rows.append(pp)
        cur += pp.shape[0]
    return jnp.concatenate(rows, axis=0), offs


def _prepare_fused_weights(params):
    Ls = params["layers"]

    # Block-diagonal merge of input_projection and the conditioner's first 1x1 conv.
    # Conditioner columns first so the in-kernel result slices are lane-tile aligned.
    wW = jnp.zeros((MEL + COND_DIM, INTER + DIM), jnp.float32)
    wW = wW.at[:MEL, INTER:].set(params["in_w"])
    wW = wW.at[MEL:, :INTER].set(params["cond_w1"])
    bW = jnp.concatenate([params["cond_b1"], params["in_b"]], axis=1)        # [1, INTER+C]
    slabW, (o_wW, o_bW) = _stack_rows([wW, bW])

    # Per-layer 1x1 projections of the diffusion step / condition (stacked lane-dense).
    wd = jnp.concatenate([lp["dsp_w"] for lp in Ls], axis=1)                 # [C, L*C]
    wc = jnp.concatenate([lp["cp_w"] for lp in Ls], axis=1)                  # [C, L*C]
    badd = jnp.concatenate([lp["dsp_b"] + lp["cp_b"] for lp in Ls], axis=1)  # [1, L*C]

    # LN affine folded into pwconv1 (exact): (xn*g + b)@W1 + b1 == xn@(g^T*W1) + (b@W1 + b1)
    p1w = jnp.concatenate([lp["pw1_w"] * lp["ln_g"].T for lp in Ls], axis=0)  # [L*C, I]
    p1b = jnp.concatenate([lp["pw1_b"] + lp["ln_b"] @ lp["pw1_w"] for lp in Ls], axis=0)
    slabP1, (o_p1w, o_p1b) = _stack_rows([p1w, p1b])

    # gamma folded into pwconv2 (exact): gamma*(h@W2 + b2) == h@(W2*gamma) + b2*gamma
    dww = jnp.concatenate([lp["dw_w"] for lp in Ls], axis=0)                  # [L*7, C]
    dwb = jnp.concatenate([lp["dw_b"] for lp in Ls], axis=0)                  # [L, C]
    p2w = jnp.concatenate([lp["pw2_w"] * lp["gamma"] for lp in Ls], axis=0)   # [L*I, C]
    p2b = jnp.concatenate([lp["pw2_b"] * lp["gamma"] for lp in Ls], axis=0)   # [L, C]
    ow2 = jnp.zeros((DIM, DIM), jnp.float32).at[:, :MEL].set(params["out_w2"])
    ob2 = jnp.zeros((1, DIM), jnp.float32).at[:, :MEL].set(params["out_b2"])
    slab32, o32 = _stack_rows([params["cond_w2"], params["cond_b2"], dww, dwb,
                               p2w, p2b, params["out_w1"], params["out_b1"], ow2, ob2])

    offs = dict(wW=o_wW, bW=o_bW, p1w=o_p1w, p1b=o_p1b,
                cw2=o32[0], cb2=o32[1], dww=o32[2], dwb=o32[3],
                p2w=o32[4], p2b=o32[5], ow1=o32[6], ob1=o32[7],
                ow2=o32[8], ob2=o32[9])
    return dict(slabW=slabW, wc=wc, slabP1=slabP1, slab32=slab32,
                wd=wd, badd=badd, offs=offs)


# ------------------------------ full forward ---------------------------------
def convnext_forward(params, spec, diffusion_step, cond):
    """spec: [B, MEL, T], diffusion_step: [B], cond: [B, COND_DIM, T] -> [B, MEL, T]."""
    b, mel, t = spec.shape
    bt = b * t

    # Channels-last and batch folded into the row dimension.
    # TODO(synk): at production T keep channels-last end-to-end to drop these transposes.
    spec_cl = jnp.transpose(spec, (0, 2, 1)).reshape(bt, mel)
    cond_cl = jnp.transpose(cond, (0, 2, 1)).reshape(bt, COND_DIM)
    xcat = jnp.concatenate([spec_cl, cond_cl], axis=-1)          # [BT, MEL+COND]

    # DiffusionEmbedding (sinusoid + MLP) and its per-layer 1x1 projection are M=1
    # matmuls: computed here in f32 by XLA (per perf review), passed as a per-row term.
    half = DIM // 2
    freqs = jnp.exp(jnp.arange(half, dtype=jnp.float32) * (-math.log(10000.0) / (half - 1)))
    ang = diffusion_step.astype(jnp.float32)[:, None] * freqs[None, :]
    emb = jnp.concatenate([jnp.sin(ang), jnp.cos(ang)], axis=-1)              # [B, DIM]
    d = _gelu(emb @ params["demb_w1"] + params["demb_b1"])
    d = d @ params["demb_w2"] + params["demb_b2"]                             # [B, DIM]

    prep = _prepare_fused_weights(params)
    d_add = d @ prep["wd"] + prep["badd"]                                     # [B, L*C]
    d_add = jnp.repeat(d_add, t, axis=0)                                      # [BT, L*C]

    kernel = functools.partial(
        _fused_kernel, dilations=DILATIONS, bt=bt, t=t, mel=mel,
        cdim=COND_DIM, c=DIM, inter=INTER, offs=prep["offs"])

    ins = [xcat, d_add, prep["slabW"], prep["wc"], prep["slabP1"], prep["slab32"]]

    def full_spec(a):
        return pl.BlockSpec(a.shape, lambda i: (0, 0))

    y = pl.pallas_call(
        kernel,
        out_shape=jax.ShapeDtypeStruct((bt, mel), spec.dtype),
        grid=(1,),                       # single step: everything resident in VMEM/vregs
        in_specs=[full_spec(a) for a in ins],
        out_specs=pl.BlockSpec((bt, mel), lambda i: (0, 0)),
        compiler_params=pltpu.CompilerParams(dimension_semantics=("arbitrary",)),
    )(*ins)

    return jnp.transpose(y.reshape(b, t, mel), (0, 2, 1))        # back to [B, MEL, T]


# ------------------------ pure-JAX reference (unfused) -----------------------
def _reference_forward(params, spec, diffusion_step, cond, mm_dtype=jnp.float32):
    """Unfused reference. mm_dtype=bf16 mirrors the kernel's MXU operand precision
    (the diffusion-embedding path stays f32, matching the wrapper)."""
    def mm(a, b):
        return jnp.dot(a.astype(mm_dtype), b.astype(mm_dtype),
                       preferred_element_type=jnp.float32)

    x = jnp.transpose(spec, (0, 2, 1))
    x = _gelu(mm(x, params["in_w"]) + params["in_b"])
    half = DIM // 2
    freqs = jnp.exp(jnp.arange(half, dtype=jnp.float32) * (-math.log(10000.0) / (half - 1)))
    ang = diffusion_step.astype(jnp.float32)[:, None] * freqs[None, :]
    emb = jnp.concatenate([jnp.sin(ang), jnp.cos(ang)], axis=-1)
    d = _gelu(emb @ params["demb_w1"] + params["demb_b1"])
    d = (d @ params["demb_w2"] + params["demb_b2"])[:, None, :]
    cnd = jnp.transpose(cond, (0, 2, 1))
    cnd = _gelu(mm(cnd, params["cond_w1"]) + params["cond_b1"])
    cnd = mm(cnd, params["cond_w2"]) + params["cond_b2"]
    for i, lp in enumerate(params["layers"]):
        dil = DILATIONS[i]
        resid = x
        h = x + (d @ lp["dsp_w"] + lp["dsp_b"]) + (mm(cnd, lp["cp_w"]) + lp["cp_b"])
        pad = 3 * dil
        hp = jnp.pad(h, ((0, 0), (pad, pad), (0, 0)))
        acc = jnp.zeros_like(h) + lp["dw_b"]
        for k in range(7):
            acc = acc + hp[:, k * dil:k * dil + h.shape[1], :] * lp["dw_w"][k]
        mu = jnp.mean(acc, axis=-1, keepdims=True)
        var = jnp.mean((acc - mu) ** 2, axis=-1, keepdims=True)
        xn = (acc - mu) * lax.rsqrt(var + 1e-6) * lp["ln_g"] + lp["ln_b"]
        hh = _gelu(mm(xn, lp["pw1_w"]) + lp["pw1_b"])
        x = resid + (mm(hh, lp["pw2_w"]) + lp["pw2_b"]) * lp["gamma"]
    y = _gelu(mm(x, params["out_w1"]) + params["out_b1"])
    y = mm(y, params["out_w2"]) + params["out_b2"]
    return jnp.transpose(y, (0, 2, 1))


# --------------------------------- main --------------------------------------
if __name__ == "__main__":
    key = jax.random.PRNGKey(0)
    k_param, k_spec, k_step, k_cond = jax.random.split(key, 4)

    params = init_params(k_param)
    spec = jax.random.normal(k_spec, (B, MEL, T), jnp.float32)
    diffusion_step = jax.random.uniform(k_step, (B,), jnp.float32) * 100.0
    cond = jax.random.normal(k_cond, (B, COND_DIM, T), jnp.float32)

    fwd = jax.jit(convnext_forward)
    out = jax.block_until_ready(fwd(params, spec, diffusion_step, cond))

    assert out.shape == (B, MEL, T), out.shape
    assert out.dtype == jnp.float32
    assert bool(jnp.all(jnp.isfinite(out)))

    # Check 1 (tight): reference mirroring the kernel's bf16 MXU operand precision.
    ref_bf16 = _reference_forward(params, spec, diffusion_step, cond, mm_dtype=jnp.bfloat16)
    err_bf16 = float(jnp.max(jnp.abs(out - ref_bf16)))
    assert err_bf16 < 2e-3, f"mismatch vs bf16-matmul reference: {err_bf16}"

    # Check 2 (semantic, looser -- covers bf16 operand rounding): full-f32 reference.
    ref_f32 = _reference_forward(params, spec, diffusion_step, cond, mm_dtype=jnp.float32)
    err_f32 = float(jnp.max(jnp.abs(out - ref_f32)))
    assert err_f32 < 1e-2, f"mismatch vs f32 reference: {err_f32}"

    print("KERNEL_OK")
</pallas_src>

<mosaic_0001>
module attributes {stable_mosaic.version = 11 : i64} {
  func.func @_fused_kernel(%arg0: i32, %arg1: memref<32x24xf32, #tpu.memory_space<vmem>>, %arg2: memref<32x128xf32, #tpu.memory_space<vmem>>, %arg3: memref<32x160xf32, #tpu.memory_space<vmem>>, %arg4: memref<32x128xf32, #tpu.memory_space<vmem>>, %arg5: memref<136x128xf32, #tpu.memory_space<vmem>>, %arg6: memref<776x32xf32, #tpu.memory_space<vmem>>, %arg7: memref<32x8xf32, #tpu.memory_space<vmem>>) attributes {dimension_semantics = [#tpu.dimension_semantics<arbitrary>], iteration_bounds = array<i64: 1>, scalar_prefetch = 0 : i64, scratch_operands = 0 : i64, tpu.core_type = #tpu.core_type<tc>, window_params = [{pipeline_mode = #tpu.pipeline_mode<synchronous>, transform_indices = @transform_0, window_bounds = array<i64: 32, 24>}, {pipeline_mode = #tpu.pipeline_mode<synchronous>, transform_indices = @transform_1, window_bounds = array<i64: 32, 128>}, {pipeline_mode = #tpu.pipeline_mode<synchronous>, transform_indices = @transform_2, window_bounds = array<i64: 32, 160>}, {pipeline_mode = #tpu.pipeline_mode<synchronous>, transform_indices = @transform_3, window_bounds = array<i64: 32, 128>}, {pipeline_mode = #tpu.pipeline_mode<synchronous>, transform_indices = @transform_4, window_bounds = array<i64: 136, 128>}, {pipeline_mode = #tpu.pipeline_mode<synchronous>, transform_indices = @transform_5, window_bounds = array<i64: 776, 32>}, {pipeline_mode = #tpu.pipeline_mode<synchronous>, transform_indices = @transform_6, window_bounds = array<i64: 32, 8>}]} {
    %c0 = arith.constant 0 : index
    %c0_0 = arith.constant 0 : index
    %0 = vector.load %arg1[%c0, %c0_0] : memref<32x24xf32, #tpu.memory_space<vmem>>, vector<32x24xf32>
    %c0_1 = arith.constant 0 : index
    %c0_2 = arith.constant 0 : index
    %1 = vector.load %arg3[%c0_1, %c0_2] : memref<32x160xf32, #tpu.memory_space<vmem>>, vector<24x160xf32>
    %2 = arith.truncf %0 : vector<32x24xf32> to vector<32x24xbf16>
    %3 = arith.truncf %1 : vector<24x160xf32> to vector<24x160xbf16>
    %cst = arith.constant dense<0.000000e+00> : vector<32x160xf32>
    %4 = tpu.matmul %2, %3, %cst {dimension_numbers = #tpu.dot_dimension_numbers<[1], [0], [0], [1], [0, 0, 1, 1], [], []>} : vector<32x24xbf16>, vector<24x160xbf16>, vector<32x160xf32> -> vector<32x160xf32>
    %c24 = arith.constant 24 : index
    %c0_3 = arith.constant 0 : index
    %5 = vector.load %arg3[%c24, %c0_3] : memref<32x160xf32, #tpu.memory_space<vmem>>, vector<1x160xf32>
    %6 = vector.broadcast %5 : vector<1x160xf32> to vector<32x160xf32>
    %7 = arith.addf %4, %6 : vector<32x160xf32>
    %cst_4 = arith.constant 5.000000e-01 : f32
    %8 = vector.broadcast %cst_4 : f32 to vector<32x160xf32>
    %9 = arith.mulf %8, %7 : vector<32x160xf32>
    %cst_5 = arith.constant 4.471500e-02 : f32
    %10 = vector.broadcast %cst_5 : f32 to vector<32x160xf32>
    %11 = arith.mulf %10, %7 : vector<32x160xf32>
    %12 = arith.mulf %11, %7 : vector<32x160xf32>
    %13 = arith.mulf %12, %7 : vector<32x160xf32>
    %14 = arith.addf %7, %13 : vector<32x160xf32>
    %cst_6 = arith.constant 0.797884583 : f32
    %15 = vector.broadcast %cst_6 : f32 to vector<32x160xf32>
    %16 = arith.mulf %15, %14 : vector<32x160xf32>
    %17 = math.tanh %16 : vector<32x160xf32>
    %cst_7 = arith.constant 1.000000e+00 : f32
    %18 = vector.broadcast %cst_7 : f32 to vector<32x160xf32>
    %19 = arith.addf %18, %17 : vector<32x160xf32>
    %20 = arith.mulf %9, %19 : vector<32x160xf32>
    %21 = vector.extract_strided_slice %20 {offsets = [0, 0], sizes = [32, 128], strides = [1, 1]} : vector<32x160xf32> to vector<32x128xf32>
    %22 = vector.extract_strided_slice %20 {offsets = [0, 128], sizes = [32, 32], strides = [1, 1]} : vector<32x160xf32> to vector<32x32xf32>
    %c0_8 = arith.constant 0 : index
    %c0_9 = arith.constant 0 : index
    %23 = vector.load %arg6[%c0_8, %c0_9] : memref<776x32xf32, #tpu.memory_space<vmem>>, vector<128x32xf32>
    %24 = arith.truncf %21 : vector<32x128xf32> to vector<32x128xbf16>
    %25 = arith.truncf %23 : vector<128x32xf32> to vector<128x32xbf16>
    %cst_10 = arith.constant dense<0.000000e+00> : vector<32x32xf32>
    %26 = tpu.matmul %24, %25, %cst_10 {dimension_numbers = #tpu.dot_dimension_numbers<[1], [0], [0], [1], [0, 0, 1, 1], [], []>} : vector<32x128xbf16>, vector<128x32xbf16>, vector<32x32xf32> -> vector<32x32xf32>
    %c128 = arith.constant 128 : index
    %c0_11 = arith.constant 0 : index
    %27 = vector.load %arg6[%c128, %c0_11] : memref<776x32xf32, #tpu.memory_space<vmem>>, vector<1x32xf32>
    %28 = vector.broadcast %27 : vector<1x32xf32> to vector<32x32xf32>
    %29 = arith.addf %26, %28 : vector<32x32xf32>
    %c0_12 = arith.constant 0 : index
    %c0_13 = arith.constant 0 : index
    %30 = vector.load %arg4[%c0_12, %c0_13] : memref<32x128xf32, #tpu.memory_space<vmem>>, vector<32x128xf32>
    %31 = arith.truncf %29 : vector<32x32xf32> to vector<32x32xbf16>
    %32 = arith.truncf %30 : vector<32x128xf32> to vector<32x128xbf16>
    %cst_14 = arith.constant dense<0.000000e+00> : vector<32x128xf32>
    %33 = tpu.matmul %31, %32, %cst_14 {dimension_numbers = #tpu.dot_dimension_numbers<[1], [0], [0], [1], [0, 0, 1, 1], [], []>} : vector<32x32xbf16>, vector<32x128xbf16>, vector<32x128xf32> -> vector<32x128xf32>
    %c0_15 = arith.constant 0 : index
    %c0_16 = arith.constant 0 : index
    %34 = vector.load %arg2[%c0_15, %c0_16] : memref<32x128xf32, #tpu.memory_space<vmem>>, vector<32x128xf32>
    %35 = arith.addf %33, %34 : vector<32x128xf32>
    %36 = tpu.iota {dimensions = array<i32: 0>} : vector<32x1xi32>
    %c16_i32 = arith.constant 16 : i32
    %c0_i32 = arith.constant 0 : i32
    %37 = arith.cmpi eq, %c16_i32, %c0_i32 : i32
    %c1_i32 = arith.constant 1 : i32
    %38 = arith.select %37, %c1_i32, %c16_i32 : i32
    %39 = vector.broadcast %38 : i32 to vector<32x1xi32>
    %40 = arith.remsi %36, %39 : vector<32x1xi32>
    %c0_i32_17 = arith.constant 0 : i32
    %41 = vector.broadcast %c0_i32_17 : i32 to vector<32x1xi32>
    %42 = arith.cmpi ne, %40, %41 : vector<32x1xi32>
    %c0_i32_18 = arith.constant 0 : i32
    %43 = vector.broadcast %c0_i32_18 : i32 to vector<32x1xi32>
    %44 = arith.cmpi slt, %40, %43 : vector<32x1xi32>
    %c0_i32_19 = arith.constant 0 : i32
    %45 = arith.cmpi slt, %38, %c0_i32_19 : i32
    %46 = vector.broadcast %45 : i1 to vector<32x1xi1>
    %47 = vector.broadcast %46 : vector<32x1xi1> to vector<32x1xi1>
    %48 = arith.xori %44, %47 : vector<32x1xi1>
    %49 = arith.andi %48, %42 : vector<32x1xi1>
    %50 = vector.broadcast %38 : i32 to vector<32x1xi32>
    %51 = arith.addi %40, %50 : vector<32x1xi32>
    %52 = arith.select %49, %51, %40 : vector<32x1xi1>, vector<32x1xi32>
    %53 = vector.extract_strided_slice %35 {offsets = [0, 0], sizes = [32, 32], strides = [1, 1]} : vector<32x128xf32> to vector<32x32xf32>
    %54 = arith.addf %22, %53 : vector<32x32xf32>
    %cst_20 = arith.constant 0.000000e+00 : f32
    %55 = vector.broadcast %cst_20 : f32 to vector<32x32xf32>
    %c168 = arith.constant 168 : index
    %c0_21 = arith.constant 0 : index
    %56 = vector.load %arg6[%c168, %c0_21] : memref<776x32xf32, #tpu.memory_space<vmem>>, vector<1x32xf32>
    %57 = vector.broadcast %56 : vector<1x32xf32> to vector<32x32xf32>
    %58 = arith.addf %55, %57 : vector<32x32xf32>
    %c136 = arith.constant 136 : index
    %c0_22 = arith.constant 0 : index
    %59 = vector.load %arg6[%c136, %c0_22] : memref<776x32xf32, #tpu.memory_space<vmem>>, vector<1x32xf32>
    %c3_i32 = arith.constant 3 : i32
    %60 = tpu.dynamic_rotate %54 by %c3_i32 dim 0 : vector<32x32xf32>, i32 -> vector<32x32xf32>
    %c-3_i32 = arith.constant -3 : i32
    %61 = vector.broadcast %c-3_i32 : i32 to vector<32x1xi32>
    %62 = arith.addi %52, %61 : vector<32x1xi32>
    %c0_i32_23 = arith.constant 0 : i32
    %63 = vector.broadcast %c0_i32_23 : i32 to vector<32x1xi32>
    %64 = arith.cmpi sge, %62, %63 : vector<32x1xi32>
    %c-3_i32_24 = arith.constant -3 : i32
    %65 = vector.broadcast %c-3_i32_24 : i32 to vector<32x1xi32>
    %66 = arith.addi %52, %65 : vector<32x1xi32>
    %c16_i32_25 = arith.constant 16 : i32
    %67 = vector.broadcast %c16_i32_25 : i32 to vector<32x1xi32>
    %68 = arith.cmpi slt, %66, %67 : vector<32x1xi32>
    %69 = arith.andi %64, %68 : vector<32x1xi1>
    %cst_26 = arith.constant 0.000000e+00 : f32
    %70 = vector.shape_cast %69 : vector<32x1xi1> to vector<32x1xi1>
    %71 = vector.broadcast %70 : vector<32x1xi1> to vector<32x32xi1>
    %72 = vector.broadcast %cst_26 : f32 to vector<32x32xf32>
    %73 = arith.select %71, %60, %72 : vector<32x32xi1>, vector<32x32xf32>
    %74 = vector.broadcast %59 : vector<1x32xf32> to vector<32x32xf32>
    %75 = arith.mulf %73, %74 : vector<32x32xf32>
    %76 = arith.addf %58, %75 : vector<32x32xf32>
    %c137 = arith.constant 137 : index
    %c0_27 = arith.constant 0 : index
    %77 = vector.load %arg6[%c137, %c0_27] : memref<776x32xf32, #tpu.memory_space<vmem>>, vector<1x32xf32>
    %c2_i32 = arith.constant 2 : i32
    %78 = tpu.dynamic_rotate %54 by %c2_i32 dim 0 : vector<32x32xf32>, i32 -> vector<32x32xf32>
    %c-2_i32 = arith.constant -2 : i32
    %79 = vector.broadcast %c-2_i32 : i32 to vector<32x1xi32>
    %80 = arith.addi %52, %79 : vector<32x1xi32>
    %c0_i32_28 = arith.constant 0 : i32
    %81 = vector.broadcast %c0_i32_28 : i32 to vector<32x1xi32>
    %82 = arith.cmpi sge, %80, %81 : vector<32x1xi32>
    %c-2_i32_29 = arith.constant -2 : i32
    %83 = vector.broadcast %c-2_i32_29 : i32 to vector<32x1xi32>
    %84 = arith.addi %52, %83 : vector<32x1xi32>
    %c16_i32_30 = arith.constant 16 : i32
    %85 = vector.broadcast %c16_i32_30 : i32 to vector<32x1xi32>
    %86 = arith.cmpi slt, %84, %85 : vector<32x1xi32>
    %87 = arith.andi %82, %86 : vector<32x1xi1>
    %cst_31 = arith.constant 0.000000e+00 : f32
    %88 = vector.shape_cast %87 : vector<32x1xi1> to vector<32x1xi1>
    %89 = vector.broadcast %88 : vector<32x1xi1> to vector<32x32xi1>
    %90 = vector.broadcast %cst_31 : f32 to vector<32x32xf32>
    %91 = arith.select %89, %78, %90 : vector<32x32xi1>, vector<32x32xf32>
    %92 = vector.broadcast %77 : vector<1x32xf32> to vector<32x32xf32>
    %93 = arith.mulf %91, %92 : vector<32x32xf32>
    %94 = arith.addf %76, %93 : vector<32x32xf32>
    %c138 = arith.constant 138 : index
    %c0_32 = arith.constant 0 : index
    %95 = vector.load %arg6[%c138, %c0_32] : memref<776x32xf32, #tpu.memory_space<vmem>>, vector<1x32xf32>
    %c1_i32_33 = arith.constant 1 : i32
    %96 = tpu.dynamic_rotate %54 by %c1_i32_33 dim 0 : vector<32x32xf32>, i32 -> vector<32x32xf32>
    %c-1_i32 = arith.constant -1 : i32
    %97 = vector.broadcast %c-1_i32 : i32 to vector<32x1xi32>
    %98 = arith.addi %52, %97 : vector<32x1xi32>
    %c0_i32_34 = arith.constant 0 : i32
    %99 = vector.broadcast %c0_i32_34 : i32 to vector<32x1xi32>
    %100 = arith.cmpi sge, %98, %99 : vector<32x1xi32>
    %c-1_i32_35 = arith.constant -1 : i32
    %101 = vector.broadcast %c-1_i32_35 : i32 to vector<32x1xi32>
    %102 = arith.addi %52, %101 : vector<32x1xi32>
    %c16_i32_36 = arith.constant 16 : i32
    %103 = vector.broadcast %c16_i32_36 : i32 to vector<32x1xi32>
    %104 = arith.cmpi slt, %102, %103 : vector<32x1xi32>
    %105 = arith.andi %100, %104 : vector<32x1xi1>
    %cst_37 = arith.constant 0.000000e+00 : f32
    %106 = vector.shape_cast %105 : vector<32x1xi1> to vector<32x1xi1>
    %107 = vector.broadcast %106 : vector<32x1xi1> to vector<32x32xi1>
    %108 = vector.broadcast %cst_37 : f32 to vector<32x32xf32>
    %109 = arith.select %107, %96, %108 : vector<32x32xi1>, vector<32x32xf32>
    %110 = vector.broadcast %95 : vector<1x32xf32> to vector<32x32xf32>
    %111 = arith.mulf %109, %110 : vector<32x32xf32>
    %112 = arith.addf %94, %111 : vector<32x32xf32>
    %c139 = arith.constant 139 : index
    %c0_38 = arith.constant 0 : index
    %113 = vector.load %arg6[%c139, %c0_38] : memref<776x32xf32, #tpu.memory_space<vmem>>, vector<1x32xf32>
    %114 = vector.broadcast %113 : vector<1x32xf32> to vector<32x32xf32>
    %115 = arith.mulf %54, %114 : vector<32x32xf32>
    %116 = arith.addf %112, %115 : vector<32x32xf32>
    %c140 = arith.constant 140 : index
    %c0_39 = arith.constant 0 : index
    %117 = vector.load %arg6[%c140, %c0_39] : memref<776x32xf32, #tpu.memory_space<vmem>>, vector<1x32xf32>
    %c31_i32 = arith.constant 31 : i32
    %118 = tpu.dynamic_rotate %54 by %c31_i32 dim 0 : vector<32x32xf32>, i32 -> vector<32x32xf32>
    %c1_i32_40 = arith.constant 1 : i32
    %119 = vector.broadcast %c1_i32_40 : i32 to vector<32x1xi32>
    %120 = arith.addi %52, %119 : vector<32x1xi32>
    %c0_i32_41 = arith.constant 0 : i32
    %121 = vector.broadcast %c0_i32_41 : i32 to vector<32x1xi32>
    %122 = arith.cmpi sge, %120, %121 : vector<32x1xi32>
    %c1_i32_42 = arith.constant 1 : i32
    %123 = vector.broadcast %c1_i32_42 : i32 to vector<32x1xi32>
    %124 = arith.addi %52, %123 : vector<32x1xi32>
    %c16_i32_43 = arith.constant 16 : i32
    %125 = vector.broadcast %c16_i32_43 : i32 to vector<32x1xi32>
    %126 = arith.cmpi slt, %124, %125 : vector<32x1xi32>
    %127 = arith.andi %122, %126 : vector<32x1xi1>
    %cst_44 = arith.constant 0.000000e+00 : f32
    %128 = vector.shape_cast %127 : vector<32x1xi1> to vector<32x1xi1>
    %129 = vector.broadcast %128 : vector<32x1xi1> to vector<32x32xi1>
    %130 = vector.broadcast %cst_44 : f32 to vector<32x32xf32>
    %131 = arith.select %129, %118, %130 : vector<32x32xi1>, vector<32x32xf32>
    %132 = vector.broadcast %117 : vector<1x32xf32> to vector<32x32xf32>
    %133 = arith.mulf %131, %132 : vector<32x32xf32>
    %134 = arith.addf %116, %133 : vector<32x32xf32>
    %c141 = arith.constant 141 : index
    %c0_45 = arith.constant 0 : index
    %135 = vector.load %arg6[%c141, %c0_45] : memref<776x32xf32, #tpu.memory_space<vmem>>, vector<1x32xf32>
    %c30_i32 = arith.constant 30 : i32
    %136 = tpu.dynamic_rotate %54 by %c30_i32 dim 0 : vector<32x32xf32>, i32 -> vector<32x32xf32>
    %c2_i32_46 = arith.constant 2 : i32
    %137 = vector.broadcast %c2_i32_46 : i32 to vector<32x1xi32>
    %138 = arith.addi %52, %137 : vector<32x1xi32>
    %c0_i32_47 = arith.constant 0 : i32
    %139 = vector.broadcast %c0_i32_47 : i32 to vector<32x1xi32>
    %140 = arith.cmpi sge, %138, %139 : vector<32x1xi32>
    %c2_i32_48 = arith.constant 2 : i32
    %141 = vector.broadcast %c2_i32_48 : i32 to vector<32x1xi32>
    %142 = arith.addi %52, %141 : vector<32x1xi32>
    %c16_i32_49 = arith.constant 16 : i32
    %143 = vector.broadcast %c16_i32_49 : i32 to vector<32x1xi32>
    %144 = arith.cmpi slt, %142, %143 : vector<32x1xi32>
    %145 = arith.andi %140, %144 : vector<32x1xi1>
    %cst_50 = arith.constant 0.000000e+00 : f32
    %146 = vector.shape_cast %145 : vector<32x1xi1> to vector<32x1xi1>
    %147 = vector.broadcast %146 : vector<32x1xi1> to vector<32x32xi1>
    %148 = vector.broadcast %cst_50 : f32 to vector<32x32xf32>
    %149 = arith.select %147, %136, %148 : vector<32x32xi1>, vector<32x32xf32>
    %150 = vector.broadcast %135 : vector<1x32xf32> to vector<32x32xf32>
    %151 = arith.mulf %149, %150 : vector<32x32xf32>
    %152 = arith.addf %134, %151 : vector<32x32xf32>
    %c142 = arith.constant 142 : index
    %c0_51 = arith.constant 0 : index
    %153 = vector.load %arg6[%c142, %c0_51] : memref<776x32xf32, #tpu.memory_space<vmem>>, vector<1x32xf32>
    %c29_i32 = arith.constant 29 : i32
    %154 = tpu.dynamic_rotate %54 by %c29_i32 dim 0 : vector<32x32xf32>, i32 -> vector<32x32xf32>
    %c3_i32_52 = arith.constant 3 : i32
    %155 = vector.broadcast %c3_i32_52 : i32 to vector<32x1xi32>
    %156 = arith.addi %52, %155 : vector<32x1xi32>
    %c0_i32_53 = arith.constant 0 : i32
    %157 = vector.broadcast %c0_i32_53 : i32 to vector<32x1xi32>
    %158 = arith.cmpi sge, %156, %157 : vector<32x1xi32>
    %c3_i32_54 = arith.constant 3 : i32
    %159 = vector.broadcast %c3_i32_54 : i32 to vector<32x1xi32>
    %160 = arith.addi %52, %159 : vector<32x1xi32>
    %c16_i32_55 = arith.constant 16 : i32
    %161 = vector.broadcast %c16_i32_55 : i32 to vector<32x1xi32>
    %162 = arith.cmpi slt, %160, %161 : vector<32x1xi32>
    %163 = arith.andi %158, %162 : vector<32x1xi1>
    %cst_56 = arith.constant 0.000000e+00 : f32
    %164 = vector.shape_cast %163 : vector<32x1xi1> to vector<32x1xi1>
    %165 = vector.broadcast %164 : vector<32x1xi1> to vector<32x32xi1>
    %166 = vector.broadcast %cst_56 : f32 to vector<32x32xf32>
    %167 = arith.select %165, %154, %166 : vector<32x32xi1>, vector<32x32xf32>
    %168 = vector.broadcast %153 : vector<1x32xf32> to vector<32x32xf32>
    %169 = arith.mulf %167, %168 : vector<32x32xf32>
    %170 = arith.addf %152, %169 : vector<32x32xf32>
    %cst_57 = arith.constant dense<0.000000e+00> : vector<32xf32>
    %171 = vector.multi_reduction <add>, %170, %cst_57 [1] : vector<32x32xf32> to vector<32xf32>
    %172 = vector.shape_cast %171 : vector<32xf32> to vector<32x1xf32>
    %cst_58 = arith.constant 3.200000e+01 : f32
    %173 = vector.broadcast %cst_58 : f32 to vector<32x1xf32>
    %174 = arith.divf %172, %173 : vector<32x1xf32>
    %175 = arith.mulf %170, %170 : vector<32x32xf32>
    %cst_59 = arith.constant dense<0.000000e+00> : vector<32xf32>
    %176 = vector.multi_reduction <add>, %175, %cst_59 [1] : vector<32x32xf32> to vector<32xf32>
    %177 = vector.shape_cast %176 : vector<32xf32> to vector<32x1xf32>
    %cst_60 = arith.constant 3.200000e+01 : f32
    %178 = vector.broadcast %cst_60 : f32 to vector<32x1xf32>
    %179 = arith.divf %177, %178 : vector<32x1xf32>
    %180 = arith.mulf %174, %174 : vector<32x1xf32>
    %181 = arith.subf %179, %180 : vector<32x1xf32>
    %cst_61 = arith.constant 0.000000e+00 : f32
    %182 = vector.broadcast %cst_61 : f32 to vector<32x1xf32>
    %183 = arith.maximumf %181, %182 : vector<32x1xf32>
    %184 = vector.broadcast %174 : vector<32x1xf32> to vector<32x32xf32>
    %185 = arith.subf %170, %184 : vector<32x32xf32>
    %cst_62 = arith.constant 9.99999997E-7 : f32
    %186 = vector.broadcast %cst_62 : f32 to vector<32x1xf32>
    %187 = arith.addf %183, %186 : vector<32x1xf32>
    %188 = math.rsqrt %187 : vector<32x1xf32>
    %189 = vector.broadcast %188 : vector<32x1xf32> to vector<32x32xf32>
    %190 = arith.mulf %185, %189 : vector<32x32xf32>
    %c0_63 = arith.constant 0 : index
    %c0_64 = arith.constant 0 : index
    %191 = vector.load %arg5[%c0_63, %c0_64] : memref<136x128xf32, #tpu.memory_space<vmem>>, vector<32x128xf32>
    %192 = arith.truncf %190 : vector<32x32xf32> to vector<32x32xbf16>
    %193 = arith.truncf %191 : vector<32x128xf32> to vector<32x128xbf16>
    %cst_65 = arith.constant dense<0.000000e+00> : vector<32x128xf32>
    %194 = tpu.matmul %192, %193, %cst_65 {dimension_numbers = #tpu.dot_dimension_numbers<[1], [0], [0], [1], [0, 0, 1, 1], [], []>} : vector<32x32xbf16>, vector<32x128xbf16>, vector<32x128xf32> -> vector<32x128xf32>
    %c128_66 = arith.constant 128 : index
    %c0_67 = arith.constant 0 : index
    %195 = vector.load %arg5[%c128_66, %c0_67] : memref<136x128xf32, #tpu.memory_space<vmem>>, vector<1x128xf32>
    %196 = vector.broadcast %195 : vector<1x128xf32> to vector<32x128xf32>
    %197 = arith.addf %194, %196 : vector<32x128xf32>
    %cst_68 = arith.constant 5.000000e-01 : f32
    %198 = vector.broadcast %cst_68 : f32 to vector<32x128xf32>
    %199 = arith.mulf %198, %197 : vector<32x128xf32>
    %cst_69 = arith.constant 4.471500e-02 : f32
    %200 = vector.broadcast %cst_69 : f32 to vector<32x128xf32>
    %201 = arith.mulf %200, %197 : vector<32x128xf32>
    %202 = arith.mulf %201, %197 : vector<32x128xf32>
    %203 = arith.mulf %202, %197 : vector<32x128xf32>
    %204 = arith.addf %197, %203 : vector<32x128xf32>
    %cst_70 = arith.constant 0.797884583 : f32
    %205 = vector.broadcast %cst_70 : f32 to vector<32x128xf32>
    %206 = arith.mulf %205, %204 : vector<32x128xf32>
    %207 = math.tanh %206 : vector<32x128xf32>
    %cst_71 = arith.constant 1.000000e+00 : f32
    %208 = vector.broadcast %cst_71 : f32 to vector<32x128xf32>
    %209 = arith.addf %208, %207 : vector<32x128xf32>
    %210 = arith.mulf %199, %209 : vector<32x128xf32>
    %c176 = arith.constant 176 : index
    %c0_72 = arith.constant 0 : index
    %211 = vector.load %arg6[%c176, %c0_72] : memref<776x32xf32, #tpu.memory_space<vmem>>, vector<128x32xf32>
    %212 = arith.truncf %210 : vector<32x128xf32> to vector<32x128xbf16>
    %213 = arith.truncf %211 : vector<128x32xf32> to vector<128x32xbf16>
    %cst_73 = arith.constant dense<0.000000e+00> : vector<32x32xf32>
    %214 = tpu.matmul %212, %213, %cst_73 {dimension_numbers = #tpu.dot_dimension_numbers<[1], [0], [0], [1], [0, 0, 1, 1], [], []>} : vector<32x128xbf16>, vector<128x32xbf16>, vector<32x32xf32> -> vector<32x32xf32>
    %215 = arith.addf %22, %214 : vector<32x32xf32>
    %c688 = arith.constant 688 : index
    %c0_74 = arith.constant 0 : index
    %216 = vector.load %arg6[%c688, %c0_74] : memref<776x32xf32, #tpu.memory_space<vmem>>, vector<1x32xf32>
    %217 = vector.broadcast %216 : vector<1x32xf32> to vector<32x32xf32>
    %218 = arith.addf %215, %217 : vector<32x32xf32>
    %219 = vector.extract_strided_slice %35 {offsets = [0, 32], sizes = [32, 32], strides = [1, 1]} : vector<32x128xf32> to vector<32x32xf32>
    %220 = arith.addf %218, %219 : vector<32x32xf32>
    %cst_75 = arith.constant 0.000000e+00 : f32
    %221 = vector.broadcast %cst_75 : f32 to vector<32x32xf32>
    %c169 = arith.constant 169 : index
    %c0_76 = arith.constant 0 : index
    %222 = vector.load %arg6[%c169, %c0_76] : memref<776x32xf32, #tpu.memory_space<vmem>>, vector<1x32xf32>
    %223 = vector.broadcast %222 : vector<1x32xf32> to vector<32x32xf32>
    %224 = arith.addf %221, %223 : vector<32x32xf32>
    %c143 = arith.constant 143 : index
    %c0_77 = arith.constant 0 : index
    %225 = vector.load %arg6[%c143, %c0_77] : memref<776x32xf32, #tpu.memory_space<vmem>>, vector<1x32xf32>
    %c6_i32 = arith.constant 6 : i32
    %226 = tpu.dynamic_rotate %220 by %c6_i32 dim 0 : vector<32x32xf32>, i32 -> vector<32x32xf32>
    %c-6_i32 = arith.constant -6 : i32
    %227 = vector.broadcast %c-6_i32 : i32 to vector<32x1xi32>
    %228 = arith.addi %52, %227 : vector<32x1xi32>
    %c0_i32_78 = arith.constant 0 : i32
    %229 = vector.broadcast %c0_i32_78 : i32 to vector<32x1xi32>
    %230 = arith.cmpi sge, %228, %229 : vector<32x1xi32>
    %c-6_i32_79 = arith.constant -6 : i32
    %231 = vector.broadcast %c-6_i32_79 : i32 to vector<32x1xi32>
    %232 = arith.addi %52, %231 : vector<32x1xi32>
    %c16_i32_80 = arith.constant 16 : i32
    %233 = vector.broadcast %c16_i32_80 : i32 to vector<32x1xi32>
    %234 = arith.cmpi slt, %232, %233 : vector<32x1xi32>
    %235 = arith.andi %230, %234 : vector<32x1xi1>
    %cst_81 = arith.constant 0.000000e+00 : f32
    %236 = vector.shape_cast %235 : vector<32x1xi1> to vector<32x1xi1>
    %237 = vector.broadcast %236 : vector<32x1xi1> to vector<32x32xi1>
    %238 = vector.broadcast %cst_81 : f32 to vector<32x32xf32>
    %239 = arith.select %237, %226, %238 : vector<32x32xi1>, vector<32x32xf32>
    %240 = vector.broadcast %225 : vector<1x32xf32> to vector<32x32xf32>
    %241 = arith.mulf %239, %240 : vector<32x32xf32>
    %242 = arith.addf %224, %241 : vector<32x32xf32>
    %c144 = arith.constant 144 : index
    %c0_82 = arith.constant 0 : index
    %243 = vector.load %arg6[%c144, %c0_82] : memref<776x32xf32, #tpu.memory_space<vmem>>, vector<1x32xf32>
    %c4_i32 = arith.constant 4 : i32
    %244 = tpu.dynamic_rotate %220 by %c4_i32 dim 0 : vector<32x32xf32>, i32 -> vector<32x32xf32>
    %c-4_i32 = arith.constant -4 : i32
    %245 = vector.broadcast %c-4_i32 : i32 to vector<32x1xi32>
    %246 = arith.addi %52, %245 : vector<32x1xi32>
    %c0_i32_83 = arith.constant 0 : i32
    %247 = vector.broadcast %c0_i32_83 : i32 to vector<32x1xi32>
    %248 = arith.cmpi sge, %246, %247 : vector<32x1xi32>
    %c-4_i32_84 = arith.constant -4 : i32
    %249 = vector.broadcast %c-4_i32_84 : i32 to vector<32x1xi32>
    %250 = arith.addi %52, %249 : vector<32x1xi32>
    %c16_i32_85 = arith.constant 16 : i32
    %251 = vector.broadcast %c16_i32_85 : i32 to vector<32x1xi32>
    %252 = arith.cmpi slt, %250, %251 : vector<32x1xi32>
    %253 = arith.andi %248, %252 : vector<32x1xi1>
    %cst_86 = arith.constant 0.000000e+00 : f32
    %254 = vector.shape_cast %253 : vector<32x1xi1> to vector<32x1xi1>
    %255 = vector.broadcast %254 : vector<32x1xi1> to vector<32x32xi1>
    %256 = vector.broadcast %cst_86 : f32 to vector<32x32xf32>
    %257 = arith.select %255, %244, %256 : vector<32x32xi1>, vector<32x32xf32>
    %258 = vector.broadcast %243 : vector<1x32xf32> to vector<32x32xf32>
    %259 = arith.mulf %257, %258 : vector<32x32xf32>
    %260 = arith.addf %242, %259 : vector<32x32xf32>
    %c145 = arith.constant 145 : index
    %c0_87 = arith.constant 0 : index
    %261 = vector.load %arg6[%c145, %c0_87] : memref<776x32xf32, #tpu.memory_space<vmem>>, vector<1x32xf32>
    %c2_i32_88 = arith.constant 2 : i32
    %262 = tpu.dynamic_rotate %220 by %c2_i32_88 dim 0 : vector<32x32xf32>, i32 -> vector<32x32xf32>
    %c-2_i32_89 = arith.constant -2 : i32
    %263 = vector.broadcast %c-2_i32_89 : i32 to vector<32x1xi32>
    %264 = arith.addi %52, %263 : vector<32x1xi32>
    %c0_i32_90 = arith.constant 0 : i32
    %265 = vector.broadcast %c0_i32_90 : i32 to vector<32x1xi32>
    %266 = arith.cmpi sge, %264, %265 : vector<32x1xi32>
    %c-2_i32_91 = arith.constant -2 : i32
    %267 = vector.broadcast %c-2_i32_91 : i32 to vector<32x1xi32>
    %268 = arith.addi %52, %267 : vector<32x1xi32>
    %c16_i32_92 = arith.constant 16 : i32
    %269 = vector.broadcast %c16_i32_92 : i32 to vector<32x1xi32>
    %270 = arith.cmpi slt, %268, %269 : vector<32x1xi32>
    %271 = arith.andi %266, %270 : vector<32x1xi1>
    %cst_93 = arith.constant 0.000000e+00 : f32
    %272 = vector.shape_cast %271 : vector<32x1xi1> to vector<32x1xi1>
    %273 = vector.broadcast %272 : vector<32x1xi1> to vector<32x32xi1>
    %274 = vector.broadcast %cst_93 : f32 to vector<32x32xf32>
    %275 = arith.select %273, %262, %274 : vector<32x32xi1>, vector<32x32xf32>
    %276 = vector.broadcast %261 : vector<1x32xf32> to vector<32x32xf32>
    %277 = arith.mulf %275, %276 : vector<32x32xf32>
    %278 = arith.addf %260, %277 : vector<32x32xf32>
    %c146 = arith.constant 146 : index
    %c0_94 = arith.constant 0 : index
    %279 = vector.load %arg6[%c146, %c0_94] : memref<776x32xf32, #tpu.memory_space<vmem>>, vector<1x32xf32>
    %280 = vector.broadcast %279 : vector<1x32xf32> to vector<32x32xf32>
    %281 = arith.mulf %220, %280 : vector<32x32xf32>
    %282 = arith.addf %278, %281 : vector<32x32xf32>
    %c147 = arith.constant 147 : index
    %c0_95 = arith.constant 0 : index
    %283 = vector.load %arg6[%c147, %c0_95] : memref<776x32xf32, #tpu.memory_space<vmem>>, vector<1x32xf32>
    %c30_i32_96 = arith.constant 30 : i32
    %284 = tpu.dynamic_rotate %220 by %c30_i32_96 dim 0 : vector<32x32xf32>, i32 -> vector<32x32xf32>
    %c2_i32_97 = arith.constant 2 : i32
    %285 = vector.broadcast %c2_i32_97 : i32 to vector<32x1xi32>
    %286 = arith.addi %52, %285 : vector<32x1xi32>
    %c0_i32_98 = arith.constant 0 : i32
    %287 = vector.broadcast %c0_i32_98 : i32 to vector<32x1xi32>
    %288 = arith.cmpi sge, %286, %287 : vector<32x1xi32>
    %c2_i32_99 = arith.constant 2 : i32
    %289 = vector.broadcast %c2_i32_99 : i32 to vector<32x1xi32>
    %290 = arith.addi %52, %289 : vector<32x1xi32>
    %c16_i32_100 = arith.constant 16 : i32
    %291 = vector.broadcast %c16_i32_100 : i32 to vector<32x1xi32>
    %292 = arith.cmpi slt, %290, %291 : vector<32x1xi32>
    %293 = arith.andi %288, %292 : vector<32x1xi1>
    %cst_101 = arith.constant 0.000000e+00 : f32
    %294 = vector.shape_cast %293 : vector<32x1xi1> to vector<32x1xi1>
    %295 = vector.broadcast %294 : vector<32x1xi1> to vector<32x32xi1>
    %296 = vector.broadcast %cst_101 : f32 to vector<32x32xf32>
    %297 = arith.select %295, %284, %296 : vector<32x32xi1>, vector<32x32xf32>
    %298 = vector.broadcast %283 : vector<1x32xf32> to vector<32x32xf32>
    %299 = arith.mulf %297, %298 : vector<32x32xf32>
    %300 = arith.addf %282, %299 : vector<32x32xf32>
    %c148 = arith.constant 148 : index
    %c0_102 = arith.constant 0 : index
    %301 = vector.load %arg6[%c148, %c0_102] : memref<776x32xf32, #tpu.memory_space<vmem>>, vector<1x32xf32>
    %c28_i32 = arith.constant 28 : i32
    %302 = tpu.dynamic_rotate %220 by %c28_i32 dim 0 : vector<32x32xf32>, i32 -> vector<32x32xf32>
    %c4_i32_103 = arith.constant 4 : i32
    %303 = vector.broadcast %c4_i32_103 : i32 to vector<32x1xi32>
    %304 = arith.addi %52, %303 : vector<32x1xi32>
    %c0_i32_104 = arith.constant 0 : i32
    %305 = vector.broadcast %c0_i32_104 : i32 to vector<32x1xi32>
    %306 = arith.cmpi sge, %304, %305 : vector<32x1xi32>
    %c4_i32_105 = arith.constant 4 : i32
    %307 = vector.broadcast %c4_i32_105 : i32 to vector<32x1xi32>
    %308 = arith.addi %52, %307 : vector<32x1xi32>
    %c16_i32_106 = arith.constant 16 : i32
    %309 = vector.broadcast %c16_i32_106 : i32 to vector<32x1xi32>
    %310 = arith.cmpi slt, %308, %309 : vector<32x1xi32>
    %311 = arith.andi %306, %310 : vector<32x1xi1>
    %cst_107 = arith.constant 0.000000e+00 : f32
    %312 = vector.shape_cast %311 : vector<32x1xi1> to vector<32x1xi1>
    %313 = vector.broadcast %312 : vector<32x1xi1> to vector<32x32xi1>
    %314 = vector.broadcast %cst_107 : f32 to vector<32x32xf32>
    %315 = arith.select %313, %302, %314 : vector<32x32xi1>, vector<32x32xf32>
    %316 = vector.broadcast %301 : vector<1x32xf32> to vector<32x32xf32>
    %317 = arith.mulf %315, %316 : vector<32x32xf32>
    %318 = arith.addf %300, %317 : vector<32x32xf32>
    %c149 = arith.constant 149 : index
    %c0_108 = arith.constant 0 : index
    %319 = vector.load %arg6[%c149, %c0_108] : memref<776x32xf32, #tpu.memory_space<vmem>>, vector<1x32xf32>
    %c26_i32 = arith.constant 26 : i32
    %320 = tpu.dynamic_rotate %220 by %c26_i32 dim 0 : vector<32x32xf32>, i32 -> vector<32x32xf32>
    %c6_i32_109 = arith.constant 6 : i32
    %321 = vector.broadcast %c6_i32_109 : i32 to vector<32x1xi32>
    %322 = arith.addi %52, %321 : vector<32x1xi32>
    %c0_i32_110 = arith.constant 0 : i32
    %323 = vector.broadcast %c0_i32_110 : i32 to vector<32x1xi32>
    %324 = arith.cmpi sge, %322, %323 : vector<32x1xi32>
    %c6_i32_111 = arith.constant 6 : i32
    %325 = vector.broadcast %c6_i32_111 : i32 to vector<32x1xi32>
    %326 = arith.addi %52, %325 : vector<32x1xi32>
    %c16_i32_112 = arith.constant 16 : i32
    %327 = vector.broadcast %c16_i32_112 : i32 to vector<32x1xi32>
    %328 = arith.cmpi slt, %326, %327 : vector<32x1xi32>
    %329 = arith.andi %324, %328 : vector<32x1xi1>
    %cst_113 = arith.constant 0.000000e+00 : f32
    %330 = vector.shape_cast %329 : vector<32x1xi1> to vector<32x1xi1>
    %331 = vector.broadcast %330 : vector<32x1xi1> to vector<32x32xi1>
    %332 = vector.broadcast %cst_113 : f32 to vector<32x32xf32>
    %333 = arith.select %331, %320, %332 : vector<32x32xi1>, vector<32x32xf32>
    %334 = vector.broadcast %319 : vector<1x32xf32> to vector<32x32xf32>
    %335 = arith.mulf %333, %334 : vector<32x32xf32>
    %336 = arith.addf %318, %335 : vector<32x32xf32>
    %cst_114 = arith.constant dense<0.000000e+00> : vector<32xf32>
    %337 = vector.multi_reduction <add>, %336, %cst_114 [1] : vector<32x32xf32> to vector<32xf32>
    %338 = vector.shape_cast %337 : vector<32xf32> to vector<32x1xf32>
    %cst_115 = arith.constant 3.200000e+01 : f32
    %339 = vector.broadcast %cst_115 : f32 to vector<32x1xf32>
    %340 = arith.divf %338, %339 : vector<32x1xf32>
    %341 = arith.mulf %336, %336 : vector<32x32xf32>
    %cst_116 = arith.constant dense<0.000000e+00> : vector<32xf32>
    %342 = vector.multi_reduction <add>, %341, %cst_116 [1] : vector<32x32xf32> to vector<32xf32>
    %343 = vector.shape_cast %342 : vector<32xf32> to vector<32x1xf32>
    %cst_117 = arith.constant 3.200000e+01 : f32
    %344 = vector.broadcast %cst_117 : f32 to vector<32x1xf32>
    %345 = arith.divf %343, %344 : vector<32x1xf32>
    %346 = arith.mulf %340, %340 : vector<32x1xf32>
    %347 = arith.subf %345, %346 : vector<32x1xf32>
    %cst_118 = arith.constant 0.000000e+00 : f32
    %348 = vector.broadcast %cst_118 : f32 to vector<32x1xf32>
    %349 = arith.maximumf %347, %348 : vector<32x1xf32>
    %350 = vector.broadcast %340 : vector<32x1xf32> to vector<32x32xf32>
    %351 = arith.subf %336, %350 : vector<32x32xf32>
    %cst_119 = arith.constant 9.99999997E-7 : f32
    %352 = vector.broadcast %cst_119 : f32 to vector<32x1xf32>
    %353 = arith.addf %349, %352 : vector<32x1xf32>
    %354 = math.rsqrt %353 : vector<32x1xf32>
    %355 = vector.broadcast %354 : vector<32x1xf32> to vector<32x32xf32>
    %356 = arith.mulf %351, %355 : vector<32x32xf32>
    %c32 = arith.constant 32 : index
    %c0_120 = arith.constant 0 : index
    %357 = vector.load %arg5[%c32, %c0_120] : memref<136x128xf32, #tpu.memory_space<vmem>>, vector<32x128xf32>
    %358 = arith.truncf %356 : vector<32x32xf32> to vector<32x32xbf16>
    %359 = arith.truncf %357 : vector<32x128xf32> to vector<32x128xbf16>
    %cst_121 = arith.constant dense<0.000000e+00> : vector<32x128xf32>
    %360 = tpu.matmul %358, %359, %cst_121 {dimension_numbers = #tpu.dot_dimension_numbers<[1], [0], [0], [1], [0, 0, 1, 1], [], []>} : vector<32x32xbf16>, vector<32x128xbf16>, vector<32x128xf32> -> vector<32x128xf32>
    %c129 = arith.constant 129 : index
    %c0_122 = arith.constant 0 : index
    %361 = vector.load %arg5[%c129, %c0_122] : memref<136x128xf32, #tpu.memory_space<vmem>>, vector<1x128xf32>
    %362 = vector.broadcast %361 : vector<1x128xf32> to vector<32x128xf32>
    %363 = arith.addf %360, %362 : vector<32x128xf32>
    %cst_123 = arith.constant 5.000000e-01 : f32
    %364 = vector.broadcast %cst_123 : f32 to vector<32x128xf32>
    %365 = arith.mulf %364, %363 : vector<32x128xf32>
    %cst_124 = arith.constant 4.471500e-02 : f32
    %366 = vector.broadcast %cst_124 : f32 to vector<32x128xf32>
    %367 = arith.mulf %366, %363 : vector<32x128xf32>
    %368 = arith.mulf %367, %363 : vector<32x128xf32>
    %369 = arith.mulf %368, %363 : vector<32x128xf32>
    %370 = arith.addf %363, %369 : vector<32x128xf32>
    %cst_125 = arith.constant 0.797884583 : f32
    %371 = vector.broadcast %cst_125 : f32 to vector<32x128xf32>
    %372 = arith.mulf %371, %370 : vector<32x128xf32>
    %373 = math.tanh %372 : vector<32x128xf32>
    %cst_126 = arith.constant 1.000000e+00 : f32
    %374 = vector.broadcast %cst_126 : f32 to vector<32x128xf32>
    %375 = arith.addf %374, %373 : vector<32x128xf32>
    %376 = arith.mulf %365, %375 : vector<32x128xf32>
    %c304 = arith.constant 304 : index
    %c0_127 = arith.constant 0 : index
    %377 = vector.load %arg6[%c304, %c0_127] : memref<776x32xf32, #tpu.memory_space<vmem>>, vector<128x32xf32>
    %378 = arith.truncf %376 : vector<32x128xf32> to vector<32x128xbf16>
    %379 = arith.truncf %377 : vector<128x32xf32> to vector<128x32xbf16>
    %cst_128 = arith.constant dense<0.000000e+00> : vector<32x32xf32>
    %380 = tpu.matmul %378, %379, %cst_128 {dimension_numbers = #tpu.dot_dimension_numbers<[1], [0], [0], [1], [0, 0, 1, 1], [], []>} : vector<32x128xbf16>, vector<128x32xbf16>, vector<32x32xf32> -> vector<32x32xf32>
    %381 = arith.addf %218, %380 : vector<32x32xf32>
    %c689 = arith.constant 689 : index
    %c0_129 = arith.constant 0 : index
    %382 = vector.load %arg6[%c689, %c0_129] : memref<776x32xf32, #tpu.memory_space<vmem>>, vector<1x32xf32>
    %383 = vector.broadcast %382 : vector<1x32xf32> to vector<32x32xf32>
    %384 = arith.addf %381, %383 : vector<32x32xf32>
    %385 = vector.extract_strided_slice %35 {offsets = [0, 64], sizes = [32, 32], strides = [1, 1]} : vector<32x128xf32> to vector<32x32xf32>
    %386 = arith.addf %384, %385 : vector<32x32xf32>
    %cst_130 = arith.constant 0.000000e+00 : f32
    %387 = vector.broadcast %cst_130 : f32 to vector<32x32xf32>
    %c170 = arith.constant 170 : index
    %c0_131 = arith.constant 0 : index
    %388 = vector.load %arg6[%c170, %c0_131] : memref<776x32xf32, #tpu.memory_space<vmem>>, vector<1x32xf32>
    %389 = vector.broadcast %388 : vector<1x32xf32> to vector<32x32xf32>
    %390 = arith.addf %387, %389 : vector<32x32xf32>
    %c150 = arith.constant 150 : index
    %c0_132 = arith.constant 0 : index
    %391 = vector.load %arg6[%c150, %c0_132] : memref<776x32xf32, #tpu.memory_space<vmem>>, vector<1x32xf32>
    %c12_i32 = arith.constant 12 : i32
    %392 = tpu.dynamic_rotate %386 by %c12_i32 dim 0 : vector<32x32xf32>, i32 -> vector<32x32xf32>
    %c-12_i32 = arith.constant -12 : i32
    %393 = vector.broadcast %c-12_i32 : i32 to vector<32x1xi32>
    %394 = arith.addi %52, %393 : vector<32x1xi32>
    %c0_i32_133 = arith.constant 0 : i32
    %395 = vector.broadcast %c0_i32_133 : i32 to vector<32x1xi32>
    %396 = arith.cmpi sge, %394, %395 : vector<32x1xi32>
    %c-12_i32_134 = arith.constant -12 : i32
    %397 = vector.broadcast %c-12_i32_134 : i32 to vector<32x1xi32>
    %398 = arith.addi %52, %397 : vector<32x1xi32>
    %c16_i32_135 = arith.constant 16 : i32
    %399 = vector.broadcast %c16_i32_135 : i32 to vector<32x1xi32>
    %400 = arith.cmpi slt, %398, %399 : vector<32x1xi32>
    %401 = arith.andi %396, %400 : vector<32x1xi1>
    %cst_136 = arith.constant 0.000000e+00 : f32
    %402 = vector.shape_cast %401 : vector<32x1xi1> to vector<32x1xi1>
    %403 = vector.broadcast %402 : vector<32x1xi1> to vector<32x32xi1>
    %404 = vector.broadcast %cst_136 : f32 to vector<32x32xf32>
    %405 = arith.select %403, %392, %404 : vector<32x32xi1>, vector<32x32xf32>
    %406 = vector.broadcast %391 : vector<1x32xf32> to vector<32x32xf32>
    %407 = arith.mulf %405, %406 : vector<32x32xf32>
    %408 = arith.addf %390, %407 : vector<32x32xf32>
    %c151 = arith.constant 151 : index
    %c0_137 = arith.constant 0 : index
    %409 = vector.load %arg6[%c151, %c0_137] : memref<776x32xf32, #tpu.memory_space<vmem>>, vector<1x32xf32>
    %c8_i32 = arith.constant 8 : i32
    %410 = tpu.dynamic_rotate %386 by %c8_i32 dim 0 : vector<32x32xf32>, i32 -> vector<32x32xf32>
    %c-8_i32 = arith.constant -8 : i32
    %411 = vector.broadcast %c-8_i32 : i32 to vector<32x1xi32>
    %412 = arith.addi %52, %411 : vector<32x1xi32>
    %c0_i32_138 = arith.constant 0 : i32
    %413 = vector.broadcast %c0_i32_138 : i32 to vector<32x1xi32>
    %414 = arith.cmpi sge, %412, %413 : vector<32x1xi32>
    %c-8_i32_139 = arith.constant -8 : i32
    %415 = vector.broadcast %c-8_i32_139 : i32 to vector<32x1xi32>
    %416 = arith.addi %52, %415 : vector<32x1xi32>
    %c16_i32_140 = arith.constant 16 : i32
    %417 = vector.broadcast %c16_i32_140 : i32 to vector<32x1xi32>
    %418 = arith.cmpi slt, %416, %417 : vector<32x1xi32>
    %419 = arith.andi %414, %418 : vector<32x1xi1>
    %cst_141 = arith.constant 0.000000e+00 : f32
    %420 = vector.shape_cast %419 : vector<32x1xi1> to vector<32x1xi1>
    %421 = vector.broadcast %420 : vector<32x1xi1> to vector<32x32xi1>
    %422 = vector.broadcast %cst_141 : f32 to vector<32x32xf32>
    %423 = arith.select %421, %410, %422 : vector<32x32xi1>, vector<32x32xf32>
    %424 = vector.broadcast %409 : vector<1x32xf32> to vector<32x32xf32>
    %425 = arith.mulf %423, %424 : vector<32x32xf32>
    %426 = arith.addf %408, %425 : vector<32x32xf32>
    %c152 = arith.constant 152 : index
    %c0_142 = arith.constant 0 : index
    %427 = vector.load %arg6[%c152, %c0_142] : memref<776x32xf32, #tpu.memory_space<vmem>>, vector<1x32xf32>
    %c4_i32_143 = arith.constant 4 : i32
    %428 = tpu.dynamic_rotate %386 by %c4_i32_143 dim 0 : vector<32x32xf32>, i32 -> vector<32x32xf32>
    %c-4_i32_144 = arith.constant -4 : i32
    %429 = vector.broadcast %c-4_i32_144 : i32 to vector<32x1xi32>
    %430 = arith.addi %52, %429 : vector<32x1xi32>
    %c0_i32_145 = arith.constant 0 : i32
    %431 = vector.broadcast %c0_i32_145 : i32 to vector<32x1xi32>
    %432 = arith.cmpi sge, %430, %431 : vector<32x1xi32>
    %c-4_i32_146 = arith.constant -4 : i32
    %433 = vector.broadcast %c-4_i32_146 : i32 to vector<32x1xi32>
    %434 = arith.addi %52, %433 : vector<32x1xi32>
    %c16_i32_147 = arith.constant 16 : i32
    %435 = vector.broadcast %c16_i32_147 : i32 to vector<32x1xi32>
    %436 = arith.cmpi slt, %434, %435 : vector<32x1xi32>
    %437 = arith.andi %432, %436 : vector<32x1xi1>
    %cst_148 = arith.constant 0.000000e+00 : f32
    %438 = vector.shape_cast %437 : vector<32x1xi1> to vector<32x1xi1>
    %439 = vector.broadcast %438 : vector<32x1xi1> to vector<32x32xi1>
    %440 = vector.broadcast %cst_148 : f32 to vector<32x32xf32>
    %441 = arith.select %439, %428, %440 : vector<32x32xi1>, vector<32x32xf32>
    %442 = vector.broadcast %427 : vector<1x32xf32> to vector<32x32xf32>
    %443 = arith.mulf %441, %442 : vector<32x32xf32>
    %444 = arith.addf %426, %443 : vector<32x32xf32>
    %c153 = arith.constant 153 : index
    %c0_149 = arith.constant 0 : index
    %445 = vector.load %arg6[%c153, %c0_149] : memref<776x32xf32, #tpu.memory_space<vmem>>, vector<1x32xf32>
    %446 = vector.broadcast %445 : vector<1x32xf32> to vector<32x32xf32>
    %447 = arith.mulf %386, %446 : vector<32x32xf32>
    %448 = arith.addf %444, %447 : vector<32x32xf32>
    %c154 = arith.constant 154 : index
    %c0_150 = arith.constant 0 : index
    %449 = vector.load %arg6[%c154, %c0_150] : memref<776x32xf32, #tpu.memory_space<vmem>>, vector<1x32xf32>
    %c28_i32_151 = arith.constant 28 : i32
    %450 = tpu.dynamic_rotate %386 by %c28_i32_151 dim 0 : vector<32x32xf32>, i32 -> vector<32x32xf32>
    %c4_i32_152 = arith.constant 4 : i32
    %451 = vector.broadcast %c4_i32_152 : i32 to vector<32x1xi32>
    %452 = arith.addi %52, %451 : vector<32x1xi32>
    %c0_i32_153 = arith.constant 0 : i32
    %453 = vector.broadcast %c0_i32_153 : i32 to vector<32x1xi32>
    %454 = arith.cmpi sge, %452, %453 : vector<32x1xi32>
    %c4_i32_154 = arith.constant 4 : i32
    %455 = vector.broadcast %c4_i32_154 : i32 to vector<32x1xi32>
    %456 = arith.addi %52, %455 : vector<32x1xi32>
    %c16_i32_155 = arith.constant 16 : i32
    %457 = vector.broadcast %c16_i32_155 : i32 to vector<32x1xi32>
    %458 = arith.cmpi slt, %456, %457 : vector<32x1xi32>
    %459 = arith.andi %454, %458 : vector<32x1xi1>
    %cst_156 = arith.constant 0.000000e+00 : f32
    %460 = vector.shape_cast %459 : vector<32x1xi1> to vector<32x1xi1>
    %461 = vector.broadcast %460 : vector<32x1xi1> to vector<32x32xi1>
    %462 = vector.broadcast %cst_156 : f32 to vector<32x32xf32>
    %463 = arith.select %461, %450, %462 : vector<32x32xi1>, vector<32x32xf32>
    %464 = vector.broadcast %449 : vector<1x32xf32> to vector<32x32xf32>
    %465 = arith.mulf %463, %464 : vector<32x32xf32>
    %466 = arith.addf %448, %465 : vector<32x32xf32>
    %c155 = arith.constant 155 : index
    %c0_157 = arith.constant 0 : index
    %467 = vector.load %arg6[%c155, %c0_157] : memref<776x32xf32, #tpu.memory_space<vmem>>, vector<1x32xf32>
    %c24_i32 = arith.constant 24 : i32
    %468 = tpu.dynamic_rotate %386 by %c24_i32 dim 0 : vector<32x32xf32>, i32 -> vector<32x32xf32>
    %c8_i32_158 = arith.constant 8 : i32
    %469 = vector.broadcast %c8_i32_158 : i32 to vector<32x1xi32>
    %470 = arith.addi %52, %469 : vector<32x1xi32>
    %c0_i32_159 = arith.constant 0 : i32
    %471 = vector.broadcast %c0_i32_159 : i32 to vector<32x1xi32>
    %472 = arith.cmpi sge, %470, %471 : vector<32x1xi32>
    %c8_i32_160 = arith.constant 8 : i32
    %473 = vector.broadcast %c8_i32_160 : i32 to vector<32x1xi32>
    %474 = arith.addi %52, %473 : vector<32x1xi32>
    %c16_i32_161 = arith.constant 16 : i32
    %475 = vector.broadcast %c16_i32_161 : i32 to vector<32x1xi32>
    %476 = arith.cmpi slt, %474, %475 : vector<32x1xi32>
    %477 = arith.andi %472, %476 : vector<32x1xi1>
    %cst_162 = arith.constant 0.000000e+00 : f32
    %478 = vector.shape_cast %477 : vector<32x1xi1> to vector<32x1xi1>
    %479 = vector.broadcast %478 : vector<32x1xi1> to vector<32x32xi1>
    %480 = vector.broadcast %cst_162 : f32 to vector<32x32xf32>
    %481 = arith.select %479, %468, %480 : vector<32x32xi1>, vector<32x32xf32>
    %482 = vector.broadcast %467 : vector<1x32xf32> to vector<32x32xf32>
    %483 = arith.mulf %481, %482 : vector<32x32xf32>
    %484 = arith.addf %466, %483 : vector<32x32xf32>
    %c156 = arith.constant 156 : index
    %c0_163 = arith.constant 0 : index
    %485 = vector.load %arg6[%c156, %c0_163] : memref<776x32xf32, #tpu.memory_space<vmem>>, vector<1x32xf32>
    %c20_i32 = arith.constant 20 : i32
    %486 = tpu.dynamic_rotate %386 by %c20_i32 dim 0 : vector<32x32xf32>, i32 -> vector<32x32xf32>
    %c12_i32_164 = arith.constant 12 : i32
    %487 = vector.broadcast %c12_i32_164 : i32 to vector<32x1xi32>
    %488 = arith.addi %52, %487 : vector<32x1xi32>
    %c0_i32_165 = arith.constant 0 : i32
    %489 = vector.broadcast %c0_i32_165 : i32 to vector<32x1xi32>
    %490 = arith.cmpi sge, %488, %489 : vector<32x1xi32>
    %c12_i32_166 = arith.constant 12 : i32
    %491 = vector.broadcast %c12_i32_166 : i32 to vector<32x1xi32>
    %492 = arith.addi %52, %491 : vector<32x1xi32>
    %c16_i32_167 = arith.constant 16 : i32
    %493 = vector.broadcast %c16_i32_167 : i32 to vector<32x1xi32>
    %494 = arith.cmpi slt, %492, %493 : vector<32x1xi32>
    %495 = arith.andi %490, %494 : vector<32x1xi1>
    %cst_168 = arith.constant 0.000000e+00 : f32
    %496 = vector.shape_cast %495 : vector<32x1xi1> to vector<32x1xi1>
    %497 = vector.broadcast %496 : vector<32x1xi1> to vector<32x32xi1>
    %498 = vector.broadcast %cst_168 : f32 to vector<32x32xf32>
    %499 = arith.select %497, %486, %498 : vector<32x32xi1>, vector<32x32xf32>
    %500 = vector.broadcast %485 : vector<1x32xf32> to vector<32x32xf32>
    %501 = arith.mulf %499, %500 : vector<32x32xf32>
    %502 = arith.addf %484, %501 : vector<32x32xf32>
    %cst_169 = arith.constant dense<0.000000e+00> : vector<32xf32>
    %503 = vector.multi_reduction <add>, %502, %cst_169 [1] : vector<32x32xf32> to vector<32xf32>
    %504 = vector.shape_cast %503 : vector<32xf32> to vector<32x1xf32>
    %cst_170 = arith.constant 3.200000e+01 : f32
    %505 = vector.broadcast %cst_170 : f32 to vector<32x1xf32>
    %506 = arith.divf %504, %505 : vector<32x1xf32>
    %507 = arith.mulf %502, %502 : vector<32x32xf32>
    %cst_171 = arith.constant dense<0.000000e+00> : vector<32xf32>
    %508 = vector.multi_reduction <add>, %507, %cst_171 [1] : vector<32x32xf32> to vector<32xf32>
    %509 = vector.shape_cast %508 : vector<32xf32> to vector<32x1xf32>
    %cst_172 = arith.constant 3.200000e+01 : f32
    %510 = vector.broadcast %cst_172 : f32 to vector<32x1xf32>
    %511 = arith.divf %509, %510 : vector<32x1xf32>
    %512 = arith.mulf %506, %506 : vector<32x1xf32>
    %513 = arith.subf %511, %512 : vector<32x1xf32>
    %cst_173 = arith.constant 0.000000e+00 : f32
    %514 = vector.broadcast %cst_173 : f32 to vector<32x1xf32>
    %515 = arith.maximumf %513, %514 : vector<32x1xf32>
    %516 = vector.broadcast %506 : vector<32x1xf32> to vector<32x32xf32>
    %517 = arith.subf %502, %516 : vector<32x32xf32>
    %cst_174 = arith.constant 9.99999997E-7 : f32
    %518 = vector.broadcast %cst_174 : f32 to vector<32x1xf32>
    %519 = arith.addf %515, %518 : vector<32x1xf32>
    %520 = math.rsqrt %519 : vector<32x1xf32>
    %521 = vector.broadcast %520 : vector<32x1xf32> to vector<32x32xf32>
    %522 = arith.mulf %517, %521 : vector<32x32xf32>
    %c64 = arith.constant 64 : index
    %c0_175 = arith.constant 0 : index
    %523 = vector.load %arg5[%c64, %c0_175] : memref<136x128xf32, #tpu.memory_space<vmem>>, vector<32x128xf32>
    %524 = arith.truncf %522 : vector<32x32xf32> to vector<32x32xbf16>
    %525 = arith.truncf %523 : vector<32x128xf32> to vector<32x128xbf16>
    %cst_176 = arith.constant dense<0.000000e+00> : vector<32x128xf32>
    %526 = tpu.matmul %524, %525, %cst_176 {dimension_numbers = #tpu.dot_dimension_numbers<[1], [0], [0], [1], [0, 0, 1, 1], [], []>} : vector<32x32xbf16>, vector<32x128xbf16>, vector<32x128xf32> -> vector<32x128xf32>
    %c130 = arith.constant 130 : index
    %c0_177 = arith.constant 0 : index
    %527 = vector.load %arg5[%c130, %c0_177] : memref<136x128xf32, #tpu.memory_space<vmem>>, vector<1x128xf32>
    %528 = vector.broadcast %527 : vector<1x128xf32> to vector<32x128xf32>
    %529 = arith.addf %526, %528 : vector<32x128xf32>
    %cst_178 = arith.constant 5.000000e-01 : f32
    %530 = vector.broadcast %cst_178 : f32 to vector<32x128xf32>
    %531 = arith.mulf %530, %529 : vector<32x128xf32>
    %cst_179 = arith.constant 4.471500e-02 : f32
    %532 = vector.broadcast %cst_179 : f32 to vector<32x128xf32>
    %533 = arith.mulf %532, %529 : vector<32x128xf32>
    %534 = arith.mulf %533, %529 : vector<32x128xf32>
    %535 = arith.mulf %534, %529 : vector<32x128xf32>
    %536 = arith.addf %529, %535 : vector<32x128xf32>
    %cst_180 = arith.constant 0.797884583 : f32
    %537 = vector.broadcast %cst_180 : f32 to vector<32x128xf32>
    %538 = arith.mulf %537, %536 : vector<32x128xf32>
    %539 = math.tanh %538 : vector<32x128xf32>
    %cst_181 = arith.constant 1.000000e+00 : f32
    %540 = vector.broadcast %cst_181 : f32 to vector<32x128xf32>
    %541 = arith.addf %540, %539 : vector<32x128xf32>
    %542 = arith.mulf %531, %541 : vector<32x128xf32>
    %c432 = arith.constant 432 : index
    %c0_182 = arith.constant 0 : index
    %543 = vector.load %arg6[%c432, %c0_182] : memref<776x32xf32, #tpu.memory_space<vmem>>, vector<128x32xf32>
    %544 = arith.truncf %542 : vector<32x128xf32> to vector<32x128xbf16>
    %545 = arith.truncf %543 : vector<128x32xf32> to vector<128x32xbf16>
    %cst_183 = arith.constant dense<0.000000e+00> : vector<32x32xf32>
    %546 = tpu.matmul %544, %545, %cst_183 {dimension_numbers = #tpu.dot_dimension_numbers<[1], [0], [0], [1], [0, 0, 1, 1], [], []>} : vector<32x128xbf16>, vector<128x32xbf16>, vector<32x32xf32> -> vector<32x32xf32>
    %547 = arith.addf %384, %546 : vector<32x32xf32>
    %c690 = arith.constant 690 : index
    %c0_184 = arith.constant 0 : index
    %548 = vector.load %arg6[%c690, %c0_184] : memref<776x32xf32, #tpu.memory_space<vmem>>, vector<1x32xf32>
    %549 = vector.broadcast %548 : vector<1x32xf32> to vector<32x32xf32>
    %550 = arith.addf %547, %549 : vector<32x32xf32>
    %551 = vector.extract_strided_slice %35 {offsets = [0, 96], sizes = [32, 32], strides = [1, 1]} : vector<32x128xf32> to vector<32x32xf32>
    %552 = arith.addf %550, %551 : vector<32x32xf32>
    %cst_185 = arith.constant 0.000000e+00 : f32
    %553 = vector.broadcast %cst_185 : f32 to vector<32x32xf32>
    %c171 = arith.constant 171 : index
    %c0_186 = arith.constant 0 : index
    %554 = vector.load %arg6[%c171, %c0_186] : memref<776x32xf32, #tpu.memory_space<vmem>>, vector<1x32xf32>
    %555 = vector.broadcast %554 : vector<1x32xf32> to vector<32x32xf32>
    %556 = arith.addf %553, %555 : vector<32x32xf32>
    %c159 = arith.constant 159 : index
    %c0_187 = arith.constant 0 : index
    %557 = vector.load %arg6[%c159, %c0_187] : memref<776x32xf32, #tpu.memory_space<vmem>>, vector<1x32xf32>
    %c8_i32_188 = arith.constant 8 : i32
    %558 = tpu.dynamic_rotate %552 by %c8_i32_188 dim 0 : vector<32x32xf32>, i32 -> vector<32x32xf32>
    %c-8_i32_189 = arith.constant -8 : i32
    %559 = vector.broadcast %c-8_i32_189 : i32 to vector<32x1xi32>
    %560 = arith.addi %52, %559 : vector<32x1xi32>
    %c0_i32_190 = arith.constant 0 : i32
    %561 = vector.broadcast %c0_i32_190 : i32 to vector<32x1xi32>
    %562 = arith.cmpi sge, %560, %561 : vector<32x1xi32>
    %c-8_i32_191 = arith.constant -8 : i32
    %563 = vector.broadcast %c-8_i32_191 : i32 to vector<32x1xi32>
    %564 = arith.addi %52, %563 : vector<32x1xi32>
    %c16_i32_192 = arith.constant 16 : i32
    %565 = vector.broadcast %c16_i32_192 : i32 to vector<32x1xi32>
    %566 = arith.cmpi slt, %564, %565 : vector<32x1xi32>
    %567 = arith.andi %562, %566 : vector<32x1xi1>
    %cst_193 = arith.constant 0.000000e+00 : f32
    %568 = vector.shape_cast %567 : vector<32x1xi1> to vector<32x1xi1>
    %569 = vector.broadcast %568 : vector<32x1xi1> to vector<32x32xi1>
    %570 = vector.broadcast %cst_193 : f32 to vector<32x32xf32>
    %571 = arith.select %569, %558, %570 : vector<32x32xi1>, vector<32x32xf32>
    %572 = vector.broadcast %557 : vector<1x32xf32> to vector<32x32xf32>
    %573 = arith.mulf %571, %572 : vector<32x32xf32>
    %574 = arith.addf %556, %573 : vector<32x32xf32>
    %c160 = arith.constant 160 : index
    %c0_194 = arith.constant 0 : index
    %575 = vector.load %arg6[%c160, %c0_194] : memref<776x32xf32, #tpu.memory_space<vmem>>, vector<1x32xf32>
    %576 = vector.broadcast %575 : vector<1x32xf32> to vector<32x32xf32>
    %577 = arith.mulf %552, %576 : vector<32x32xf32>
    %578 = arith.addf %574, %577 : vector<32x32xf32>
    %c161 = arith.constant 161 : index
    %c0_195 = arith.constant 0 : index
    %579 = vector.load %arg6[%c161, %c0_195] : memref<776x32xf32, #tpu.memory_space<vmem>>, vector<1x32xf32>
    %c24_i32_196 = arith.constant 24 : i32
    %580 = tpu.dynamic_rotate %552 by %c24_i32_196 dim 0 : vector<32x32xf32>, i32 -> vector<32x32xf32>
    %c8_i32_197 = arith.constant 8 : i32
    %581 = vector.broadcast %c8_i32_197 : i32 to vector<32x1xi32>
    %582 = arith.addi %52, %581 : vector<32x1xi32>
    %c0_i32_198 = arith.constant 0 : i32
    %583 = vector.broadcast %c0_i32_198 : i32 to vector<32x1xi32>
    %584 = arith.cmpi sge, %582, %583 : vector<32x1xi32>
    %c8_i32_199 = arith.constant 8 : i32
    %585 = vector.broadcast %c8_i32_199 : i32 to vector<32x1xi32>
    %586 = arith.addi %52, %585 : vector<32x1xi32>
    %c16_i32_200 = arith.constant 16 : i32
    %587 = vector.broadcast %c16_i32_200 : i32 to vector<32x1xi32>
    %588 = arith.cmpi slt, %586, %587 : vector<32x1xi32>
    %589 = arith.andi %584, %588 : vector<32x1xi1>
    %cst_201 = arith.constant 0.000000e+00 : f32
    %590 = vector.shape_cast %589 : vector<32x1xi1> to vector<32x1xi1>
    %591 = vector.broadcast %590 : vector<32x1xi1> to vector<32x32xi1>
    %592 = vector.broadcast %cst_201 : f32 to vector<32x32xf32>
    %593 = arith.select %591, %580, %592 : vector<32x32xi1>, vector<32x32xf32>
    %594 = vector.broadcast %579 : vector<1x32xf32> to vector<32x32xf32>
    %595 = arith.mulf %593, %594 : vector<32x32xf32>
    %596 = arith.addf %578, %595 : vector<32x32xf32>
    %cst_202 = arith.constant dense<0.000000e+00> : vector<32xf32>
    %597 = vector.multi_reduction <add>, %596, %cst_202 [1] : vector<32x32xf32> to vector<32xf32>
    %598 = vector.shape_cast %597 : vector<32xf32> to vector<32x1xf32>
    %cst_203 = arith.constant 3.200000e+01 : f32
    %599 = vector.broadcast %cst_203 : f32 to vector<32x1xf32>
    %600 = arith.divf %598, %599 : vector<32x1xf32>
    %601 = arith.mulf %596, %596 : vector<32x32xf32>
    %cst_204 = arith.constant dense<0.000000e+00> : vector<32xf32>
    %602 = vector.multi_reduction <add>, %601, %cst_204 [1] : vector<32x32xf32> to vector<32xf32>
    %603 = vector.shape_cast %602 : vector<32xf32> to vector<32x1xf32>
    %cst_205 = arith.constant 3.200000e+01 : f32
    %604 = vector.broadcast %cst_205 : f32 to vector<32x1xf32>
    %605 = arith.divf %603, %604 : vector<32x1xf32>
    %606 = arith.mulf %600, %600 : vector<32x1xf32>
    %607 = arith.subf %605, %606 : vector<32x1xf32>
    %cst_206 = arith.constant 0.000000e+00 : f32
    %608 = vector.broadcast %cst_206 : f32 to vector<32x1xf32>
    %609 = arith.maximumf %607, %608 : vector<32x1xf32>
    %610 = vector.broadcast %600 : vector<32x1xf32> to vector<32x32xf32>
    %611 = arith.subf %596, %610 : vector<32x32xf32>
    %cst_207 = arith.constant 9.99999997E-7 : f32
    %612 = vector.broadcast %cst_207 : f32 to vector<32x1xf32>
    %613 = arith.addf %609, %612 : vector<32x1xf32>
    %614 = math.rsqrt %613 : vector<32x1xf32>
    %615 = vector.broadcast %614 : vector<32x1xf32> to vector<32x32xf32>
    %616 = arith.mulf %611, %615 : vector<32x32xf32>
    %c96 = arith.constant 96 : index
    %c0_208 = arith.constant 0 : index
    %617 = vector.load %arg5[%c96, %c0_208] : memref<136x128xf32, #tpu.memory_space<vmem>>, vector<32x128xf32>
    %618 = arith.truncf %616 : vector<32x32xf32> to vector<32x32xbf16>
    %619 = arith.truncf %617 : vector<32x128xf32> to vector<32x128xbf16>
    %cst_209 = arith.constant dense<0.000000e+00> : vector<32x128xf32>
    %620 = tpu.matmul %618, %619, %cst_209 {dimension_numbers = #tpu.dot_dimension_numbers<[1], [0], [0], [1], [0, 0, 1, 1], [], []>} : vector<32x32xbf16>, vector<32x128xbf16>, vector<32x128xf32> -> vector<32x128xf32>
    %c131 = arith.constant 131 : index
    %c0_210 = arith.constant 0 : index
    %621 = vector.load %arg5[%c131, %c0_210] : memref<136x128xf32, #tpu.memory_space<vmem>>, vector<1x128xf32>
    %622 = vector.broadcast %621 : vector<1x128xf32> to vector<32x128xf32>
    %623 = arith.addf %620, %622 : vector<32x128xf32>
    %cst_211 = arith.constant 5.000000e-01 : f32
    %624 = vector.broadcast %cst_211 : f32 to vector<32x128xf32>
    %625 = arith.mulf %624, %623 : vector<32x128xf32>
    %cst_212 = arith.constant 4.471500e-02 : f32
    %626 = vector.broadcast %cst_212 : f32 to vector<32x128xf32>
    %627 = arith.mulf %626, %623 : vector<32x128xf32>
    %628 = arith.mulf %627, %623 : vector<32x128xf32>
    %629 = arith.mulf %628, %623 : vector<32x128xf32>
    %630 = arith.addf %623, %629 : vector<32x128xf32>
    %cst_213 = arith.constant 0.797884583 : f32
    %631 = vector.broadcast %cst_213 : f32 to vector<32x128xf32>
    %632 = arith.mulf %631, %630 : vector<32x128xf32>
    %633 = math.tanh %632 : vector<32x128xf32>
    %cst_214 = arith.constant 1.000000e+00 : f32
    %634 = vector.broadcast %cst_214 : f32 to vector<32x128xf32>
    %635 = arith.addf %634, %633 : vector<32x128xf32>
    %636 = arith.mulf %625, %635 : vector<32x128xf32>
    %c560 = arith.constant 560 : index
    %c0_215 = arith.constant 0 : index
    %637 = vector.load %arg6[%c560, %c0_215] : memref<776x32xf32, #tpu.memory_space<vmem>>, vector<128x32xf32>
    %638 = arith.truncf %636 : vector<32x128xf32> to vector<32x128xbf16>
    %639 = arith.truncf %637 : vector<128x32xf32> to vector<128x32xbf16>
    %cst_216 = arith.constant dense<0.000000e+00> : vector<32x32xf32>
    %640 = tpu.matmul %638, %639, %cst_216 {dimension_numbers = #tpu.dot_dimension_numbers<[1], [0], [0], [1], [0, 0, 1, 1], [], []>} : vector<32x128xbf16>, vector<128x32xbf16>, vector<32x32xf32> -> vector<32x32xf32>
    %641 = arith.addf %550, %640 : vector<32x32xf32>
    %c691 = arith.constant 691 : index
    %c0_217 = arith.constant 0 : index
    %642 = vector.load %arg6[%c691, %c0_217] : memref<776x32xf32, #tpu.memory_space<vmem>>, vector<1x32xf32>
    %643 = vector.broadcast %642 : vector<1x32xf32> to vector<32x32xf32>
    %644 = arith.addf %641, %643 : vector<32x32xf32>
    %c696 = arith.constant 696 : index
    %c0_218 = arith.constant 0 : index
    %645 = vector.load %arg6[%c696, %c0_218] : memref<776x32xf32, #tpu.memory_space<vmem>>, vector<32x32xf32>
    %646 = arith.truncf %644 : vector<32x32xf32> to vector<32x32xbf16>
    %647 = arith.truncf %645 : vector<32x32xf32> to vector<32x32xbf16>
    %cst_219 = arith.constant dense<0.000000e+00> : vector<32x32xf32>
    %648 = tpu.matmul %646, %647, %cst_219 {dimension_numbers = #tpu.dot_dimension_numbers<[1], [0], [0], [1], [0, 0, 1, 1], [], []>} : vector<32x32xbf16>, vector<32x32xbf16>, vector<32x32xf32> -> vector<32x32xf32>
    %c728 = arith.constant 728 : index
    %c0_220 = arith.constant 0 : index
    %649 = vector.load %arg6[%c728, %c0_220] : memref<776x32xf32, #tpu.memory_space<vmem>>, vector<1x32xf32>
    %650 = vector.broadcast %649 : vector<1x32xf32> to vector<32x32xf32>
    %651 = arith.addf %648, %650 : vector<32x32xf32>
    %cst_221 = arith.constant 5.000000e-01 : f32
    %652 = vector.broadcast %cst_221 : f32 to vector<32x32xf32>
    %653 = arith.mulf %652, %651 : vector<32x32xf32>
    %cst_222 = arith.constant 4.471500e-02 : f32
    %654 = vector.broadcast %cst_222 : f32 to vector<32x32xf32>
    %655 = arith.mulf %654, %651 : vector<32x32xf32>
    %656 = arith.mulf %655, %651 : vector<32x32xf32>
    %657 = arith.mulf %656, %651 : vector<32x32xf32>
    %658 = arith.addf %651, %657 : vector<32x32xf32>
    %cst_223 = arith.constant 0.797884583 : f32
    %659 = vector.broadcast %cst_223 : f32 to vector<32x32xf32>
    %660 = arith.mulf %659, %658 : vector<32x32xf32>
    %661 = math.tanh %660 : vector<32x32xf32>
    %cst_224 = arith.constant 1.000000e+00 : f32
    %662 = vector.broadcast %cst_224 : f32 to vector<32x32xf32>
    %663 = arith.addf %662, %661 : vector<32x32xf32>
    %664 = arith.mulf %653, %663 : vector<32x32xf32>
    %c736 = arith.constant 736 : index
    %c0_225 = arith.constant 0 : index
    %665 = vector.load %arg6[%c736, %c0_225] : memref<776x32xf32, #tpu.memory_space<vmem>>, vector<32x32xf32>
    %666 = arith.truncf %664 : vector<32x32xf32> to vector<32x32xbf16>
    %667 = arith.truncf %665 : vector<32x32xf32> to vector<32x32xbf16>
    %cst_226 = arith.constant dense<0.000000e+00> : vector<32x32xf32>
    %668 = tpu.matmul %666, %667, %cst_226 {dimension_numbers = #tpu.dot_dimension_numbers<[1], [0], [0], [1], [0, 0, 1, 1], [], []>} : vector<32x32xbf16>, vector<32x32xbf16>, vector<32x32xf32> -> vector<32x32xf32>
    %c768 = arith.constant 768 : index
    %c0_227 = arith.constant 0 : index
    %669 = vector.load %arg6[%c768, %c0_227] : memref<776x32xf32, #tpu.memory_space<vmem>>, vector<1x32xf32>
    %670 = vector.broadcast %669 : vector<1x32xf32> to vector<32x32xf32>
    %671 = arith.addf %668, %670 : vector<32x32xf32>
    %672 = vector.extract_strided_slice %671 {offsets = [0, 0], sizes = [32, 8], strides = [1, 1]} : vector<32x32xf32> to vector<32x8xf32>
    %c0_228 = arith.constant 0 : index
    %c0_229 = arith.constant 0 : index
    %673 = vector.load %arg7[%c0_228, %c0_229] : memref<32x8xf32, #tpu.memory_space<vmem>>, vector<32x8xf32>
    tpu.vector_store %arg7[%c0_228, %c0_229], %672 {strides = array<i32>} : memref<32x8xf32, #tpu.memory_space<vmem>>, vector<32x8xf32>,
    return
  }
  func.func @transform_0(%arg0: i32) -> (i32, i32) {
    %c0_i32 = arith.constant 0 : i32
    %c0_i32_0 = arith.constant 0 : i32
    %c0_i32_1 = arith.constant 0 : i32
    return %c0_i32, %c0_i32_0 : i32, i32
  }
  func.func @transform_1(%arg0: i32) -> (i32, i32) {
    %c0_i32 = arith.constant 0 : i32
    %c0_i32_0 = arith.constant 0 : i32
    %c0_i32_1 = arith.constant 0 : i32
    return %c0_i32, %c0_i32_0 : i32, i32
  }
  func.func @transform_2(%arg0: i32) -> (i32, i32) {
    %c0_i32 = arith.constant 0 : i32
    %c0_i32_0 = arith.constant 0 : i32
    %c0_i32_1 = arith.constant 0 : i32
    return %c0_i32, %c0_i32_0 : i32, i32
  }
  func.func @transform_3(%arg0: i32) -> (i32, i32) {
    %c0_i32 = arith.constant 0 : i32
    %c0_i32_0 = arith.constant 0 : i32
    %c0_i32_1 = arith.constant 0 : i32
    return %c0_i32, %c0_i32_0 : i32, i32
  }
  func.func @transform_4(%arg0: i32) -> (i32, i32) {
    %c0_i32 = arith.constant 0 : i32
    %c0_i32_0 = arith.constant 0 : i32
    %c0_i32_1 = arith.constant 0 : i32
    return %c0_i32, %c0_i32_0 : i32, i32
  }
  func.func @transform_5(%arg0: i32) -> (i32, i32) {
    %c0_i32 = arith.constant 0 : i32
    %c0_i32_0 = arith.constant 0 : i32
    %c0_i32_1 = arith.constant 0 : i32
    return %c0_i32, %c0_i32_0 : i32, i32
  }
  func.func @transform_6(%arg0: i32) -> (i32, i32) {
    %c0_i32 = arith.constant 0 : i32
    %c0_i32_0 = arith.constant 0 : i32
    %c0_i32_1 = arith.constant 0 : i32
    return %c0_i32, %c0_i32_0 : i32, i32
  }
}

</mosaic_0001>

<llo_original>
// kernel: mul.102
$region0: #{mul.102}
  #allocation0 [shape = 's32[1]{0}', space=sflag, size = 0x4, scoped, tag = 'scoped memory for mul.102']
  %s0 = inlined_call_operand.vmem [shape: f32[1,32], index: 0, kind: input, shape index: {}]
  %s1 = inlined_call_operand.vmem [shape: f32[1,32], index: 1, kind: input, shape index: {}]
  %s2 = inlined_call_operand.vmem [shape: f32[1,32], index: 2, kind: output, shape index: {}]
  %v3 = vld [vmem:[%s0] sm:$0x1]
  %v4 = vld [vmem:[%s1] sm:$0x1]
  %5 = xla_tuple %v3, %v4
  %6 = xla_tuple %5
  %v7 = vmul.f32 %v3, %v4
  %8 = xla_tuple %v7
  %9 = vst [vmem:[%s2] sm:$0x1] %v7

// kernel: convnext_forward.1
$region0: #{convnext_forward.1}
  #allocation0 [shape = 'u32[]', space=smem, size = 0x4, offset = 0x4, fixed_abs, tag = 'smem constant byte address 0x4 - core index']
  #allocation1 [shape = 'u32[72,128]{1,0:T(1,128)}', space=vmem, size = 0x9000, scoped, tag = 'internal scratch']
  %s0 = inlined_call_operand.vmem [shape: f32[32,24], index: 0, kind: input, shape index: {}]
  %s1 = inlined_call_operand.vmem [shape: f32[32,128], index: 1, kind: input, shape index: {}]
  %s2 = inlined_call_operand.vmem [shape: f32[32,160], index: 2, kind: input, shape index: {}]
  %s3 = inlined_call_operand.vmem [shape: f32[32,128], index: 3, kind: input, shape index: {}]
  %s4 = inlined_call_operand.vmem [shape: f32[136,128], index: 4, kind: input, shape index: {}]
  %s5 = inlined_call_operand.vmem [shape: f32[776,32], index: 5, kind: input, shape index: {}]
  %s6 = inlined_call_operand.vmem [shape: f32[32,8], index: 6, kind: output, shape index: {}]
  %s7 = sld [smem:[#allocation0]]
  $region34: #{convnext_forward.1} parent=0
    _
  %s9 = ssub.s32 1, %s7
  %s10 = scalar_select 0, %s9, %s7
  // Predicated region
  $region2: #{convnext_forward.1} parent=0 // pred_check
    _
  $region3: #{convnext_forward.1} parent=0 // pred_check_branch
    %12 = sbr.rel (0) target = $region5
  $region4: #{convnext_forward.1} parent=0 // pred_region
    _
  $region5: #{convnext_forward.1} parent=0 // pred_fallthru
    _
  // Predicated region
  $region6: #{convnext_forward.1} parent=0 // pred_check
    _
  $region7: #{convnext_forward.1} parent=0 // pred_check_branch
    %14 = sbr.rel (0) target = $region9
  $region8: #{convnext_forward.1} parent=0 // pred_region
    _
  $region9: #{convnext_forward.1} parent=0 // pred_fallthru
    _
  // Predicated region
  $region10: #{convnext_forward.1} parent=0 // pred_check
    _
  $region11: #{convnext_forward.1} parent=0 // pred_check_branch
    %16 = sbr.rel (0) target = $region13
  $region12: #{convnext_forward.1} parent=0 // pred_region
    _
  $region13: #{convnext_forward.1} parent=0 // pred_fallthru
    _
  // Predicated region
  $region14: #{convnext_forward.1} parent=0 // pred_check
    _
  $region15: #{convnext_forward.1} parent=0 // pred_check_branch
    %18 = sbr.rel (0) target = $region17
  $region16: #{convnext_forward.1} parent=0 // pred_region
    _
  $region17: #{convnext_forward.1} parent=0 // pred_fallthru
    _
  // Predicated region
  $region18: #{convnext_forward.1} parent=0 // pred_check
    _
  $region19: #{convnext_forward.1} parent=0 // pred_check_branch
    %20 = sbr.rel (0) target = $region21
  $region20: #{convnext_forward.1} parent=0 // pred_region
    _
  $region21: #{convnext_forward.1} parent=0 // pred_fallthru
    _
  // Predicated region
  $region22: #{convnext_forward.1} parent=0 // pred_check
    _
  $region23: #{convnext_forward.1} parent=0 // pred_check_branch
    %22 = sbr.rel (0) target = $region25
  $region24: #{convnext_forward.1} parent=0 // pred_region
    _
  $region25: #{convnext_forward.1} parent=0 // pred_fallthru
    _
  %v24 = vld [vmem:[%s0] sm:$0xff]
  %v25 = vld [vmem:[%s0 + $0x8] sm:$0xff]
  %v26 = vld [vmem:[%s0 + $0x10] sm:$0xff]
  %v27 = vld [vmem:[%s0 + $0x18] sm:$0xff]
  %v28 = vld [vmem:[%s2] sm:$0xff]
  %v29 = vld [vmem:[%s2 + $0x8] sm:$0xff]
  %v30 = vld [vmem:[%s2 + $0x10] sm:$0xff]
  %v31 = vld [vmem:[%s2 + $0x18] sm:$0xff]
  %v32 = vld [vmem:[%s2 + $0x20] sm:$0xff]
  %v33 = vld [vmem:[%s2 + $0x28] sm:$0xff]
  %v34 = vpack.c.bf16 %v25, %v24
  %v35 = vpack.c.bf16 %v27, %v26
  %v36 = vpack.c.bf16 %v30, %v28
  %v37 = vpack.c.bf16 %v31, %v29
  %v38 = vpack.c.bf16 %v32, %v32
  %v39 = vpack.c.bf16 %v33, %v33
  %s40 = scalar_lea.vmem %s2, 48
  %v41 = vld [vmem:[%s40] ss:$8 sm:$0x3]
  %v43 = vperm.slane %v41, 0
  %v44 = vperm.slane %v41, 1
  %vm47 = vcmask 195584
  %v49 = vsel %vm47, %v34, 0
  %v52 = vsel %vm47, %v35, 0
  %vm54 = vcmask 1043456
  %v56 = vsel %vm54, %v38, 0
  %v59 = vsel %vm54, %v39, 0
  %61 = vmatpush.bf16.msra.mxu0 0
  %62 = vmatpush.bf16.msra.mxu0 0
  %63 = vmatpush.bf16.msra.mxu0 0
  %64 = vmatpush.bf16.msra.mxu0 0
  %65 = vmatpush.bf16.msra.mxu0 0
  %66 = vmatpush.bf16.msra.mxu0 0
  %67 = vmatpush.bf16.msra.mxu0 %v56
  %68 = vmatpush.bf16.msra.mxu0 %v36
  %69 = vmatmul.bf16.gmra.mxu0 %v49
  %v70 = vpop.f32.mrf.mxu0
  %v71 = vadd.f32 %v43, %v70
  %v72 = vpop.f32.mrf.mxu0
  %v73 = vadd.f32 %v43, %v72
  %74 = vmatmul.bf16.gmra.mxu0 %v52
  %v75 = vpop.f32.mrf.mxu0
  %v76 = vadd.f32 %v43, %v75
  %v77 = vpop.f32.mrf.mxu0
  %v78 = vadd.f32 %v43, %v77
  %79 = vdwg.mxu0
  %80 = vmatpush.bf16.msra.mxu0 0
  %81 = vmatpush.bf16.msra.mxu0 0
  %82 = vmatpush.bf16.msra.mxu0 0
  %83 = vmatpush.bf16.msra.mxu0 0
  %84 = vmatpush.bf16.msra.mxu0 0
  %85 = vmatpush.bf16.msra.mxu0 0
  %86 = vmatpush.bf16.msra.mxu0 %v59
  %87 = vmatpush.bf16.msra.mxu0 %v37
  %88 = vmatmul.bf16.gmra.mxu0 %v49
  %v89 = vpop.f32.mrf.mxu0
  %v90 = vadd.f32 %v44, %v89
  %v91 = vpop.f32.mrf.mxu0
  %v92 = vadd.f32 %v44, %v91
  %93 = vmatmul.bf16.gmra.mxu0 %v52
  %v94 = vpop.f32.mrf.mxu0
  %v95 = vadd.f32 %v44, %v94
  %v96 = vpop.f32.mrf.mxu0
  %v97 = vadd.f32 %v44, %v96
  %98 = vdwg.mxu0
  %v99 = vmul.f32 %v71, 0.5
  %v100 = vmul.f32 %v90, 0.5
  %v101 = vmul.f32 %v73, 0.5
  %v102 = vmul.f32 %v92, 0.5
  %v103 = vmul.f32 %v76, 0.5
  %v104 = vmul.f32 %v95, 0.5
  %v105 = vmul.f32 %v78, 0.5
  %v106 = vmul.f32 %v97, 0.5
  %v107 = vmul.f32 %v71, 0.044715
  %v108 = vmul.f32 %v90, 0.044715
  %v109 = vmul.f32 %v73, 0.044715
  %v110 = vmul.f32 %v92, 0.044715
  %v111 = vmul.f32 %v76, 0.044715
  %v112 = vmul.f32 %v95, 0.044715
  %v113 = vmul.f32 %v78, 0.044715
  %v114 = vmul.f32 %v97, 0.044715
  %v115 = vmul.f32 %v107, %v71
  %v116 = vmul.f32 %v108, %v90
  %v117 = vmul.f32 %v109, %v73
  %v118 = vmul.f32 %v110, %v92
  %v119 = vmul.f32 %v111, %v76
  %v120 = vmul.f32 %v112, %v95
  %v121 = vmul.f32 %v113, %v78
  %v122 = vmul.f32 %v114, %v97
  %v123 = vmul.f32 %v115, %v71
  %v124 = vmul.f32 %v116, %v90
  %v125 = vmul.f32 %v117, %v73
  %v126 = vmul.f32 %v118, %v92
  %v127 = vmul.f32 %v119, %v76
  %v128 = vmul.f32 %v120, %v95
  %v129 = vmul.f32 %v121, %v78
  %v130 = vmul.f32 %v122, %v97
  %v131 = vadd.f32 %v71, %v123
  %v132 = vadd.f32 %v90, %v124
  %v133 = vadd.f32 %v73, %v125
  %v134 = vadd.f32 %v92, %v126
  %v135 = vadd.f32 %v76, %v127
  %v136 = vadd.f32 %v95, %v128
  %v137 = vadd.f32 %v78, %v129
  %v138 = vadd.f32 %v97, %v130
  %v139 = vmul.f32 %v131, 0.7978846
  %v140 = vmul.f32 %v132, 0.7978846
  %v141 = vmul.f32 %v133, 0.7978846
  %v142 = vmul.f32 %v134, 0.7978846
  %v143 = vmul.f32 %v135, 0.7978846
  %v144 = vmul.f32 %v136, 0.7978846
  %v145 = vmul.f32 %v137, 0.7978846
  %v146 = vmul.f32 %v138, 0.7978846
  %v147 = vtanh.pop %v139
  %v148 = vtanh.pop %v140
  %v149 = vtanh.pop %v141
  %v150 = vtanh.pop %v142
  %v151 = vtanh.pop %v143
  %v152 = vtanh.pop %v144
  %v153 = vtanh.pop %v145
  %v154 = vtanh.pop %v146
  %v155 = vadd.f32 %v147, 1.0
  %v156 = vadd.f32 %v148, 1.0
  %v157 = vadd.f32 %v149, 1.0
  %v158 = vadd.f32 %v150, 1.0
  %v159 = vadd.f32 %v151, 1.0
  %v160 = vadd.f32 %v152, 1.0
  %v161 = vadd.f32 %v153, 1.0
  %v162 = vadd.f32 %v154, 1.0
  %v163 = vmul.f32 %v99, %v155
  %v164 = vmul.f32 %v100, %v156
  %v165 = vmul.f32 %v101, %v157
  %v166 = vmul.f32 %v102, %v158
  %v167 = vmul.f32 %v103, %v159
  %v168 = vmul.f32 %v104, %v160
  %v169 = vmul.f32 %v105, %v161
  %v170 = vmul.f32 %v106, %v162
  %v171 = vld [vmem:[%s5] sm:$0xff]
  %v172 = vld [vmem:[%s5 + $0x8] sm:$0xff]
  %v173 = vld [vmem:[%s5 + $0x10] sm:$0xff]
  %v174 = vld [vmem:[%s5 + $0x18] sm:$0xff]
  %v175 = vld [vmem:[%s5 + $0x20] sm:$0xff]
  %v176 = vld [vmem:[%s5 + $0x28] sm:$0xff]
  %v177 = vld [vmem:[%s5 + $0x30] sm:$0xff]
  %v178 = vld [vmem:[%s5 + $0x38] sm:$0xff]
  %v179 = vld [vmem:[%s5 + $0x40] sm:$0xff]
  %v180 = vld [vmem:[%s5 + $0x48] sm:$0xff]
  %v181 = vld [vmem:[%s5 + $0x50] sm:$0xff]
  %v182 = vld [vmem:[%s5 + $0x58] sm:$0xff]
  %v183 = vld [vmem:[%s5 + $0x60] sm:$0xff]
  %v184 = vld [vmem:[%s5 + $0x68] sm:$0xff]
  %v185 = vld [vmem:[%s5 + $0x70] sm:$0xff]
  %v186 = vld [vmem:[%s5 + $0x78] sm:$0xff]
  %v187 = vpack.c.bf16 %v165, %v163
  %v188 = vpack.c.bf16 %v169, %v167
  %v189 = vpack.c.bf16 %v172, %v171
  %v190 = vpack.c.bf16 %v174, %v173
  %v191 = vpack.c.bf16 %v176, %v175
  %v192 = vpack.c.bf16 %v178, %v177
  %v193 = vpack.c.bf16 %v180, %v179
  %v194 = vpack.c.bf16 %v182, %v181
  %v195 = vpack.c.bf16 %v184, %v183
  %v196 = vpack.c.bf16 %v186, %v185
  %v197 = vld [vmem:[%s5 + $0x80] sm:$0x1]
  %v198 = vperm.slane %v197, 0
  %199 = vmatpush.bf16.msra.mxu0 %v196
  %200 = vmatpush.bf16.msra.mxu0 %v195
  %201 = vmatpush.bf16.msra.mxu0 %v194
  %202 = vmatpush.bf16.msra.mxu0 %v193
  %203 = vmatpush.bf16.msra.mxu0 %v192
  %204 = vmatpush.bf16.msra.mxu0 %v191
  %205 = vmatpush.bf16.msra.mxu0 %v190
  %206 = vmatpush.bf16.msra.mxu0 %v189
  %207 = vmatmul.bf16.gmra.mxu0 %v187
  %v208 = vpop.f32.mrf.mxu0
  %v209 = vadd.f32 %v198, %v208
  %v210 = vpop.f32.mrf.mxu0
  %v211 = vadd.f32 %v198, %v210
  %212 = vmatmul.bf16.gmra.mxu0 %v188
  %v213 = vpop.f32.mrf.mxu0
  %v214 = vadd.f32 %v198, %v213
  %v215 = vpop.f32.mrf.mxu0
  %v216 = vadd.f32 %v198, %v215
  %217 = vdwg.mxu0
  %v218 = vld [vmem:[%s3] sm:$0xff]
  %v219 = vld [vmem:[%s3 + $0x8] sm:$0xff]
  %v220 = vld [vmem:[%s3 + $0x10] sm:$0xff]
  %v221 = vld [vmem:[%s3 + $0x18] sm:$0xff]
  %v222 = vpack.c.bf16 %v211, %v209
  %v223 = vpack.c.bf16 %v216, %v214
  %v224 = vpack.c.bf16 %v219, %v218
  %v225 = vpack.c.bf16 %v221, %v220
  %v226 = vld [vmem:[%s1] sm:$0xff]
  %v227 = vld [vmem:[%s1 + $0x8] sm:$0xff]
  %v228 = vld [vmem:[%s1 + $0x10] sm:$0xff]
  %v229 = vld [vmem:[%s1 + $0x18] sm:$0xff]
  %vm230 = vcmask 261120
  %v232 = vsel %vm230, %v222, 0
  %v235 = vsel %vm230, %v223, 0
  %237 = vmatpush.bf16.msra.mxu0 0
  %238 = vmatpush.bf16.msra.mxu0 0
  %239 = vmatpush.bf16.msra.mxu0 0
  %240 = vmatpush.bf16.msra.mxu0 0
  %241 = vmatpush.bf16.msra.mxu0 0
  %242 = vmatpush.bf16.msra.mxu0 0
  %243 = vmatpush.bf16.msra.mxu0 %v225
  %244 = vmatpush.bf16.msra.mxu0 %v224
  %245 = vmatmul.bf16.gmra.mxu0 %v232
  %v246 = vpop.f32.mrf.mxu0
  %v247 = vadd.f32 %v226, %v246
  %v248 = vpop.f32.mrf.mxu0
  %v249 = vadd.f32 %v227, %v248
  %250 = vmatmul.bf16.gmra.mxu0 %v235
  %v251 = vpop.f32.mrf.mxu0
  %v252 = vadd.f32 %v228, %v251
  %v253 = vpop.f32.mrf.mxu0
  %v254 = vadd.f32 %v229, %v253
  %255 = vdwg.mxu0
  %v256 = vlaneseq
  %v257 = vshrl.u32 %v256, 7
  %v258 = vadd.s32 %v257, 8
  %v259 = vadd.s32 %v257, 16
  %v260 = vadd.s32 %v257, 24
  %vm261 = vcmp.lt.s32.totalorder %v257, 0
  %v262 = vsub.s32 0, %v257
  %v263 = vsel %vm261, %v262, %v257
  %v264 = vshrl.u32 %v263, 4
  %v265 = vand.u32 %v263, 15
  %v266 = vsub.s32 0, %v265
  %v267 = vsel %vm261, %v266, %v265
  %vm268 = vcmp.lt.s32.totalorder %v258, 0
  %v269 = vsub.s32 0, %v258
  %v270 = vsel %vm268, %v269, %v258
  %v271 = vshrl.u32 %v270, 4
  %v272 = vand.u32 %v270, 15
  %v273 = vsub.s32 0, %v272
  %v274 = vsel %vm268, %v273, %v272
  %vm275 = vcmp.lt.s32.totalorder %v259, 0
  %v276 = vsub.s32 0, %v259
  %v277 = vsel %vm275, %v276, %v259
  %v278 = vshrl.u32 %v277, 4
  %v279 = vand.u32 %v277, 15
  %v280 = vsub.s32 0, %v279
  %v281 = vsel %vm275, %v280, %v279
  %vm282 = vcmp.lt.s32.totalorder %v260, 0
  %v283 = vsub.s32 0, %v260
  %v284 = vsel %vm282, %v283, %v260
  %v285 = vshrl.u32 %v284, 4
  %v286 = vand.u32 %v284, 15
  %v287 = vsub.s32 0, %v286
  %v288 = vsel %vm282, %v287, %v286
  %vm289 = vcmp.ne.s32.totalorder %v267, 0
  %vm290 = vcmp.ne.s32.totalorder %v274, 0
  %vm291 = vcmp.ne.s32.totalorder %v281, 0
  %vm292 = vcmp.ne.s32.totalorder %v288, 0
  %vm293 = vcmp.lt.s32.totalorder %v267, 0
  %vm294 = vcmp.lt.s32.totalorder %v274, 0
  %vm295 = vcmp.lt.s32.totalorder %v281, 0
  %vm296 = vcmp.lt.s32.totalorder %v288, 0
  %vm297 = vmand %vm293, %vm289
  %vm298 = vmand %vm294, %vm290
  %vm299 = vmand %vm295, %vm291
  %vm300 = vmand %vm296, %vm292
  %v301 = vadd.s32 %v267, 16
  %v302 = vadd.s32 %v274, 16
  %v303 = vadd.s32 %v281, 16
  %v304 = vadd.s32 %v288, 16
  %v305 = vsel %vm297, %v301, %v267
  %v306 = vsel %vm298, %v302, %v274
  %v307 = vsel %vm299, %v303, %v281
  %v308 = vsel %vm300, %v304, %v288
  %v309 = vadd.f32 %v164, %v247
  %v310 = vadd.f32 %v166, %v249
  %v311 = vadd.f32 %v168, %v252
  %v312 = vadd.f32 %v170, %v254
  %v313 = vld [vmem:[%s5 + $0xa8] sm:$0x1]
  %v314 = vperm.slane %v313, 0
  %v315 = vadd.f32 %v314, 0.0
  %v316 = vld [vmem:[%s5 + $0x88] sm:$0x1]
  %v317 = vrot.slane %v309, 5
  %v318 = vrot.slane %v310, 5
  %v319 = vrot.slane %v311, 5
  %v320 = vrot.slane %v312, 5
  %vm321 = vcmp.lt.s32.totalorder %v257, 3
  %v322 = vsel %vm321, %v319, %v320
  %v323 = vsel %vm321, %v318, %v319
  %v324 = vsel %vm321, %v317, %v318
  %v325 = vsel %vm321, %v320, %v317
  %v326 = vadd.s32 %v305, 4294967293
  %v327 = vadd.s32 %v306, 4294967293
  %v328 = vadd.s32 %v307, 4294967293
  %v329 = vadd.s32 %v308, 4294967293
  %vm330 = vcmp.ge.s32.totalorder %v326, 0
  %vm331 = vcmp.ge.s32.totalorder %v327, 0
  %vm332 = vcmp.ge.s32.totalorder %v328, 0
  %vm333 = vcmp.ge.s32.totalorder %v329, 0
  %vm334 = vcmp.lt.s32.totalorder %v326, 16
  %vm335 = vcmp.lt.s32.totalorder %v327, 16
  %vm336 = vcmp.lt.s32.totalorder %v328, 16
  %vm337 = vcmp.lt.s32.totalorder %v329, 16
  %vm338 = vmand %vm330, %vm334
  %vm339 = vmand %vm331, %vm335
  %vm340 = vmand %vm332, %vm336
  %vm341 = vmand %vm333, %vm337
  %v342 = vsel %vm338, 1, 0
  %v343 = vsel %vm339, 1, 0
  %v344 = vsel %vm340, 1, 0
  %v345 = vsel %vm341, 1, 0
  %vm346 = vcmp.eq.s32.totalorder %v342, 1
  %vm347 = vcmp.eq.s32.totalorder %v343, 1
  %vm348 = vcmp.eq.s32.totalorder %v344, 1
  %vm349 = vcmp.eq.s32.totalorder %v345, 1
  %v350 = vsel %vm346, %v325, 0.0
  %v351 = vsel %vm347, %v324, 0.0
  %v352 = vsel %vm348, %v323, 0.0
  %v353 = vsel %vm349, %v322, 0.0
  %v354 = vperm.slane %v316, 0
  %v355 = vmul.f32 %v350, %v354
  %v356 = vmul.f32 %v351, %v354
  %v357 = vmul.f32 %v352, %v354
  %v358 = vmul.f32 %v353, %v354
  %v359 = vadd.f32 %v315, %v355
  %v360 = vadd.f32 %v315, %v356
  %v361 = vadd.f32 %v315, %v357
  %v362 = vadd.f32 %v315, %v358
  %v363 = vld [vmem:[%s5 + $0x89] sm:$0x1]
  %v364 = vrot.slane %v309, 6
  %v365 = vrot.slane %v310, 6
  %v366 = vrot.slane %v311, 6
  %v367 = vrot.slane %v312, 6
  %vm368 = vcmp.lt.s32.totalorder %v257, 2
  %v369 = vsel %vm368, %v366, %v367
  %v370 = vsel %vm368, %v365, %v366
  %v371 = vsel %vm368, %v364, %v365
  %v372 = vsel %vm368, %v367, %v364
  %v373 = vadd.s32 %v305, 4294967294
  %v374 = vadd.s32 %v306, 4294967294
  %v375 = vadd.s32 %v307, 4294967294
  %v376 = vadd.s32 %v308, 4294967294
  %vm377 = vcmp.ge.s32.totalorder %v373, 0
  %vm378 = vcmp.ge.s32.totalorder %v374, 0
  %vm379 = vcmp.ge.s32.totalorder %v375, 0
  %vm380 = vcmp.ge.s32.totalorder %v376, 0
  %vm381 = vcmp.lt.s32.totalorder %v373, 16
  %vm382 = vcmp.lt.s32.totalorder %v374, 16
  %vm383 = vcmp.lt.s32.totalorder %v375, 16
  %vm384 = vcmp.lt.s32.totalorder %v376, 16
  %vm385 = vmand %vm377, %vm381
  %vm386 = vmand %vm378, %vm382
  %vm387 = vmand %vm379, %vm383
  %vm388 = vmand %vm380, %vm384
  %v389 = vsel %vm385, 1, 0
  %v390 = vsel %vm386, 1, 0
  %v391 = vsel %vm387, 1, 0
  %v392 = vsel %vm388, 1, 0
  %vm393 = vcmp.eq.s32.totalorder %v389, 1
  %vm394 = vcmp.eq.s32.totalorder %v390, 1
  %vm395 = vcmp.eq.s32.totalorder %v391, 1
  %vm396 = vcmp.eq.s32.totalorder %v392, 1
  %v397 = vsel %vm393, %v372, 0.0
  %v398 = vsel %vm394, %v371, 0.0
  %v399 = vsel %vm395, %v370, 0.0
  %v400 = vsel %vm396, %v369, 0.0
  %v401 = vperm.slane %v363, 0
  %v402 = vmul.f32 %v397, %v401
  %v403 = vmul.f32 %v398, %v401
  %v404 = vmul.f32 %v399, %v401
  %v405 = vmul.f32 %v400, %v401
  %v406 = vadd.f32 %v359, %v402
  %v407 = vadd.f32 %v360, %v403
  %v408 = vadd.f32 %v361, %v404
  %v409 = vadd.f32 %v362, %v405
  %v410 = vld [vmem:[%s5 + $0x8a] sm:$0x1]
  %v411 = vrot.slane %v309, 7
  %v412 = vrot.slane %v310, 7
  %v413 = vrot.slane %v311, 7
  %v414 = vrot.slane %v312, 7
  %vm415 = vcmp.lt.s32.totalorder %v257, 1
  %v416 = vsel %vm415, %v413, %v414
  %v417 = vsel %vm415, %v412, %v413
  %v418 = vsel %vm415, %v411, %v412
  %v419 = vsel %vm415, %v414, %v411
  %v420 = vadd.s32 %v305, 4294967295
  %v421 = vadd.s32 %v306, 4294967295
  %v422 = vadd.s32 %v307, 4294967295
  %v423 = vadd.s32 %v308, 4294967295
  %vm424 = vcmp.ge.s32.totalorder %v420, 0
  %vm425 = vcmp.ge.s32.totalorder %v421, 0
  %vm426 = vcmp.ge.s32.totalorder %v422, 0
  %vm427 = vcmp.ge.s32.totalorder %v423, 0
  %vm428 = vcmp.lt.s32.totalorder %v420, 16
  %vm429 = vcmp.lt.s32.totalorder %v421, 16
  %vm430 = vcmp.lt.s32.totalorder %v422, 16
  %vm431 = vcmp.lt.s32.totalorder %v423, 16
  %vm432 = vmand %vm424, %vm428
  %vm433 = vmand %vm425, %vm429
  %vm434 = vmand %vm426, %vm430
  %vm435 = vmand %vm427, %vm431
  %v436 = vsel %vm432, 1, 0
  %v437 = vsel %vm433, 1, 0
  %v438 = vsel %vm434, 1, 0
  %v439 = vsel %vm435, 1, 0
  %vm440 = vcmp.eq.s32.totalorder %v436, 1
  %vm441 = vcmp.eq.s32.totalorder %v437, 1
  %vm442 = vcmp.eq.s32.totalorder %v438, 1
  %vm443 = vcmp.eq.s32.totalorder %v439, 1
  %v444 = vsel %vm440, %v419, 0.0
  %v445 = vsel %vm441, %v418, 0.0
  %v446 = vsel %vm442, %v417, 0.0
  %v447 = vsel %vm443, %v416, 0.0
  %v448 = vperm.slane %v410, 0
  %v449 = vmul.f32 %v444, %v448
  %v450 = vmul.f32 %v445, %v448
  %v451 = vmul.f32 %v446, %v448
  %v452 = vmul.f32 %v447, %v448
  %v453 = vadd.f32 %v406, %v449
  %v454 = vadd.f32 %v407, %v450
  %v455 = vadd.f32 %v408, %v451
  %v456 = vadd.f32 %v409, %v452
  %v457 = vld [vmem:[%s5 + $0x8b] sm:$0x1]
  %v458 = vperm.slane %v457, 0
  %v459 = vmul.f32 %v309, %v458
  %v460 = vmul.f32 %v310, %v458
  %v461 = vmul.f32 %v311, %v458
  %v462 = vmul.f32 %v312, %v458
  %v463 = vadd.f32 %v453, %v459
  %v464 = vadd.f32 %v454, %v460
  %v465 = vadd.f32 %v455, %v461
  %v466 = vadd.f32 %v456, %v462
  %v467 = vld [vmem:[%s5 + $0x8c] sm:$0x1]
  %v468 = vrot.slane %v309, 1
  %v469 = vrot.slane %v310, 1
  %v470 = vrot.slane %v311, 1
  %v471 = vrot.slane %v312, 1
  %vm472 = vcmp.lt.s32.totalorder %v257, 7
  %v473 = vsel %vm472, %v470, %v471
  %v474 = vsel %vm472, %v469, %v470
  %v475 = vsel %vm472, %v468, %v469
  %v476 = vsel %vm472, %v471, %v468
  %v477 = vadd.s32 %v305, 1
  %v478 = vadd.s32 %v306, 1
  %v479 = vadd.s32 %v307, 1
  %v480 = vadd.s32 %v308, 1
  %vm481 = vcmp.ge.s32.totalorder %v477, 0
  %vm482 = vcmp.ge.s32.totalorder %v478, 0
  %vm483 = vcmp.ge.s32.totalorder %v479, 0
  %vm484 = vcmp.ge.s32.totalorder %v480, 0
  %vm485 = vcmp.lt.s32.totalorder %v477, 16
  %vm486 = vcmp.lt.s32.totalorder %v478, 16
  %vm487 = vcmp.lt.s32.totalorder %v479, 16
  %vm488 = vcmp.lt.s32.totalorder %v480, 16
  %vm489 = vmand %vm481, %vm485
  %vm490 = vmand %vm482, %vm486
  %vm491 = vmand %vm483, %vm487
  %vm492 = vmand %vm484, %vm488
  %v493 = vsel %vm489, 1, 0
  %v494 = vsel %vm490, 1, 0
  %v495 = vsel %vm491, 1, 0
  %v496 = vsel %vm492, 1, 0
  %vm497 = vcmp.eq.s32.totalorder %v493, 1
  %vm498 = vcmp.eq.s32.totalorder %v494, 1
  %vm499 = vcmp.eq.s32.totalorder %v495, 1
  %vm500 = vcmp.eq.s32.totalorder %v496, 1
  %v501 = vsel %vm497, %v475, 0.0
  %v502 = vsel %vm498, %v474, 0.0
  %v503 = vsel %vm499, %v473, 0.0
  %v504 = vsel %vm500, %v476, 0.0
  %v505 = vperm.slane %v467, 0
  %v506 = vmul.f32 %v501, %v505
  %v507 = vmul.f32 %v502, %v505
  %v508 = vmul.f32 %v503, %v505
  %v509 = vmul.f32 %v504, %v505
  %v510 = vadd.f32 %v463, %v506
  %v511 = vadd.f32 %v464, %v507
  %v512 = vadd.f32 %v465, %v508
  %v513 = vadd.f32 %v466, %v509
  %v514 = vld [vmem:[%s5 + $0x8d] sm:$0x1]
  %v515 = vrot.slane %v309, 2
  %v516 = vrot.slane %v310, 2
  %v517 = vrot.slane %v311, 2
  %v518 = vrot.slane %v312, 2
  %vm519 = vcmp.lt.s32.totalorder %v257, 6
  %v520 = vsel %vm519, %v517, %v518
  %v521 = vsel %vm519, %v516, %v517
  %v522 = vsel %vm519, %v515, %v516
  %v523 = vsel %vm519, %v518, %v515
  %v524 = vadd.s32 %v305, 2
  %v525 = vadd.s32 %v306, 2
  %v526 = vadd.s32 %v307, 2
  %v527 = vadd.s32 %v308, 2
  %vm528 = vcmp.ge.s32.totalorder %v524, 0
  %vm529 = vcmp.ge.s32.totalorder %v525, 0
  %vm530 = vcmp.ge.s32.totalorder %v526, 0
  %vm531 = vcmp.ge.s32.totalorder %v527, 0
  %vm532 = vcmp.lt.s32.totalorder %v524, 16
  %vm533 = vcmp.lt.s32.totalorder %v525, 16
  %vm534 = vcmp.lt.s32.totalorder %v526, 16
  %vm535 = vcmp.lt.s32.totalorder %v527, 16
  %vm536 = vmand %vm528, %vm532
  %vm537 = vmand %vm529, %vm533
  %vm538 = vmand %vm530, %vm534
  %vm539 = vmand %vm531, %vm535
  %v540 = vsel %vm536, 1, 0
  %v541 = vsel %vm537, 1, 0
  %v542 = vsel %vm538, 1, 0
  %v543 = vsel %vm539, 1, 0
  %vm544 = vcmp.eq.s32.totalorder %v540, 1
  %vm545 = vcmp.eq.s32.totalorder %v541, 1
  %vm546 = vcmp.eq.s32.totalorder %v542, 1
  %vm547 = vcmp.eq.s32.totalorder %v543, 1
  %v548 = vsel %vm544, %v522, 0.0
  %v549 = vsel %vm545, %v521, 0.0
  %v550 = vsel %vm546, %v520, 0.0
  %v551 = vsel %vm547, %v523, 0.0
  %v552 = vperm.slane %v514, 0
  %v553 = vmul.f32 %v548, %v552
  %v554 = vmul.f32 %v549, %v552
  %v555 = vmul.f32 %v550, %v552
  %v556 = vmul.f32 %v551, %v552
  %v557 = vadd.f32 %v510, %v553
  %v558 = vadd.f32 %v511, %v554
  %v559 = vadd.f32 %v512, %v555
  %v560 = vadd.f32 %v513, %v556
  %v561 = vld [vmem:[%s5 + $0x8e] sm:$0x1]
  %v562 = vrot.slane %v309, 3
  %v563 = vrot.slane %v310, 3
  %v564 = vrot.slane %v311, 3
  %v565 = vrot.slane %v312, 3
  %vm566 = vcmp.lt.s32.totalorder %v257, 5
  %v567 = vsel %vm566, %v564, %v565
  %v568 = vsel %vm566, %v563, %v564
  %v569 = vsel %vm566, %v562, %v563
  %v570 = vsel %vm566, %v565, %v562
  %v571 = vadd.s32 %v305, 3
  %v572 = vadd.s32 %v306, 3
  %v573 = vadd.s32 %v307, 3
  %v574 = vadd.s32 %v308, 3
  %vm575 = vcmp.ge.s32.totalorder %v571, 0
  %vm576 = vcmp.ge.s32.totalorder %v572, 0
  %vm577 = vcmp.ge.s32.totalorder %v573, 0
  %vm578 = vcmp.ge.s32.totalorder %v574, 0
  %vm579 = vcmp.lt.s32.totalorder %v571, 16
  %vm580 = vcmp.lt.s32.totalorder %v572, 16
  %vm581 = vcmp.lt.s32.totalorder %v573, 16
  %vm582 = vcmp.lt.s32.totalorder %v574, 16
  %vm583 = vmand %vm575, %vm579
  %vm584 = vmand %vm576, %vm580
  %vm585 = vmand %vm577, %vm581
  %vm586 = vmand %vm578, %vm582
  %v587 = vsel %vm583, 1, 0
  %v588 = vsel %vm584, 1, 0
  %v589 = vsel %vm585, 1, 0
  %v590 = vsel %vm586, 1, 0
  %vm591 = vcmp.eq.s32.totalorder %v587, 1
  %vm592 = vcmp.eq.s32.totalorder %v588, 1
  %vm593 = vcmp.eq.s32.totalorder %v589, 1
  %vm594 = vcmp.eq.s32.totalorder %v590, 1
  %v595 = vsel %vm591, %v569, 0.0
  %v596 = vsel %vm592, %v568, 0.0
  %v597 = vsel %vm593, %v567, 0.0
  %v598 = vsel %vm594, %v570, 0.0
  %v599 = vperm.slane %v561, 0
  %v600 = vmul.f32 %v595, %v599
  %v601 = vmul.f32 %v596, %v599
  %v602 = vmul.f32 %v597, %v599
  %v603 = vmul.f32 %v598, %v599
  %v604 = vadd.f32 %v557, %v600
  %v605 = vadd.f32 %v558, %v601
  %v606 = vadd.f32 %v559, %v602
  %v607 = vadd.f32 %v560, %v603
  %v608 = vsel %vm230, %v604, 0.0
  %609 = vadd.xlane.f32.xlu0 %v608
  %v610 = vpop.xlane.xlu0 %609
  %v611 = vsel %vm230, %v605, 0.0
  %612 = vadd.xlane.f32.xlu0 %v611
  %v613 = vpop.xlane.xlu0 %612
  %v614 = vsel %vm230, %v606, 0.0
  %615 = vadd.xlane.f32.xlu0 %v614
  %v616 = vpop.xlane.xlu0 %615
  %v617 = vsel %vm230, %v607, 0.0
  %618 = vadd.xlane.f32.xlu0 %v617
  %v619 = vpop.xlane.xlu0 %618
  %v620 = vrcp.pop 32.0
  %v621 = vmul.f32 32.0, %v620
  %v622 = vsub.f32 1.0, %v621
  %v623 = vmul.f32 %v620, %v622
  %v624 = vadd.f32 %v620, %v623
  %vm625 = vweird.f32 %v620
  %v626 = vsel %vm625, %v620, %v624
  %v627 = vmul.f32 %v610, %v626
  %v628 = vmul.f32 %v613, %v626
  %v629 = vmul.f32 %v616, %v626
  %v630 = vmul.f32 %v619, %v626
  %v631 = vmul.f32 %v604, %v604
  %v632 = vmul.f32 %v605, %v605
  %v633 = vmul.f32 %v606, %v606
  %v634 = vmul.f32 %v607, %v607
  %v635 = vsel %vm230, %v631, 0.0
  %636 = vadd.xlane.f32.xlu0 %v635
  %v637 = vpop.xlane.xlu0 %636
  %v638 = vsel %vm230, %v632, 0.0
  %639 = vadd.xlane.f32.xlu0 %v638
  %v640 = vpop.xlane.xlu0 %639
  %v641 = vsel %vm230, %v633, 0.0
  %642 = vadd.xlane.f32.xlu0 %v641
  %v643 = vpop.xlane.xlu0 %642
  %v644 = vsel %vm230, %v634, 0.0
  %645 = vadd.xlane.f32.xlu0 %v644
  %v646 = vpop.xlane.xlu0 %645
  %v647 = vmul.f32 %v637, %v626
  %v648 = vmul.f32 %v640, %v626
  %v649 = vmul.f32 %v643, %v626
  %v650 = vmul.f32 %v646, %v626
  %v651 = vmul.f32 %v627, %v627
  %v652 = vmul.f32 %v628, %v628
  %v653 = vmul.f32 %v629, %v629
  %v654 = vmul.f32 %v630, %v630
  %v655 = vsub.f32 %v647, %v651
  %v656 = vsub.f32 %v648, %v652
  %v657 = vsub.f32 %v649, %v653
  %v658 = vsub.f32 %v650, %v654
  %v659 = vmax.f32 %v655, 0.0
  %v660 = vmax.f32 %v656, 0.0
  %v661 = vmax.f32 %v657, 0.0
  %v662 = vmax.f32 %v658, 0.0
  %v663 = vsub.f32 %v604, %v627
  %v664 = vsub.f32 %v605, %v628
  %v665 = vsub.f32 %v606, %v629
  %v666 = vsub.f32 %v607, %v630
  %v667 = vadd.f32 %v659, 1e-06
  %v668 = vadd.f32 %v660, 1e-06
  %v669 = vadd.f32 %v661, 1e-06
  %v670 = vadd.f32 %v662, 1e-06
  %v671 = vrsqrt.pop %v667
  %v672 = vmul.f32 %v671, %v667
  %v673 = vmul.f32 %v672, %v671
  %v674 = vmul.f32 0.5, %v673
  %v675 = vsub.f32 1.5, %v674
  %v676 = vmul.f32 %v671, %v675
  %vm677 = vweird.f32 %v667
  %vm678 = vweird.f32 %v671
  %vm679 = vmor %vm677, %vm678
  %v680 = vsel %vm679, %v671, %v676
  %v681 = vrsqrt.pop %v668
  %v682 = vmul.f32 %v681, %v668
  %v683 = vmul.f32 %v682, %v681
  %v684 = vmul.f32 0.5, %v683
  %v685 = vsub.f32 1.5, %v684
  %v686 = vmul.f32 %v681, %v685
  %vm687 = vweird.f32 %v668
  %vm688 = vweird.f32 %v681
  %vm689 = vmor %vm687, %vm688
  %v690 = vsel %vm689, %v681, %v686
  %v691 = vrsqrt.pop %v669
  %v692 = vmul.f32 %v691, %v669
  %v693 = vmul.f32 %v692, %v691
  %v694 = vmul.f32 0.5, %v693
  %v695 = vsub.f32 1.5, %v694
  %v696 = vmul.f32 %v691, %v695
  %vm697 = vweird.f32 %v669
  %vm698 = vweird.f32 %v691
  %vm699 = vmor %vm697, %vm698
  %v700 = vsel %vm699, %v691, %v696
  %v701 = vrsqrt.pop %v670
  %v702 = vmul.f32 %v701, %v670
  %v703 = vmul.f32 %v702, %v701
  %v704 = vmul.f32 0.5, %v703
  %v705 = vsub.f32 1.5, %v704
  %v706 = vmul.f32 %v701, %v705
  %vm707 = vweird.f32 %v670
  %vm708 = vweird.f32 %v701
  %vm709 = vmor %vm707, %vm708
  %v710 = vsel %vm709, %v701, %v706
  %v711 = vmul.f32 %v663, %v680
  %v712 = vmul.f32 %v664, %v690
  %v713 = vmul.f32 %v665, %v700
  %v714 = vmul.f32 %v666, %v710
  %v715 = vld [vmem:[%s4] sm:$0xff]
  %v716 = vld [vmem:[%s4 + $0x8] sm:$0xff]
  %v717 = vld [vmem:[%s4 + $0x10] sm:$0xff]
  %v718 = vld [vmem:[%s4 + $0x18] sm:$0xff]
  %v719 = vpack.c.bf16 %v712, %v711
  %v720 = vpack.c.bf16 %v714, %v713
  %v721 = vpack.c.bf16 %v716, %v715
  %v722 = vpack.c.bf16 %v718, %v717
  %v723 = vld [vmem:[%s4 + $0x80] sm:$0x1]
  %v724 = vperm.slane %v723, 0
  %v726 = vsel %vm230, %v719, 0
  %v729 = vsel %vm230, %v720, 0
  %731 = vmatpush.bf16.msra.mxu0 0
  %732 = vmatpush.bf16.msra.mxu0 0
  %733 = vmatpush.bf16.msra.mxu0 0
  %734 = vmatpush.bf16.msra.mxu0 0
  %735 = vmatpush.bf16.msra.mxu0 0
  %736 = vmatpush.bf16.msra.mxu0 0
  %737 = vmatpush.bf16.msra.mxu0 %v722
  %738 = vmatpush.bf16.msra.mxu0 %v721
  %739 = vmatmul.bf16.gmra.mxu0 %v726
  %v740 = vpop.f32.mrf.mxu0
  %v741 = vadd.f32 %v724, %v740
  %v742 = vpop.f32.mrf.mxu0
  %v743 = vadd.f32 %v724, %v742
  %744 = vmatmul.bf16.gmra.mxu0 %v729
  %v745 = vpop.f32.mrf.mxu0
  %v746 = vadd.f32 %v724, %v745
  %v747 = vpop.f32.mrf.mxu0
  %v748 = vadd.f32 %v724, %v747
  %749 = vdwg.mxu0
  %v750 = vmul.f32 %v741, 0.5
  %v751 = vmul.f32 %v743, 0.5
  %v752 = vmul.f32 %v746, 0.5
  %v753 = vmul.f32 %v748, 0.5
  %v754 = vmul.f32 %v741, 0.044715
  %v755 = vmul.f32 %v743, 0.044715
  %v756 = vmul.f32 %v746, 0.044715
  %v757 = vmul.f32 %v748, 0.044715
  %v758 = vmul.f32 %v754, %v741
  %v759 = vmul.f32 %v755, %v743
  %v760 = vmul.f32 %v756, %v746
  %v761 = vmul.f32 %v757, %v748
  %v762 = vmul.f32 %v758, %v741
  %v763 = vmul.f32 %v759, %v743
  %v764 = vmul.f32 %v760, %v746
  %v765 = vmul.f32 %v761, %v748
  %v766 = vadd.f32 %v741, %v762
  %v767 = vadd.f32 %v743, %v763
  %v768 = vadd.f32 %v746, %v764
  %v769 = vadd.f32 %v748, %v765
  %v770 = vmul.f32 %v766, 0.7978846
  %v771 = vmul.f32 %v767, 0.7978846
  %v772 = vmul.f32 %v768, 0.7978846
  %v773 = vmul.f32 %v769, 0.7978846
  %v774 = vtanh.pop %v770
  %v775 = vtanh.pop %v771
  %v776 = vtanh.pop %v772
  %v777 = vtanh.pop %v773
  %v778 = vadd.f32 %v774, 1.0
  %v779 = vadd.f32 %v775, 1.0
  %v780 = vadd.f32 %v776, 1.0
  %v781 = vadd.f32 %v777, 1.0
  %v782 = vmul.f32 %v750, %v778
  %v783 = vmul.f32 %v751, %v779
  %v784 = vmul.f32 %v752, %v780
  %v785 = vmul.f32 %v753, %v781
  %v786 = vld [vmem:[%s5 + $0xb0] sm:$0xff]
  %v787 = vld [vmem:[%s5 + $0xb8] sm:$0xff]
  %v788 = vld [vmem:[%s5 + $0xc0] sm:$0xff]
  %v789 = vld [vmem:[%s5 + $0xc8] sm:$0xff]
  %v790 = vld [vmem:[%s5 + $0xd0] sm:$0xff]
  %v791 = vld [vmem:[%s5 + $0xd8] sm:$0xff]
  %v792 = vld [vmem:[%s5 + $0xe0] sm:$0xff]
  %v793 = vld [vmem:[%s5 + $0xe8] sm:$0xff]
  %v794 = vld [vmem:[%s5 + $0xf0] sm:$0xff]
  %v795 = vld [vmem:[%s5 + $0xf8] sm:$0xff]
  %v796 = vld [vmem:[%s5 + $0x100] sm:$0xff]
  %v797 = vld [vmem:[%s5 + $0x108] sm:$0xff]
  %v798 = vld [vmem:[%s5 + $0x110] sm:$0xff]
  %v799 = vld [vmem:[%s5 + $0x118] sm:$0xff]
  %v800 = vld [vmem:[%s5 + $0x120] sm:$0xff]
  %v801 = vld [vmem:[%s5 + $0x128] sm:$0xff]
  %v802 = vpack.c.bf16 %v783, %v782
  %v803 = vpack.c.bf16 %v785, %v784
  %v804 = vpack.c.bf16 %v787, %v786
  %v805 = vpack.c.bf16 %v789, %v788
  %v806 = vpack.c.bf16 %v791, %v790
  %v807 = vpack.c.bf16 %v793, %v792
  %v808 = vpack.c.bf16 %v795, %v794
  %v809 = vpack.c.bf16 %v797, %v796
  %v810 = vpack.c.bf16 %v799, %v798
  %v811 = vpack.c.bf16 %v801, %v800
  %812 = vmatpush.bf16.msra.mxu0 %v811
  %813 = vmatpush.bf16.msra.mxu0 %v810
  %814 = vmatpush.bf16.msra.mxu0 %v809
  %815 = vmatpush.bf16.msra.mxu0 %v808
  %816 = vmatpush.bf16.msra.mxu0 %v807
  %817 = vmatpush.bf16.msra.mxu0 %v806
  %818 = vmatpush.bf16.msra.mxu0 %v805
  %819 = vmatpush.bf16.msra.mxu0 %v804
  %820 = vmatmul.bf16.gmra.mxu0 %v802
  %v821 = vpop.f32.mrf.mxu0
  %v822 = vadd.f32 0.0, %v821
  %v823 = vpop.f32.mrf.mxu0
  %v824 = vadd.f32 0.0, %v823
  %825 = vmatmul.bf16.gmra.mxu0 %v803
  %v826 = vpop.f32.mrf.mxu0
  %v827 = vadd.f32 0.0, %v826
  %v828 = vpop.f32.mrf.mxu0
  %v829 = vadd.f32 0.0, %v828
  %830 = vdwg.mxu0
  %v831 = vadd.f32 %v164, %v822
  %v832 = vadd.f32 %v166, %v824
  %v833 = vadd.f32 %v168, %v827
  %v834 = vadd.f32 %v170, %v829
  %v835 = vld [vmem:[%s5 + $0x2b0] sm:$0x1]
  %v836 = vperm.slane %v835, 0
  %v837 = vadd.f32 %v831, %v836
  %v838 = vadd.f32 %v832, %v836
  %v839 = vadd.f32 %v833, %v836
  %v840 = vadd.f32 %v834, %v836
  %845 = vrot.lane.b32.xlu0 %v247, 96
  %v846 = vpop.permute.xlu0 %845
  %847 = vrot.lane.b32.xlu0 %v249, 96
  %v848 = vpop.permute.xlu0 %847
  %849 = vrot.lane.b32.xlu0 %v252, 96
  %v850 = vpop.permute.xlu0 %849
  %851 = vrot.lane.b32.xlu0 %v254, 96
  %v852 = vpop.permute.xlu0 %851
  %v857 = vadd.f32 %v837, %v846
  %v858 = vadd.f32 %v838, %v848
  %v859 = vadd.f32 %v839, %v850
  %v860 = vadd.f32 %v840, %v852
  %v861 = vld [vmem:[%s5 + $0xa9] sm:$0x1]
  %v862 = vperm.slane %v861, 0
  %v863 = vadd.f32 %v862, 0.0
  %v864 = vld [vmem:[%s5 + $0x8f] sm:$0x1]
  %v865 = vrot.slane %v857, 2
  %v866 = vrot.slane %v858, 2
  %v867 = vrot.slane %v859, 2
  %v868 = vrot.slane %v860, 2
  %v869 = vsel %vm519, %v867, %v868
  %v870 = vsel %vm519, %v866, %v867
  %v871 = vsel %vm519, %v865, %v866
  %v872 = vsel %vm519, %v868, %v865
  %v873 = vadd.s32 %v305, 4294967290
  %v874 = vadd.s32 %v306, 4294967290
  %v875 = vadd.s32 %v307, 4294967290
  %v876 = vadd.s32 %v308, 4294967290
  %vm877 = vcmp.ge.s32.totalorder %v873, 0
  %vm878 = vcmp.ge.s32.totalorder %v874, 0
  %vm879 = vcmp.ge.s32.totalorder %v875, 0
  %vm880 = vcmp.ge.s32.totalorder %v876, 0
  %vm881 = vcmp.lt.s32.totalorder %v873, 16
  %vm882 = vcmp.lt.s32.totalorder %v874, 16
  %vm883 = vcmp.lt.s32.totalorder %v875, 16
  %vm884 = vcmp.lt.s32.totalorder %v876, 16
  %vm885 = vmand %vm877, %vm881
  %vm886 = vmand %vm878, %vm882
  %vm887 = vmand %vm879, %vm883
  %vm888 = vmand %vm880, %vm884
  %v889 = vsel %vm885, 1, 0
  %v890 = vsel %vm886, 1, 0
  %v891 = vsel %vm887, 1, 0
  %v892 = vsel %vm888, 1, 0
  %vm893 = vcmp.eq.s32.totalorder %v889, 1
  %vm894 = vcmp.eq.s32.totalorder %v890, 1
  %vm895 = vcmp.eq.s32.totalorder %v891, 1
  %vm896 = vcmp.eq.s32.totalorder %v892, 1
  %v897 = vsel %vm893, %v872, 0.0
  %v898 = vsel %vm894, %v871, 0.0
  %v899 = vsel %vm895, %v870, 0.0
  %v900 = vsel %vm896, %v869, 0.0
  %v901 = vperm.slane %v864, 0
  %v902 = vmul.f32 %v897, %v901
  %v903 = vmul.f32 %v898, %v901
  %v904 = vmul.f32 %v899, %v901
  %v905 = vmul.f32 %v900, %v901
  %v906 = vadd.f32 %v863, %v902
  %v907 = vadd.f32 %v863, %v903
  %v908 = vadd.f32 %v863, %v904
  %v909 = vadd.f32 %v863, %v905
  %v910 = vld [vmem:[%s5 + $0x90] sm:$0x1]
  %v911 = vrot.slane %v857, 4
  %v912 = vrot.slane %v858, 4
  %v913 = vrot.slane %v859, 4
  %v914 = vrot.slane %v860, 4
  %vm915 = vcmp.lt.s32.totalorder %v257, 4
  %v916 = vsel %vm915, %v913, %v914
  %v917 = vsel %vm915, %v912, %v913
  %v918 = vsel %vm915, %v911, %v912
  %v919 = vsel %vm915, %v914, %v911
  %v920 = vadd.s32 %v305, 4294967292
  %v921 = vadd.s32 %v306, 4294967292
  %v922 = vadd.s32 %v307, 4294967292
  %v923 = vadd.s32 %v308, 4294967292
  %vm924 = vcmp.ge.s32.totalorder %v920, 0
  %vm925 = vcmp.ge.s32.totalorder %v921, 0
  %vm926 = vcmp.ge.s32.totalorder %v922, 0
  %vm927 = vcmp.ge.s32.totalorder %v923, 0
  %vm928 = vcmp.lt.s32.totalorder %v920, 16
  %vm929 = vcmp.lt.s32.totalorder %v921, 16
  %vm930 = vcmp.lt.s32.totalorder %v922, 16
  %vm931 = vcmp.lt.s32.totalorder %v923, 16
  %vm932 = vmand %vm924, %vm928
  %vm933 = vmand %vm925, %vm929
  %vm934 = vmand %vm926, %vm930
  %vm935 = vmand %vm927, %vm931
  %v936 = vsel %vm932, 1, 0
  %v937 = vsel %vm933, 1, 0
  %v938 = vsel %vm934, 1, 0
  %v939 = vsel %vm935, 1, 0
  %vm940 = vcmp.eq.s32.totalorder %v936, 1
  %vm941 = vcmp.eq.s32.totalorder %v937, 1
  %vm942 = vcmp.eq.s32.totalorder %v938, 1
  %vm943 = vcmp.eq.s32.totalorder %v939, 1
  %v944 = vsel %vm940, %v919, 0.0
  %v945 = vsel %vm941, %v918, 0.0
  %v946 = vsel %vm942, %v917, 0.0
  %v947 = vsel %vm943, %v916, 0.0
  %v948 = vperm.slane %v910, 0
  %v949 = vmul.f32 %v944, %v948
  %v950 = vmul.f32 %v945, %v948
  %v951 = vmul.f32 %v946, %v948
  %v952 = vmul.f32 %v947, %v948
  %v953 = vadd.f32 %v906, %v949
  %v954 = vadd.f32 %v907, %v950
  %v955 = vadd.f32 %v908, %v951
  %v956 = vadd.f32 %v909, %v952
  %v957 = vld [vmem:[%s5 + $0x91] sm:$0x1]
  %v958 = vrot.slane %v857, 6
  %v959 = vrot.slane %v858, 6
  %v960 = vrot.slane %v859, 6
  %v961 = vrot.slane %v860, 6
  %v962 = vsel %vm368, %v960, %v961
  %v963 = vsel %vm368, %v959, %v960
  %v964 = vsel %vm368, %v958, %v959
  %v965 = vsel %vm368, %v961, %v958
  %v966 = vsel %vm393, %v965, 0.0
  %v967 = vsel %vm394, %v964, 0.0
  %v968 = vsel %vm395, %v963, 0.0
  %v969 = vsel %vm396, %v962, 0.0
  %v970 = vperm.slane %v957, 0
  %v971 = vmul.f32 %v966, %v970
  %v972 = vmul.f32 %v967, %v970
  %v973 = vmul.f32 %v968, %v970
  %v974 = vmul.f32 %v969, %v970
  %v975 = vadd.f32 %v953, %v971
  %v976 = vadd.f32 %v954, %v972
  %v977 = vadd.f32 %v955, %v973
  %v978 = vadd.f32 %v956, %v974
  %v979 = vld [vmem:[%s5 + $0x92] sm:$0x1]
  %v980 = vperm.slane %v979, 0
  %v981 = vmul.f32 %v857, %v980
  %v982 = vmul.f32 %v858, %v980
  %v983 = vmul.f32 %v859, %v980
  %v984 = vmul.f32 %v860, %v980
  %v985 = vadd.f32 %v975, %v981
  %v986 = vadd.f32 %v976, %v982
  %v987 = vadd.f32 %v977, %v983
  %v988 = vadd.f32 %v978, %v984
  %v989 = vld [vmem:[%s5 + $0x93] sm:$0x1]
  %v990 = vsel %vm544, %v871, 0.0
  %v991 = vsel %vm545, %v870, 0.0
  %v992 = vsel %vm546, %v869, 0.0
  %v993 = vsel %vm547, %v872, 0.0
  %v994 = vperm.slane %v989, 0
  %v995 = vmul.f32 %v990, %v994
  %v996 = vmul.f32 %v991, %v994
  %v997 = vmul.f32 %v992, %v994
  %v998 = vmul.f32 %v993, %v994
  %v999 = vadd.f32 %v985, %v995
  %v1000 = vadd.f32 %v986, %v996
  %v1001 = vadd.f32 %v987, %v997
  %v1002 = vadd.f32 %v988, %v998
  %v1003 = vld [vmem:[%s5 + $0x94] sm:$0x1]
  %v1004 = vadd.s32 %v305, 4
  %v1005 = vadd.s32 %v306, 4
  %v1006 = vadd.s32 %v307, 4
  %v1007 = vadd.s32 %v308, 4
  %vm1008 = vcmp.ge.s32.totalorder %v1004, 0
  %vm1009 = vcmp.ge.s32.totalorder %v1005, 0
  %vm1010 = vcmp.ge.s32.totalorder %v1006, 0
  %vm1011 = vcmp.ge.s32.totalorder %v1007, 0
  %vm1012 = vcmp.lt.s32.totalorder %v1004, 16
  %vm1013 = vcmp.lt.s32.totalorder %v1005, 16
  %vm1014 = vcmp.lt.s32.totalorder %v1006, 16
  %vm1015 = vcmp.lt.s32.totalorder %v1007, 16
  %vm1016 = vmand %vm1008, %vm1012
  %vm1017 = vmand %vm1009, %vm1013
  %vm1018 = vmand %vm1010, %vm1014
  %vm1019 = vmand %vm1011, %vm1015
  %v1020 = vsel %vm1016, 1, 0
  %v1021 = vsel %vm1017, 1, 0
  %v1022 = vsel %vm1018, 1, 0
  %v1023 = vsel %vm1019, 1, 0
  %vm1024 = vcmp.eq.s32.totalorder %v1020, 1
  %vm1025 = vcmp.eq.s32.totalorder %v1021, 1
  %vm1026 = vcmp.eq.s32.totalorder %v1022, 1
  %vm1027 = vcmp.eq.s32.totalorder %v1023, 1
  %v1028 = vsel %vm1024, %v918, 0.0
  %v1029 = vsel %vm1025, %v917, 0.0
  %v1030 = vsel %vm1026, %v916, 0.0
  %v1031 = vsel %vm1027, %v919, 0.0
  %v1032 = vperm.slane %v1003, 0
  %v1033 = vmul.f32 %v1028, %v1032
  %v1034 = vmul.f32 %v1029, %v1032
  %v1035 = vmul.f32 %v1030, %v1032
  %v1036 = vmul.f32 %v1031, %v1032
  %v1037 = vadd.f32 %v999, %v1033
  %v1038 = vadd.f32 %v1000, %v1034
  %v1039 = vadd.f32 %v1001, %v1035
  %v1040 = vadd.f32 %v1002, %v1036
  %v1041 = vld [vmem:[%s5 + $0x95] sm:$0x1]
  %v1042 = vadd.s32 %v305, 6
  %v1043 = vadd.s32 %v306, 6
  %v1044 = vadd.s32 %v307, 6
  %v1045 = vadd.s32 %v308, 6
  %vm1046 = vcmp.ge.s32.totalorder %v1042, 0
  %vm1047 = vcmp.ge.s32.totalorder %v1043, 0
  %vm1048 = vcmp.ge.s32.totalorder %v1044, 0
  %vm1049 = vcmp.ge.s32.totalorder %v1045, 0
  %vm1050 = vcmp.lt.s32.totalorder %v1042, 16
  %vm1051 = vcmp.lt.s32.totalorder %v1043, 16
  %vm1052 = vcmp.lt.s32.totalorder %v1044, 16
  %vm1053 = vcmp.lt.s32.totalorder %v1045, 16
  %vm1054 = vmand %vm1046, %vm1050
  %vm1055 = vmand %vm1047, %vm1051
  %vm1056 = vmand %vm1048, %vm1052
  %vm1057 = vmand %vm1049, %vm1053
  %v1058 = vsel %vm1054, 1, 0
  %v1059 = vsel %vm1055, 1, 0
  %v1060 = vsel %vm1056, 1, 0
  %v1061 = vsel %vm1057, 1, 0
  %vm1062 = vcmp.eq.s32.totalorder %v1058, 1
  %vm1063 = vcmp.eq.s32.totalorder %v1059, 1
  %vm1064 = vcmp.eq.s32.totalorder %v1060, 1
  %vm1065 = vcmp.eq.s32.totalorder %v1061, 1
  %v1066 = vsel %vm1062, %v964, 0.0
  %v1067 = vsel %vm1063, %v963, 0.0
  %v1068 = vsel %vm1064, %v962, 0.0
  %v1069 = vsel %vm1065, %v965, 0.0
  %v1070 = vperm.slane %v1041, 0
  %v1071 = vmul.f32 %v1066, %v1070
  %v1072 = vmul.f32 %v1067, %v1070
  %v1073 = vmul.f32 %v1068, %v1070
  %v1074 = vmul.f32 %v1069, %v1070
  %v1075 = vadd.f32 %v1037, %v1071
  %v1076 = vadd.f32 %v1038, %v1072
  %v1077 = vadd.f32 %v1039, %v1073
  %v1078 = vadd.f32 %v1040, %v1074
  %v1079 = vsel %vm230, %v1075, 0.0
  %1080 = vadd.xlane.f32.xlu0 %v1079
  %v1081 = vpop.xlane.xlu0 %1080
  %v1082 = vsel %vm230, %v1076, 0.0
  %1083 = vadd.xlane.f32.xlu0 %v1082
  %v1084 = vpop.xlane.xlu0 %1083
  %v1085 = vsel %vm230, %v1077, 0.0
  %1086 = vadd.xlane.f32.xlu0 %v1085
  %v1087 = vpop.xlane.xlu0 %1086
  %v1088 = vsel %vm230, %v1078, 0.0
  %1089 = vadd.xlane.f32.xlu0 %v1088
  %v1090 = vpop.xlane.xlu0 %1089
  %v1091 = vmul.f32 %v1081, %v626
  %v1092 = vmul.f32 %v1084, %v626
  %v1093 = vmul.f32 %v1087, %v626
  %v1094 = vmul.f32 %v1090, %v626
  %v1095 = vmul.f32 %v1075, %v1075
  %v1096 = vmul.f32 %v1076, %v1076
  %v1097 = vmul.f32 %v1077, %v1077
  %v1098 = vmul.f32 %v1078, %v1078
  %v1099 = vsel %vm230, %v1095, 0.0
  %1100 = vadd.xlane.f32.xlu0 %v1099
  %v1101 = vpop.xlane.xlu0 %1100
  %v1102 = vsel %vm230, %v1096, 0.0
  %1103 = vadd.xlane.f32.xlu0 %v1102
  %v1104 = vpop.xlane.xlu0 %1103
  %v1105 = vsel %vm230, %v1097, 0.0
  %1106 = vadd.xlane.f32.xlu0 %v1105
  %v1107 = vpop.xlane.xlu0 %1106
  %v1108 = vsel %vm230, %v1098, 0.0
  %1109 = vadd.xlane.f32.xlu0 %v1108
  %v1110 = vpop.xlane.xlu0 %1109
  %v1111 = vmul.f32 %v1101, %v626
  %v1112 = vmul.f32 %v1104, %v626
  %v1113 = vmul.f32 %v1107, %v626
  %v1114 = vmul.f32 %v1110, %v626
  %v1115 = vmul.f32 %v1091, %v1091
  %v1116 = vmul.f32 %v1092, %v1092
  %v1117 = vmul.f32 %v1093, %v1093
  %v1118 = vmul.f32 %v1094, %v1094
  %v1119 = vsub.f32 %v1111, %v1115
  %v1120 = vsub.f32 %v1112, %v1116
  %v1121 = vsub.f32 %v1113, %v1117
  %v1122 = vsub.f32 %v1114, %v1118
  %v1123 = vmax.f32 %v1119, 0.0
  %v1124 = vmax.f32 %v1120, 0.0
  %v1125 = vmax.f32 %v1121, 0.0
  %v1126 = vmax.f32 %v1122, 0.0
  %v1127 = vsub.f32 %v1075, %v1091
  %v1128 = vsub.f32 %v1076, %v1092
  %v1129 = vsub.f32 %v1077, %v1093
  %v1130 = vsub.f32 %v1078, %v1094
  %v1131 = vadd.f32 %v1123, 1e-06
  %v1132 = vadd.f32 %v1124, 1e-06
  %v1133 = vadd.f32 %v1125, 1e-06
  %v1134 = vadd.f32 %v1126, 1e-06
  %v1135 = vrsqrt.pop %v1131
  %v1136 = vmul.f32 %v1135, %v1131
  %v1137 = vmul.f32 %v1136, %v1135
  %v1138 = vmul.f32 0.5, %v1137
  %v1139 = vsub.f32 1.5, %v1138
  %v1140 = vmul.f32 %v1135, %v1139
  %vm1141 = vweird.f32 %v1131
  %vm1142 = vweird.f32 %v1135
  %vm1143 = vmor %vm1141, %vm1142
  %v1144 = vsel %vm1143, %v1135, %v1140
  %v1145 = vrsqrt.pop %v1132
  %v1146 = vmul.f32 %v1145, %v1132
  %v1147 = vmul.f32 %v1146, %v1145
  %v1148 = vmul.f32 0.5, %v1147
  %v1149 = vsub.f32 1.5, %v1148
  %v1150 = vmul.f32 %v1145, %v1149
  %vm1151 = vweird.f32 %v1132
  %vm1152 = vweird.f32 %v1145
  %vm1153 = vmor %vm1151, %vm1152
  %v1154 = vsel %vm1153, %v1145, %v1150
  %v1155 = vrsqrt.pop %v1133
  %v1156 = vmul.f32 %v1155, %v1133
  %v1157 = vmul.f32 %v1156, %v1155
  %v1158 = vmul.f32 0.5, %v1157
  %v1159 = vsub.f32 1.5, %v1158
  %v1160 = vmul.f32 %v1155, %v1159
  %vm1161 = vweird.f32 %v1133
  %vm1162 = vweird.f32 %v1155
  %vm1163 = vmor %vm1161, %vm1162
  %v1164 = vsel %vm1163, %v1155, %v1160
  %v1165 = vrsqrt.pop %v1134
  %v1166 = vmul.f32 %v1165, %v1134
  %v1167 = vmul.f32 %v1166, %v1165
  %v1168 = vmul.f32 0.5, %v1167
  %v1169 = vsub.f32 1.5, %v1168
  %v1170 = vmul.f32 %v1165, %v1169
  %vm1171 = vweird.f32 %v1134
  %vm1172 = vweird.f32 %v1165
  %vm1173 = vmor %vm1171, %vm1172
  %v1174 = vsel %vm1173, %v1165, %v1170
  %v1175 = vmul.f32 %v1127, %v1144
  %v1176 = vmul.f32 %v1128, %v1154
  %v1177 = vmul.f32 %v1129, %v1164
  %v1178 = vmul.f32 %v1130, %v1174
  %v1179 = vld [vmem:[%s4 + $0x20] sm:$0xff]
  %v1180 = vld [vmem:[%s4 + $0x28] sm:$0xff]
  %v1181 = vld [vmem:[%s4 + $0x30] sm:$0xff]
  %v1182 = vld [vmem:[%s4 + $0x38] sm:$0xff]
  %v1183 = vpack.c.bf16 %v1176, %v1175
  %v1184 = vpack.c.bf16 %v1178, %v1177
  %v1185 = vpack.c.bf16 %v1180, %v1179
  %v1186 = vpack.c.bf16 %v1182, %v1181
  %v1187 = vld [vmem:[%s4 + $0x81] sm:$0x1]
  %v1188 = vperm.slane %v1187, 0
  %v1190 = vsel %vm230, %v1183, 0
  %v1193 = vsel %vm230, %v1184, 0
  %1195 = vmatpush.bf16.msra.mxu0 0
  %1196 = vmatpush.bf16.msra.mxu0 0
  %1197 = vmatpush.bf16.msra.mxu0 0
  %1198 = vmatpush.bf16.msra.mxu0 0
  %1199 = vmatpush.bf16.msra.mxu0 0
  %1200 = vmatpush.bf16.msra.mxu0 0
  %1201 = vmatpush.bf16.msra.mxu0 %v1186
  %1202 = vmatpush.bf16.msra.mxu0 %v1185
  %1203 = vmatmul.bf16.gmra.mxu0 %v1190
  %v1204 = vpop.f32.mrf.mxu0
  %v1205 = vadd.f32 %v1188, %v1204
  %v1206 = vpop.f32.mrf.mxu0
  %v1207 = vadd.f32 %v1188, %v1206
  %1208 = vmatmul.bf16.gmra.mxu0 %v1193
  %v1209 = vpop.f32.mrf.mxu0
  %v1210 = vadd.f32 %v1188, %v1209
  %v1211 = vpop.f32.mrf.mxu0
  %v1212 = vadd.f32 %v1188, %v1211
  %1213 = vdwg.mxu0
  %v1214 = vmul.f32 %v1205, 0.5
  %v1215 = vmul.f32 %v1207, 0.5
  %v1216 = vmul.f32 %v1210, 0.5
  %v1217 = vmul.f32 %v1212, 0.5
  %v1218 = vmul.f32 %v1205, 0.044715
  %v1219 = vmul.f32 %v1207, 0.044715
  %v1220 = vmul.f32 %v1210, 0.044715
  %v1221 = vmul.f32 %v1212, 0.044715
  %v1222 = vmul.f32 %v1218, %v1205
  %v1223 = vmul.f32 %v1219, %v1207
  %v1224 = vmul.f32 %v1220, %v1210
  %v1225 = vmul.f32 %v1221, %v1212
  %v1226 = vmul.f32 %v1222, %v1205
  %v1227 = vmul.f32 %v1223, %v1207
  %v1228 = vmul.f32 %v1224, %v1210
  %v1229 = vmul.f32 %v1225, %v1212
  %v1230 = vadd.f32 %v1205, %v1226
  %v1231 = vadd.f32 %v1207, %v1227
  %v1232 = vadd.f32 %v1210, %v1228
  %v1233 = vadd.f32 %v1212, %v1229
  %v1234 = vmul.f32 %v1230, 0.7978846
  %v1235 = vmul.f32 %v1231, 0.7978846
  %v1236 = vmul.f32 %v1232, 0.7978846
  %v1237 = vmul.f32 %v1233, 0.7978846
  %v1238 = vtanh.pop %v1234
  %v1239 = vtanh.pop %v1235
  %v1240 = vtanh.pop %v1236
  %v1241 = vtanh.pop %v1237
  %v1242 = vadd.f32 %v1238, 1.0
  %v1243 = vadd.f32 %v1239, 1.0
  %v1244 = vadd.f32 %v1240, 1.0
  %v1245 = vadd.f32 %v1241, 1.0
  %v1246 = vmul.f32 %v1214, %v1242
  %v1247 = vmul.f32 %v1215, %v1243
  %v1248 = vmul.f32 %v1216, %v1244
  %v1249 = vmul.f32 %v1217, %v1245
  %v1250 = vld [vmem:[%s5 + $0x130] sm:$0xff]
  %v1251 = vld [vmem:[%s5 + $0x138] sm:$0xff]
  %v1252 = vld [vmem:[%s5 + $0x140] sm:$0xff]
  %v1253 = vld [vmem:[%s5 + $0x148] sm:$0xff]
  %v1254 = vld [vmem:[%s5 + $0x150] sm:$0xff]
  %v1255 = vld [vmem:[%s5 + $0x158] sm:$0xff]
  %v1256 = vld [vmem:[%s5 + $0x160] sm:$0xff]
  %v1257 = vld [vmem:[%s5 + $0x168] sm:$0xff]
  %v1258 = vld [vmem:[%s5 + $0x170] sm:$0xff]
  %v1259 = vld [vmem:[%s5 + $0x178] sm:$0xff]
  %v1260 = vld [vmem:[%s5 + $0x180] sm:$0xff]
  %v1261 = vld [vmem:[%s5 + $0x188] sm:$0xff]
  %v1262 = vld [vmem:[%s5 + $0x190] sm:$0xff]
  %v1263 = vld [vmem:[%s5 + $0x198] sm:$0xff]
  %v1264 = vld [vmem:[%s5 + $0x1a0] sm:$0xff]
  %v1265 = vld [vmem:[%s5 + $0x1a8] sm:$0xff]
  %v1266 = vpack.c.bf16 %v1247, %v1246
  %v1267 = vpack.c.bf16 %v1249, %v1248
  %v1268 = vpack.c.bf16 %v1251, %v1250
  %v1269 = vpack.c.bf16 %v1253, %v1252
  %v1270 = vpack.c.bf16 %v1255, %v1254
  %v1271 = vpack.c.bf16 %v1257, %v1256
  %v1272 = vpack.c.bf16 %v1259, %v1258
  %v1273 = vpack.c.bf16 %v1261, %v1260
  %v1274 = vpack.c.bf16 %v1263, %v1262
  %v1275 = vpack.c.bf16 %v1265, %v1264
  %1276 = vmatpush.bf16.msra.mxu0 %v1275
  %1277 = vmatpush.bf16.msra.mxu0 %v1274
  %1278 = vmatpush.bf16.msra.mxu0 %v1273
  %1279 = vmatpush.bf16.msra.mxu0 %v1272
  %1280 = vmatpush.bf16.msra.mxu0 %v1271
  %1281 = vmatpush.bf16.msra.mxu0 %v1270
  %1282 = vmatpush.bf16.msra.mxu0 %v1269
  %1283 = vmatpush.bf16.msra.mxu0 %v1268
  %1284 = vmatmul.bf16.gmra.mxu0 %v1266
  %v1285 = vpop.f32.mrf.mxu0
  %v1286 = vadd.f32 0.0, %v1285
  %v1287 = vpop.f32.mrf.mxu0
  %v1288 = vadd.f32 0.0, %v1287
  %1289 = vmatmul.bf16.gmra.mxu0 %v1267
  %v1290 = vpop.f32.mrf.mxu0
  %v1291 = vadd.f32 0.0, %v1290
  %v1292 = vpop.f32.mrf.mxu0
  %v1293 = vadd.f32 0.0, %v1292
  %1294 = vdwg.mxu0
  %v1295 = vadd.f32 %v837, %v1286
  %v1296 = vadd.f32 %v838, %v1288
  %v1297 = vadd.f32 %v839, %v1291
  %v1298 = vadd.f32 %v840, %v1293
  %v1299 = vld [vmem:[%s5 + $0x2b1] sm:$0x1]
  %v1300 = vperm.slane %v1299, 0
  %v1301 = vadd.f32 %v1295, %v1300
  %v1302 = vadd.f32 %v1296, %v1300
  %v1303 = vadd.f32 %v1297, %v1300
  %v1304 = vadd.f32 %v1298, %v1300
  %1305 = vrot.lane.b32.xlu0 %v247, 64
  %v1306 = vpop.permute.xlu0 %1305
  %1307 = vrot.lane.b32.xlu0 %v249, 64
  %v1308 = vpop.permute.xlu0 %1307
  %1309 = vrot.lane.b32.xlu0 %v252, 64
  %v1310 = vpop.permute.xlu0 %1309
  %1311 = vrot.lane.b32.xlu0 %v254, 64
  %v1312 = vpop.permute.xlu0 %1311
  %v1317 = vadd.f32 %v1301, %v1306
  %v1318 = vadd.f32 %v1302, %v1308
  %v1319 = vadd.f32 %v1303, %v1310
  %v1320 = vadd.f32 %v1304, %v1312
  %v1321 = vld [vmem:[%s5 + $0xaa] sm:$0x1]
  %v1322 = vperm.slane %v1321, 0
  %v1323 = vadd.f32 %v1322, 0.0
  %v1324 = vld [vmem:[%s5 + $0x96] sm:$0x1]
  %v1325 = vrot.slane %v1317, 4
  %v1326 = vrot.slane %v1318, 4
  %v1327 = vrot.slane %v1319, 4
  %v1328 = vrot.slane %v1320, 4
  %v1329 = vsel %vm915, %v1327, %v1328
  %v1330 = vsel %vm915, %v1326, %v1327
  %v1331 = vsel %vm915, %v1325, %v1326
  %v1332 = vsel %vm915, %v1328, %v1325
  %v1333 = vadd.s32 %v305, 4294967284
  %v1334 = vadd.s32 %v306, 4294967284
  %v1335 = vadd.s32 %v307, 4294967284
  %v1336 = vadd.s32 %v308, 4294967284
  %vm1337 = vcmp.ge.s32.totalorder %v1333, 0
  %vm1338 = vcmp.ge.s32.totalorder %v1334, 0
  %vm1339 = vcmp.ge.s32.totalorder %v1335, 0
  %vm1340 = vcmp.ge.s32.totalorder %v1336, 0
  %vm1341 = vcmp.lt.s32.totalorder %v1333, 16
  %vm1342 = vcmp.lt.s32.totalorder %v1334, 16
  %vm1343 = vcmp.lt.s32.totalorder %v1335, 16
  %vm1344 = vcmp.lt.s32.totalorder %v1336, 16
  %vm1345 = vmand %vm1337, %vm1341
  %vm1346 = vmand %vm1338, %vm1342
  %vm1347 = vmand %vm1339, %vm1343
  %vm1348 = vmand %vm1340, %vm1344
  %v1349 = vsel %vm1345, 1, 0
  %v1350 = vsel %vm1346, 1, 0
  %v1351 = vsel %vm1347, 1, 0
  %v1352 = vsel %vm1348, 1, 0
  %vm1353 = vcmp.eq.s32.totalorder %v1349, 1
  %vm1354 = vcmp.eq.s32.totalorder %v1350, 1
  %vm1355 = vcmp.eq.s32.totalorder %v1351, 1
  %vm1356 = vcmp.eq.s32.totalorder %v1352, 1
  %v1357 = vsel %vm1353, %v1329, 0.0
  %v1358 = vsel %vm1354, %v1332, 0.0
  %v1359 = vsel %vm1355, %v1331, 0.0
  %v1360 = vsel %vm1356, %v1330, 0.0
  %v1361 = vperm.slane %v1324, 0
  %v1362 = vmul.f32 %v1357, %v1361
  %v1363 = vmul.f32 %v1358, %v1361
  %v1364 = vmul.f32 %v1359, %v1361
  %v1365 = vmul.f32 %v1360, %v1361
  %v1366 = vadd.f32 %v1323, %v1362
  %v1367 = vadd.f32 %v1323, %v1363
  %v1368 = vadd.f32 %v1323, %v1364
  %v1369 = vadd.f32 %v1323, %v1365
  %v1370 = vld [vmem:[%s5 + $0x97] sm:$0x1]
  %v1371 = vadd.s32 %v305, 4294967288
  %v1372 = vadd.s32 %v306, 4294967288
  %v1373 = vadd.s32 %v307, 4294967288
  %v1374 = vadd.s32 %v308, 4294967288
  %vm1375 = vcmp.ge.s32.totalorder %v1371, 0
  %vm1376 = vcmp.ge.s32.totalorder %v1372, 0
  %vm1377 = vcmp.ge.s32.totalorder %v1373, 0
  %vm1378 = vcmp.ge.s32.totalorder %v1374, 0
  %vm1379 = vcmp.lt.s32.totalorder %v1371, 16
  %vm1380 = vcmp.lt.s32.totalorder %v1372, 16
  %vm1381 = vcmp.lt.s32.totalorder %v1373, 16
  %vm1382 = vcmp.lt.s32.totalorder %v1374, 16
  %vm1383 = vmand %vm1375, %vm1379
  %vm1384 = vmand %vm1376, %vm1380
  %vm1385 = vmand %vm1377, %vm1381
  %vm1386 = vmand %vm1378, %vm1382
  %v1387 = vsel %vm1383, 1, 0
  %v1388 = vsel %vm1384, 1, 0
  %v1389 = vsel %vm1385, 1, 0
  %v1390 = vsel %vm1386, 1, 0
  %vm1391 = vcmp.eq.s32.totalorder %v1387, 1
  %vm1392 = vcmp.eq.s32.totalorder %v1388, 1
  %vm1393 = vcmp.eq.s32.totalorder %v1389, 1
  %vm1394 = vcmp.eq.s32.totalorder %v1390, 1
  %v1395 = vsel %vm1391, %v1320, 0.0
  %v1396 = vsel %vm1392, %v1317, 0.0
  %v1397 = vsel %vm1393, %v1318, 0.0
  %v1398 = vsel %vm1394, %v1319, 0.0
  %v1399 = vperm.slane %v1370, 0
  %v1400 = vmul.f32 %v1395, %v1399
  %v1401 = vmul.f32 %v1396, %v1399
  %v1402 = vmul.f32 %v1397, %v1399
  %v1403 = vmul.f32 %v1398, %v1399
  %v1404 = vadd.f32 %v1366, %v1400
  %v1405 = vadd.f32 %v1367, %v1401
  %v1406 = vadd.f32 %v1368, %v1402
  %v1407 = vadd.f32 %v1369, %v1403
  %v1408 = vld [vmem:[%s5 + $0x98] sm:$0x1]
  %v1409 = vsel %vm940, %v1332, 0.0
  %v1410 = vsel %vm941, %v1331, 0.0
  %v1411 = vsel %vm942, %v1330, 0.0
  %v1412 = vsel %vm943, %v1329, 0.0
  %v1413 = vperm.slane %v1408, 0
  %v1414 = vmul.f32 %v1409, %v1413
  %v1415 = vmul.f32 %v1410, %v1413
  %v1416 = vmul.f32 %v1411, %v1413
  %v1417 = vmul.f32 %v1412, %v1413
  %v1418 = vadd.f32 %v1404, %v1414
  %v1419 = vadd.f32 %v1405, %v1415
  %v1420 = vadd.f32 %v1406, %v1416
  %v1421 = vadd.f32 %v1407, %v1417
  %v1422 = vld [vmem:[%s5 + $0x99] sm:$0x1]
  %v1423 = vperm.slane %v1422, 0
  %v1424 = vmul.f32 %v1317, %v1423
  %v1425 = vmul.f32 %v1318, %v1423
  %v1426 = vmul.f32 %v1319, %v1423
  %v1427 = vmul.f32 %v1320, %v1423
  %v1428 = vadd.f32 %v1418, %v1424
  %v1429 = vadd.f32 %v1419, %v1425
  %v1430 = vadd.f32 %v1420, %v1426
  %v1431 = vadd.f32 %v1421, %v1427
  %v1432 = vld [vmem:[%s5 + $0x9a] sm:$0x1]
  %v1433 = vsel %vm1024, %v1331, 0.0
  %v1434 = vsel %vm1025, %v1330, 0.0
  %v1435 = vsel %vm1026, %v1329, 0.0
  %v1436 = vsel %vm1027, %v1332, 0.0
  %v1437 = vperm.slane %v1432, 0
  %v1438 = vmul.f32 %v1433, %v1437
  %v1439 = vmul.f32 %v1434, %v1437
  %v1440 = vmul.f32 %v1435, %v1437
  %v1441 = vmul.f32 %v1436, %v1437
  %v1442 = vadd.f32 %v1428, %v1438
  %v1443 = vadd.f32 %v1429, %v1439
  %v1444 = vadd.f32 %v1430, %v1440
  %v1445 = vadd.f32 %v1431, %v1441
  %v1446 = vld [vmem:[%s5 + $0x9b] sm:$0x1]
  %v1447 = vadd.s32 %v305, 8
  %v1448 = vadd.s32 %v306, 8
  %v1449 = vadd.s32 %v307, 8
  %v1450 = vadd.s32 %v308, 8
  %vm1451 = vcmp.ge.s32.totalorder %v1447, 0
  %vm1452 = vcmp.ge.s32.totalorder %v1448, 0
  %vm1453 = vcmp.ge.s32.totalorder %v1449, 0
  %vm1454 = vcmp.ge.s32.totalorder %v1450, 0
  %vm1455 = vcmp.lt.s32.totalorder %v1447, 16
  %vm1456 = vcmp.lt.s32.totalorder %v1448, 16
  %vm1457 = vcmp.lt.s32.totalorder %v1449, 16
  %vm1458 = vcmp.lt.s32.totalorder %v1450, 16
  %vm1459 = vmand %vm1451, %vm1455
  %vm1460 = vmand %vm1452, %vm1456
  %vm1461 = vmand %vm1453, %vm1457
  %vm1462 = vmand %vm1454, %vm1458
  %v1463 = vsel %vm1459, 1, 0
  %v1464 = vsel %vm1460, 1, 0
  %v1465 = vsel %vm1461, 1, 0
  %v1466 = vsel %vm1462, 1, 0
  %vm1467 = vcmp.eq.s32.totalorder %v1463, 1
  %vm1468 = vcmp.eq.s32.totalorder %v1464, 1
  %vm1469 = vcmp.eq.s32.totalorder %v1465, 1
  %vm1470 = vcmp.eq.s32.totalorder %v1466, 1
  %v1471 = vsel %vm1467, %v1318, 0.0
  %v1472 = vsel %vm1468, %v1319, 0.0
  %v1473 = vsel %vm1469, %v1320, 0.0
  %v1474 = vsel %vm1470, %v1317, 0.0
  %v1475 = vperm.slane %v1446, 0
  %v1476 = vmul.f32 %v1471, %v1475
  %v1477 = vmul.f32 %v1472, %v1475
  %v1478 = vmul.f32 %v1473, %v1475
  %v1479 = vmul.f32 %v1474, %v1475
  %v1480 = vadd.f32 %v1442, %v1476
  %v1481 = vadd.f32 %v1443, %v1477
  %v1482 = vadd.f32 %v1444, %v1478
  %v1483 = vadd.f32 %v1445, %v1479
  %v1484 = vld [vmem:[%s5 + $0x9c] sm:$0x1]
  %v1485 = vadd.s32 %v305, 12
  %v1486 = vadd.s32 %v306, 12
  %v1487 = vadd.s32 %v307, 12
  %v1488 = vadd.s32 %v308, 12
  %vm1489 = vcmp.ge.s32.totalorder %v1485, 0
  %vm1490 = vcmp.ge.s32.totalorder %v1486, 0
  %vm1491 = vcmp.ge.s32.totalorder %v1487, 0
  %vm1492 = vcmp.ge.s32.totalorder %v1488, 0
  %vm1493 = vcmp.lt.s32.totalorder %v1485, 16
  %vm1494 = vcmp.lt.s32.totalorder %v1486, 16
  %vm1495 = vcmp.lt.s32.totalorder %v1487, 16
  %vm1496 = vcmp.lt.s32.totalorder %v1488, 16
  %vm1497 = vmand %vm1489, %vm1493
  %vm1498 = vmand %vm1490, %vm1494
  %vm1499 = vmand %vm1491, %vm1495
  %vm1500 = vmand %vm1492, %vm1496
  %v1501 = vsel %vm1497, 1, 0
  %v1502 = vsel %vm1498, 1, 0
  %v1503 = vsel %vm1499, 1, 0
  %v1504 = vsel %vm1500, 1, 0
  %vm1505 = vcmp.eq.s32.totalorder %v1501, 1
  %vm1506 = vcmp.eq.s32.totalorder %v1502, 1
  %vm1507 = vcmp.eq.s32.totalorder %v1503, 1
  %vm1508 = vcmp.eq.s32.totalorder %v1504, 1
  %v1509 = vsel %vm1505, %v1330, 0.0
  %v1510 = vsel %vm1506, %v1329, 0.0
  %v1511 = vsel %vm1507, %v1332, 0.0
  %v1512 = vsel %vm1508, %v1331, 0.0
  %v1513 = vperm.slane %v1484, 0
  %v1514 = vmul.f32 %v1509, %v1513
  %v1515 = vmul.f32 %v1510, %v1513
  %v1516 = vmul.f32 %v1511, %v1513
  %v1517 = vmul.f32 %v1512, %v1513
  %v1518 = vadd.f32 %v1480, %v1514
  %v1519 = vadd.f32 %v1481, %v1515
  %v1520 = vadd.f32 %v1482, %v1516
  %v1521 = vadd.f32 %v1483, %v1517
  %v1522 = vsel %vm230, %v1518, 0.0
  %1523 = vadd.xlane.f32.xlu0 %v1522
  %v1524 = vpop.xlane.xlu0 %1523
  %v1525 = vsel %vm230, %v1519, 0.0
  %1526 = vadd.xlane.f32.xlu0 %v1525
  %v1527 = vpop.xlane.xlu0 %1526
  %v1528 = vsel %vm230, %v1520, 0.0
  %1529 = vadd.xlane.f32.xlu0 %v1528
  %v1530 = vpop.xlane.xlu0 %1529
  %v1531 = vsel %vm230, %v1521, 0.0
  %1532 = vadd.xlane.f32.xlu0 %v1531
  %v1533 = vpop.xlane.xlu0 %1532
  %v1534 = vmul.f32 %v1524, %v626
  %v1535 = vmul.f32 %v1527, %v626
  %v1536 = vmul.f32 %v1530, %v626
  %v1537 = vmul.f32 %v1533, %v626
  %v1538 = vmul.f32 %v1518, %v1518
  %v1539 = vmul.f32 %v1519, %v1519
  %v1540 = vmul.f32 %v1520, %v1520
  %v1541 = vmul.f32 %v1521, %v1521
  %v1542 = vsel %vm230, %v1538, 0.0
  %1543 = vadd.xlane.f32.xlu0 %v1542
  %v1544 = vpop.xlane.xlu0 %1543
  %v1545 = vsel %vm230, %v1539, 0.0
  %1546 = vadd.xlane.f32.xlu0 %v1545
  %v1547 = vpop.xlane.xlu0 %1546
  %v1548 = vsel %vm230, %v1540, 0.0
  %1549 = vadd.xlane.f32.xlu0 %v1548
  %v1550 = vpop.xlane.xlu0 %1549
  %v1551 = vsel %vm230, %v1541, 0.0
  %1552 = vadd.xlane.f32.xlu0 %v1551
  %v1553 = vpop.xlane.xlu0 %1552
  %v1554 = vmul.f32 %v1544, %v626
  %v1555 = vmul.f32 %v1547, %v626
  %v1556 = vmul.f32 %v1550, %v626
  %v1557 = vmul.f32 %v1553, %v626
  %v1558 = vmul.f32 %v1534, %v1534
  %v1559 = vmul.f32 %v1535, %v1535
  %v1560 = vmul.f32 %v1536, %v1536
  %v1561 = vmul.f32 %v1537, %v1537
  %v1562 = vsub.f32 %v1554, %v1558
  %v1563 = vsub.f32 %v1555, %v1559
  %v1564 = vsub.f32 %v1556, %v1560
  %v1565 = vsub.f32 %v1557, %v1561
  %v1566 = vmax.f32 %v1562, 0.0
  %v1567 = vmax.f32 %v1563, 0.0
  %v1568 = vmax.f32 %v1564, 0.0
  %v1569 = vmax.f32 %v1565, 0.0
  %v1570 = vsub.f32 %v1518, %v1534
  %v1571 = vsub.f32 %v1519, %v1535
  %v1572 = vsub.f32 %v1520, %v1536
  %v1573 = vsub.f32 %v1521, %v1537
  %v1574 = vadd.f32 %v1566, 1e-06
  %v1575 = vadd.f32 %v1567, 1e-06
  %v1576 = vadd.f32 %v1568, 1e-06
  %v1577 = vadd.f32 %v1569, 1e-06
  %v1578 = vrsqrt.pop %v1574
  %v1579 = vmul.f32 %v1578, %v1574
  %v1580 = vmul.f32 %v1579, %v1578
  %v1581 = vmul.f32 0.5, %v1580
  %v1582 = vsub.f32 1.5, %v1581
  %v1583 = vmul.f32 %v1578, %v1582
  %vm1584 = vweird.f32 %v1574
  %vm1585 = vweird.f32 %v1578
  %vm1586 = vmor %vm1584, %vm1585
  %v1587 = vsel %vm1586, %v1578, %v1583
  %v1588 = vrsqrt.pop %v1575
  %v1589 = vmul.f32 %v1588, %v1575
  %v1590 = vmul.f32 %v1589, %v1588
  %v1591 = vmul.f32 0.5, %v1590
  %v1592 = vsub.f32 1.5, %v1591
  %v1593 = vmul.f32 %v1588, %v1592
  %vm1594 = vweird.f32 %v1575
  %vm1595 = vweird.f32 %v1588
  %vm1596 = vmor %vm1594, %vm1595
  %v1597 = vsel %vm1596, %v1588, %v1593
  %v1598 = vrsqrt.pop %v1576
  %v1599 = vmul.f32 %v1598, %v1576
  %v1600 = vmul.f32 %v1599, %v1598
  %v1601 = vmul.f32 0.5, %v1600
  %v1602 = vsub.f32 1.5, %v1601
  %v1603 = vmul.f32 %v1598, %v1602
  %vm1604 = vweird.f32 %v1576
  %vm1605 = vweird.f32 %v1598
  %vm1606 = vmor %vm1604, %vm1605
  %v1607 = vsel %vm1606, %v1598, %v1603
  %v1608 = vrsqrt.pop %v1577
  %v1609 = vmul.f32 %v1608, %v1577
  %v1610 = vmul.f32 %v1609, %v1608
  %v1611 = vmul.f32 0.5, %v1610
  %v1612 = vsub.f32 1.5, %v1611
  %v1613 = vmul.f32 %v1608, %v1612
  %vm1614 = vweird.f32 %v1577
  %vm1615 = vweird.f32 %v1608
  %vm1616 = vmor %vm1614, %vm1615
  %v1617 = vsel %vm1616, %v1608, %v1613
  %v1618 = vmul.f32 %v1570, %v1587
  %v1619 = vmul.f32 %v1571, %v1597
  %v1620 = vmul.f32 %v1572, %v1607
  %v1621 = vmul.f32 %v1573, %v1617
  %v1622 = vld [vmem:[%s4 + $0x40] sm:$0xff]
  %v1623 = vld [vmem:[%s4 + $0x48] sm:$0xff]
  %v1624 = vld [vmem:[%s4 + $0x50] sm:$0xff]
  %v1625 = vld [vmem:[%s4 + $0x58] sm:$0xff]
  %v1626 = vpack.c.bf16 %v1619, %v1618
  %v1627 = vpack.c.bf16 %v1621, %v1620
  %v1628 = vpack.c.bf16 %v1623, %v1622
  %v1629 = vpack.c.bf16 %v1625, %v1624
  %v1630 = vld [vmem:[%s4 + $0x82] sm:$0x1]
  %v1631 = vperm.slane %v1630, 0
  %v1633 = vsel %vm230, %v1626, 0
  %v1636 = vsel %vm230, %v1627, 0
  %1638 = vmatpush.bf16.msra.mxu0 0
  %1639 = vmatpush.bf16.msra.mxu0 0
  %1640 = vmatpush.bf16.msra.mxu0 0
  %1641 = vmatpush.bf16.msra.mxu0 0
  %1642 = vmatpush.bf16.msra.mxu0 0
  %1643 = vmatpush.bf16.msra.mxu0 0
  %1644 = vmatpush.bf16.msra.mxu0 %v1629
  %1645 = vmatpush.bf16.msra.mxu0 %v1628
  %1646 = vmatmul.bf16.gmra.mxu0 %v1633
  %v1647 = vpop.f32.mrf.mxu0
  %v1648 = vadd.f32 %v1631, %v1647
  %v1649 = vpop.f32.mrf.mxu0
  %v1650 = vadd.f32 %v1631, %v1649
  %1651 = vmatmul.bf16.gmra.mxu0 %v1636
  %v1652 = vpop.f32.mrf.mxu0
  %v1653 = vadd.f32 %v1631, %v1652
  %v1654 = vpop.f32.mrf.mxu0
  %v1655 = vadd.f32 %v1631, %v1654
  %1656 = vdwg.mxu0
  %v1657 = vmul.f32 %v1648, 0.5
  %v1658 = vmul.f32 %v1650, 0.5
  %v1659 = vmul.f32 %v1653, 0.5
  %v1660 = vmul.f32 %v1655, 0.5
  %v1661 = vmul.f32 %v1648, 0.044715
  %v1662 = vmul.f32 %v1650, 0.044715
  %v1663 = vmul.f32 %v1653, 0.044715
  %v1664 = vmul.f32 %v1655, 0.044715
  %v1665 = vmul.f32 %v1661, %v1648
  %v1666 = vmul.f32 %v1662, %v1650
  %v1667 = vmul.f32 %v1663, %v1653
  %v1668 = vmul.f32 %v1664, %v1655
  %v1669 = vmul.f32 %v1665, %v1648
  %v1670 = vmul.f32 %v1666, %v1650
  %v1671 = vmul.f32 %v1667, %v1653
  %v1672 = vmul.f32 %v1668, %v1655
  %v1673 = vadd.f32 %v1648, %v1669
  %v1674 = vadd.f32 %v1650, %v1670
  %v1675 = vadd.f32 %v1653, %v1671
  %v1676 = vadd.f32 %v1655, %v1672
  %v1677 = vmul.f32 %v1673, 0.7978846
  %v1678 = vmul.f32 %v1674, 0.7978846
  %v1679 = vmul.f32 %v1675, 0.7978846
  %v1680 = vmul.f32 %v1676, 0.7978846
  %v1681 = vtanh.pop %v1677
  %v1682 = vtanh.pop %v1678
  %v1683 = vtanh.pop %v1679
  %v1684 = vtanh.pop %v1680
  %v1685 = vadd.f32 %v1681, 1.0
  %v1686 = vadd.f32 %v1682, 1.0
  %v1687 = vadd.f32 %v1683, 1.0
  %v1688 = vadd.f32 %v1684, 1.0
  %v1689 = vmul.f32 %v1657, %v1685
  %v1690 = vmul.f32 %v1658, %v1686
  %v1691 = vmul.f32 %v1659, %v1687
  %v1692 = vmul.f32 %v1660, %v1688
  %v1693 = vld [vmem:[%s5 + $0x1b0] sm:$0xff]
  %v1694 = vld [vmem:[%s5 + $0x1b8] sm:$0xff]
  %v1695 = vld [vmem:[%s5 + $0x1c0] sm:$0xff]
  %v1696 = vld [vmem:[%s5 + $0x1c8] sm:$0xff]
  %v1697 = vld [vmem:[%s5 + $0x1d0] sm:$0xff]
  %v1698 = vld [vmem:[%s5 + $0x1d8] sm:$0xff]
  %v1699 = vld [vmem:[%s5 + $0x1e0] sm:$0xff]
  %v1700 = vld [vmem:[%s5 + $0x1e8] sm:$0xff]
  %v1701 = vld [vmem:[%s5 + $0x1f0] sm:$0xff]
  %v1702 = vld [vmem:[%s5 + $0x1f8] sm:$0xff]
  %v1703 = vld [vmem:[%s5 + $0x200] sm:$0xff]
  %v1704 = vld [vmem:[%s5 + $0x208] sm:$0xff]
  %v1705 = vld [vmem:[%s5 + $0x210] sm:$0xff]
  %v1706 = vld [vmem:[%s5 + $0x218] sm:$0xff]
  %v1707 = vld [vmem:[%s5 + $0x220] sm:$0xff]
  %v1708 = vld [vmem:[%s5 + $0x228] sm:$0xff]
  %v1709 = vpack.c.bf16 %v1690, %v1689
  %v1710 = vpack.c.bf16 %v1692, %v1691
  %v1711 = vpack.c.bf16 %v1694, %v1693
  %v1712 = vpack.c.bf16 %v1696, %v1695
  %v1713 = vpack.c.bf16 %v1698, %v1697
  %v1714 = vpack.c.bf16 %v1700, %v1699
  %v1715 = vpack.c.bf16 %v1702, %v1701
  %v1716 = vpack.c.bf16 %v1704, %v1703
  %v1717 = vpack.c.bf16 %v1706, %v1705
  %v1718 = vpack.c.bf16 %v1708, %v1707
  %1719 = vmatpush.bf16.msra.mxu0 %v1718
  %1720 = vmatpush.bf16.msra.mxu0 %v1717
  %1721 = vmatpush.bf16.msra.mxu0 %v1716
  %1722 = vmatpush.bf16.msra.mxu0 %v1715
  %1723 = vmatpush.bf16.msra.mxu0 %v1714
  %1724 = vmatpush.bf16.msra.mxu0 %v1713
  %1725 = vmatpush.bf16.msra.mxu0 %v1712
  %1726 = vmatpush.bf16.msra.mxu0 %v1711
  %1727 = vmatmul.bf16.gmra.mxu0 %v1709
  %v1728 = vpop.f32.mrf.mxu0
  %v1729 = vadd.f32 0.0, %v1728
  %v1730 = vpop.f32.mrf.mxu0
  %v1731 = vadd.f32 0.0, %v1730
  %1732 = vmatmul.bf16.gmra.mxu0 %v1710
  %v1733 = vpop.f32.mrf.mxu0
  %v1734 = vadd.f32 0.0, %v1733
  %v1735 = vpop.f32.mrf.mxu0
  %v1736 = vadd.f32 0.0, %v1735
  %1737 = vdwg.mxu0
  %v1738 = vadd.f32 %v1301, %v1729
  %v1739 = vadd.f32 %v1302, %v1731
  %v1740 = vadd.f32 %v1303, %v1734
  %v1741 = vadd.f32 %v1304, %v1736
  %v1742 = vld [vmem:[%s5 + $0x2b2] sm:$0x1]
  %v1743 = vperm.slane %v1742, 0
  %v1744 = vadd.f32 %v1738, %v1743
  %v1745 = vadd.f32 %v1739, %v1743
  %v1746 = vadd.f32 %v1740, %v1743
  %v1747 = vadd.f32 %v1741, %v1743
  %1748 = vrot.lane.b32.xlu0 %v247, 32
  %v1749 = vpop.permute.xlu0 %1748
  %1750 = vrot.lane.b32.xlu0 %v249, 32
  %v1751 = vpop.permute.xlu0 %1750
  %1752 = vrot.lane.b32.xlu0 %v252, 32
  %v1753 = vpop.permute.xlu0 %1752
  %1754 = vrot.lane.b32.xlu0 %v254, 32
  %v1755 = vpop.permute.xlu0 %1754
  %v1760 = vadd.f32 %v1744, %v1749
  %v1761 = vadd.f32 %v1745, %v1751
  %v1762 = vadd.f32 %v1746, %v1753
  %v1763 = vadd.f32 %v1747, %v1755
  %v1764 = vld [vmem:[%s5 + $0xab] sm:$0x1]
  %v1765 = vperm.slane %v1764, 0
  %v1766 = vadd.f32 %v1765, 0.0
  %v1767 = vld [vmem:[%s5 + $0x9f] sm:$0x1]
  %v1768 = vsel %vm1391, %v1763, 0.0
  %v1769 = vsel %vm1392, %v1760, 0.0
  %v1770 = vsel %vm1393, %v1761, 0.0
  %v1771 = vsel %vm1394, %v1762, 0.0
  %v1772 = vperm.slane %v1767, 0
  %v1773 = vmul.f32 %v1768, %v1772
  %v1774 = vmul.f32 %v1769, %v1772
  %v1775 = vmul.f32 %v1770, %v1772
  %v1776 = vmul.f32 %v1771, %v1772
  %v1777 = vadd.f32 %v1766, %v1773
  %v1778 = vadd.f32 %v1766, %v1774
  %v1779 = vadd.f32 %v1766, %v1775
  %v1780 = vadd.f32 %v1766, %v1776
  %v1781 = vld [vmem:[%s5 + $0xa0] sm:$0x1]
  %v1782 = vperm.slane %v1781, 0
  %v1783 = vmul.f32 %v1760, %v1782
  %v1784 = vmul.f32 %v1761, %v1782
  %v1785 = vmul.f32 %v1762, %v1782
  %v1786 = vmul.f32 %v1763, %v1782
  %v1787 = vadd.f32 %v1777, %v1783
  %v1788 = vadd.f32 %v1778, %v1784
  %v1789 = vadd.f32 %v1779, %v1785
  %v1790 = vadd.f32 %v1780, %v1786
  %v1791 = vld [vmem:[%s5 + $0xa1] sm:$0x1]
  %v1792 = vsel %vm1467, %v1761, 0.0
  %v1793 = vsel %vm1468, %v1762, 0.0
  %v1794 = vsel %vm1469, %v1763, 0.0
  %v1795 = vsel %vm1470, %v1760, 0.0
  %v1796 = vperm.slane %v1791, 0
  %v1797 = vmul.f32 %v1792, %v1796
  %v1798 = vmul.f32 %v1793, %v1796
  %v1799 = vmul.f32 %v1794, %v1796
  %v1800 = vmul.f32 %v1795, %v1796
  %v1801 = vadd.f32 %v1787, %v1797
  %v1802 = vadd.f32 %v1788, %v1798
  %v1803 = vadd.f32 %v1789, %v1799
  %v1804 = vadd.f32 %v1790, %v1800
  %v1805 = vsel %vm230, %v1801, 0.0
  %1806 = vadd.xlane.f32.xlu0 %v1805
  %v1807 = vpop.xlane.xlu0 %1806
  %v1808 = vsel %vm230, %v1802, 0.0
  %1809 = vadd.xlane.f32.xlu0 %v1808
  %v1810 = vpop.xlane.xlu0 %1809
  %v1811 = vsel %vm230, %v1803, 0.0
  %1812 = vadd.xlane.f32.xlu0 %v1811
  %v1813 = vpop.xlane.xlu0 %1812
  %v1814 = vsel %vm230, %v1804, 0.0
  %1815 = vadd.xlane.f32.xlu0 %v1814
  %v1816 = vpop.xlane.xlu0 %1815
  %v1817 = vmul.f32 %v1807, %v626
  %v1818 = vmul.f32 %v1810, %v626
  %v1819 = vmul.f32 %v1813, %v626
  %v1820 = vmul.f32 %v1816, %v626
  %v1821 = vmul.f32 %v1801, %v1801
  %v1822 = vmul.f32 %v1802, %v1802
  %v1823 = vmul.f32 %v1803, %v1803
  %v1824 = vmul.f32 %v1804, %v1804
  %v1825 = vsel %vm230, %v1821, 0.0
  %1826 = vadd.xlane.f32.xlu0 %v1825
  %v1827 = vpop.xlane.xlu0 %1826
  %v1828 = vsel %vm230, %v1822, 0.0
  %1829 = vadd.xlane.f32.xlu0 %v1828
  %v1830 = vpop.xlane.xlu0 %1829
  %v1831 = vsel %vm230, %v1823, 0.0
  %1832 = vadd.xlane.f32.xlu0 %v1831
  %v1833 = vpop.xlane.xlu0 %1832
  %v1834 = vsel %vm230, %v1824, 0.0
  %1835 = vadd.xlane.f32.xlu0 %v1834
  %v1836 = vpop.xlane.xlu0 %1835
  %v1837 = vmul.f32 %v1827, %v626
  %v1838 = vmul.f32 %v1830, %v626
  %v1839 = vmul.f32 %v1833, %v626
  %v1840 = vmul.f32 %v1836, %v626
  %v1841 = vmul.f32 %v1817, %v1817
  %v1842 = vmul.f32 %v1818, %v1818
  %v1843 = vmul.f32 %v1819, %v1819
  %v1844 = vmul.f32 %v1820, %v1820
  %v1845 = vsub.f32 %v1837, %v1841
  %v1846 = vsub.f32 %v1838, %v1842
  %v1847 = vsub.f32 %v1839, %v1843
  %v1848 = vsub.f32 %v1840, %v1844
  %v1849 = vmax.f32 %v1845, 0.0
  %v1850 = vmax.f32 %v1846, 0.0
  %v1851 = vmax.f32 %v1847, 0.0
  %v1852 = vmax.f32 %v1848, 0.0
  %v1853 = vsub.f32 %v1801, %v1817
  %v1854 = vsub.f32 %v1802, %v1818
  %v1855 = vsub.f32 %v1803, %v1819
  %v1856 = vsub.f32 %v1804, %v1820
  %v1857 = vadd.f32 %v1849, 1e-06
  %v1858 = vadd.f32 %v1850, 1e-06
  %v1859 = vadd.f32 %v1851, 1e-06
  %v1860 = vadd.f32 %v1852, 1e-06
  %v1861 = vrsqrt.pop %v1857
  %v1862 = vmul.f32 %v1861, %v1857
  %v1863 = vmul.f32 %v1862, %v1861
  %v1864 = vmul.f32 0.5, %v1863
  %v1865 = vsub.f32 1.5, %v1864
  %v1866 = vmul.f32 %v1861, %v1865
  %vm1867 = vweird.f32 %v1857
  %vm1868 = vweird.f32 %v1861
  %vm1869 = vmor %vm1867, %vm1868
  %v1870 = vsel %vm1869, %v1861, %v1866
  %v1871 = vrsqrt.pop %v1858
  %v1872 = vmul.f32 %v1871, %v1858
  %v1873 = vmul.f32 %v1872, %v1871
  %v1874 = vmul.f32 0.5, %v1873
  %v1875 = vsub.f32 1.5, %v1874
  %v1876 = vmul.f32 %v1871, %v1875
  %vm1877 = vweird.f32 %v1858
  %vm1878 = vweird.f32 %v1871
  %vm1879 = vmor %vm1877, %vm1878
  %v1880 = vsel %vm1879, %v1871, %v1876
  %v1881 = vrsqrt.pop %v1859
  %v1882 = vmul.f32 %v1881, %v1859
  %v1883 = vmul.f32 %v1882, %v1881
  %v1884 = vmul.f32 0.5, %v1883
  %v1885 = vsub.f32 1.5, %v1884
  %v1886 = vmul.f32 %v1881, %v1885
  %vm1887 = vweird.f32 %v1859
  %vm1888 = vweird.f32 %v1881
  %vm1889 = vmor %vm1887, %vm1888
  %v1890 = vsel %vm1889, %v1881, %v1886
  %v1891 = vrsqrt.pop %v1860
  %v1892 = vmul.f32 %v1891, %v1860
  %v1893 = vmul.f32 %v1892, %v1891
  %v1894 = vmul.f32 0.5, %v1893
  %v1895 = vsub.f32 1.5, %v1894
  %v1896 = vmul.f32 %v1891, %v1895
  %vm1897 = vweird.f32 %v1860
  %vm1898 = vweird.f32 %v1891
  %vm1899 = vmor %vm1897, %vm1898
  %v1900 = vsel %vm1899, %v1891, %v1896
  %v1901 = vmul.f32 %v1853, %v1870
  %v1902 = vmul.f32 %v1854, %v1880
  %v1903 = vmul.f32 %v1855, %v1890
  %v1904 = vmul.f32 %v1856, %v1900
  %v1905 = vld [vmem:[%s4 + $0x60] sm:$0xff]
  %v1906 = vld [vmem:[%s4 + $0x68] sm:$0xff]
  %v1907 = vld [vmem:[%s4 + $0x70] sm:$0xff]
  %v1908 = vld [vmem:[%s4 + $0x78] sm:$0xff]
  %v1909 = vpack.c.bf16 %v1902, %v1901
  %v1910 = vpack.c.bf16 %v1904, %v1903
  %v1911 = vpack.c.bf16 %v1906, %v1905
  %v1912 = vpack.c.bf16 %v1908, %v1907
  %v1913 = vld [vmem:[%s4 + $0x83] sm:$0x1]
  %v1914 = vperm.slane %v1913, 0
  %v1916 = vsel %vm230, %v1909, 0
  %v1919 = vsel %vm230, %v1910, 0
  %1921 = vmatpush.bf16.msra.mxu0 0
  %1922 = vmatpush.bf16.msra.mxu0 0
  %1923 = vmatpush.bf16.msra.mxu0 0
  %1924 = vmatpush.bf16.msra.mxu0 0
  %1925 = vmatpush.bf16.msra.mxu0 0
  %1926 = vmatpush.bf16.msra.mxu0 0
  %1927 = vmatpush.bf16.msra.mxu0 %v1912
  %1928 = vmatpush.bf16.msra.mxu0 %v1911
  %1929 = vmatmul.bf16.gmra.mxu0 %v1916
  %v1930 = vpop.f32.mrf.mxu0
  %v1931 = vadd.f32 %v1914, %v1930
  %v1932 = vpop.f32.mrf.mxu0
  %v1933 = vadd.f32 %v1914, %v1932
  %1934 = vmatmul.bf16.gmra.mxu0 %v1919
  %v1935 = vpop.f32.mrf.mxu0
  %v1936 = vadd.f32 %v1914, %v1935
  %v1937 = vpop.f32.mrf.mxu0
  %v1938 = vadd.f32 %v1914, %v1937
  %1939 = vdwg.mxu0
  %v1940 = vmul.f32 %v1931, 0.5
  %v1941 = vmul.f32 %v1933, 0.5
  %v1942 = vmul.f32 %v1936, 0.5
  %v1943 = vmul.f32 %v1938, 0.5
  %v1944 = vmul.f32 %v1931, 0.044715
  %v1945 = vmul.f32 %v1933, 0.044715
  %v1946 = vmul.f32 %v1936, 0.044715
  %v1947 = vmul.f32 %v1938, 0.044715
  %v1948 = vmul.f32 %v1944, %v1931
  %v1949 = vmul.f32 %v1945, %v1933
  %v1950 = vmul.f32 %v1946, %v1936
  %v1951 = vmul.f32 %v1947, %v1938
  %v1952 = vmul.f32 %v1948, %v1931
  %v1953 = vmul.f32 %v1949, %v1933
  %v1954 = vmul.f32 %v1950, %v1936
  %v1955 = vmul.f32 %v1951, %v1938
  %v1956 = vadd.f32 %v1931, %v1952
  %v1957 = vadd.f32 %v1933, %v1953
  %v1958 = vadd.f32 %v1936, %v1954
  %v1959 = vadd.f32 %v1938, %v1955
  %v1960 = vmul.f32 %v1956, 0.7978846
  %v1961 = vmul.f32 %v1957, 0.7978846
  %v1962 = vmul.f32 %v1958, 0.7978846
  %v1963 = vmul.f32 %v1959, 0.7978846
  %v1964 = vtanh.pop %v1960
  %v1965 = vtanh.pop %v1961
  %v1966 = vtanh.pop %v1962
  %v1967 = vtanh.pop %v1963
  %v1968 = vadd.f32 %v1964, 1.0
  %v1969 = vadd.f32 %v1965, 1.0
  %v1970 = vadd.f32 %v1966, 1.0
  %v1971 = vadd.f32 %v1967, 1.0
  %v1972 = vmul.f32 %v1940, %v1968
  %v1973 = vmul.f32 %v1941, %v1969
  %v1974 = vmul.f32 %v1942, %v1970
  %v1975 = vmul.f32 %v1943, %v1971
  %v1976 = vld [vmem:[%s5 + $0x230] sm:$0xff]
  %v1977 = vld [vmem:[%s5 + $0x238] sm:$0xff]
  %v1978 = vld [vmem:[%s5 + $0x240] sm:$0xff]
  %v1979 = vld [vmem:[%s5 + $0x248] sm:$0xff]
  %v1980 = vld [vmem:[%s5 + $0x250] sm:$0xff]
  %v1981 = vld [vmem:[%s5 + $0x258] sm:$0xff]
  %v1982 = vld [vmem:[%s5 + $0x260] sm:$0xff]
  %v1983 = vld [vmem:[%s5 + $0x268] sm:$0xff]
  %v1984 = vld [vmem:[%s5 + $0x270] sm:$0xff]
  %v1985 = vld [vmem:[%s5 + $0x278] sm:$0xff]
  %v1986 = vld [vmem:[%s5 + $0x280] sm:$0xff]
  %v1987 = vld [vmem:[%s5 + $0x288] sm:$0xff]
  %v1988 = vld [vmem:[%s5 + $0x290] sm:$0xff]
  %v1989 = vld [vmem:[%s5 + $0x298] sm:$0xff]
  %v1990 = vld [vmem:[%s5 + $0x2a0] sm:$0xff]
  %v1991 = vld [vmem:[%s5 + $0x2a8] sm:$0xff]
  %v1992 = vpack.c.bf16 %v1973, %v1972
  %v1993 = vpack.c.bf16 %v1975, %v1974
  %v1994 = vpack.c.bf16 %v1977, %v1976
  %v1995 = vpack.c.bf16 %v1979, %v1978
  %v1996 = vpack.c.bf16 %v1981, %v1980
  %v1997 = vpack.c.bf16 %v1983, %v1982
  %v1998 = vpack.c.bf16 %v1985, %v1984
  %v1999 = vpack.c.bf16 %v1987, %v1986
  %v2000 = vpack.c.bf16 %v1989, %v1988
  %v2001 = vpack.c.bf16 %v1991, %v1990
  %2002 = vmatpush.bf16.msra.mxu0 %v2001
  %2003 = vmatpush.bf16.msra.mxu0 %v2000
  %2004 = vmatpush.bf16.msra.mxu0 %v1999
  %2005 = vmatpush.bf16.msra.mxu0 %v1998
  %2006 = vmatpush.bf16.msra.mxu0 %v1997
  %2007 = vmatpush.bf16.msra.mxu0 %v1996
  %2008 = vmatpush.bf16.msra.mxu0 %v1995
  %2009 = vmatpush.bf16.msra.mxu0 %v1994
  %2010 = vmatmul.bf16.gmra.mxu0 %v1992
  %v2011 = vpop.f32.mrf.mxu0
  %v2012 = vadd.f32 0.0, %v2011
  %v2013 = vpop.f32.mrf.mxu0
  %v2014 = vadd.f32 0.0, %v2013
  %2015 = vmatmul.bf16.gmra.mxu0 %v1993
  %v2016 = vpop.f32.mrf.mxu0
  %v2017 = vadd.f32 0.0, %v2016
  %v2018 = vpop.f32.mrf.mxu0
  %v2019 = vadd.f32 0.0, %v2018
  %2020 = vdwg.mxu0
  %v2021 = vadd.f32 %v1744, %v2012
  %v2022 = vadd.f32 %v1745, %v2014
  %v2023 = vadd.f32 %v1746, %v2017
  %v2024 = vadd.f32 %v1747, %v2019
  %v2025 = vld [vmem:[%s5 + $0x2b3] sm:$0x1]
  %v2026 = vperm.slane %v2025, 0
  %v2027 = vadd.f32 %v2021, %v2026
  %v2028 = vadd.f32 %v2022, %v2026
  %v2029 = vadd.f32 %v2023, %v2026
  %v2030 = vadd.f32 %v2024, %v2026
  %v2031 = vld [vmem:[%s5 + $0x2b8] sm:$0xff]
  %v2032 = vld [vmem:[%s5 + $0x2c0] sm:$0xff]
  %v2033 = vld [vmem:[%s5 + $0x2c8] sm:$0xff]
  %v2034 = vld [vmem:[%s5 + $0x2d0] sm:$0xff]
  %v2035 = vpack.c.bf16 %v2028, %v2027
  %v2036 = vpack.c.bf16 %v2030, %v2029
  %v2037 = vpack.c.bf16 %v2032, %v2031
  %v2038 = vpack.c.bf16 %v2034, %v2033
  %v2039 = vld [vmem:[%s5 + $0x2d8] sm:$0x1]
  %v2040 = vperm.slane %v2039, 0
  %v2042 = vsel %vm230, %v2035, 0
  %v2045 = vsel %vm230, %v2036, 0
  %2047 = vmatpush.bf16.msra.mxu0 0
  %2048 = vmatpush.bf16.msra.mxu0 0
  %2049 = vmatpush.bf16.msra.mxu0 0
  %2050 = vmatpush.bf16.msra.mxu0 0
  %2051 = vmatpush.bf16.msra.mxu0 0
  %2052 = vmatpush.bf16.msra.mxu0 0
  %2053 = vmatpush.bf16.msra.mxu0 %v2038
  %2054 = vmatpush.bf16.msra.mxu0 %v2037
  %2055 = vmatmul.bf16.gmra.mxu0 %v2042
  %v2056 = vpop.f32.mrf.mxu0
  %v2057 = vadd.f32 %v2040, %v2056
  %v2058 = vpop.f32.mrf.mxu0
  %v2059 = vadd.f32 %v2040, %v2058
  %2060 = vmatmul.bf16.gmra.mxu0 %v2045
  %v2061 = vpop.f32.mrf.mxu0
  %v2062 = vadd.f32 %v2040, %v2061
  %v2063 = vpop.f32.mrf.mxu0
  %v2064 = vadd.f32 %v2040, %v2063
  %2065 = vdwg.mxu0
  %v2066 = vmul.f32 %v2057, 0.5
  %v2067 = vmul.f32 %v2059, 0.5
  %v2068 = vmul.f32 %v2062, 0.5
  %v2069 = vmul.f32 %v2064, 0.5
  %v2070 = vmul.f32 %v2057, 0.044715
  %v2071 = vmul.f32 %v2059, 0.044715
  %v2072 = vmul.f32 %v2062, 0.044715
  %v2073 = vmul.f32 %v2064, 0.044715
  %v2074 = vmul.f32 %v2070, %v2057
  %v2075 = vmul.f32 %v2071, %v2059
  %v2076 = vmul.f32 %v2072, %v2062
  %v2077 = vmul.f32 %v2073, %v2064
  %v2078 = vmul.f32 %v2074, %v2057
  %v2079 = vmul.f32 %v2075, %v2059
  %v2080 = vmul.f32 %v2076, %v2062
  %v2081 = vmul.f32 %v2077, %v2064
  %v2082 = vadd.f32 %v2057, %v2078
  %v2083 = vadd.f32 %v2059, %v2079
  %v2084 = vadd.f32 %v2062, %v2080
  %v2085 = vadd.f32 %v2064, %v2081
  %v2086 = vmul.f32 %v2082, 0.7978846
  %v2087 = vmul.f32 %v2083, 0.7978846
  %v2088 = vmul.f32 %v2084, 0.7978846
  %v2089 = vmul.f32 %v2085, 0.7978846
  %v2090 = vtanh.pop %v2086
  %v2091 = vtanh.pop %v2087
  %v2092 = vtanh.pop %v2088
  %v2093 = vtanh.pop %v2089
  %v2094 = vadd.f32 %v2090, 1.0
  %v2095 = vadd.f32 %v2091, 1.0
  %v2096 = vadd.f32 %v2092, 1.0
  %v2097 = vadd.f32 %v2093, 1.0
  %v2098 = vmul.f32 %v2066, %v2094
  %v2099 = vmul.f32 %v2067, %v2095
  %v2100 = vmul.f32 %v2068, %v2096
  %v2101 = vmul.f32 %v2069, %v2097
  %v2102 = vld [vmem:[%s5 + $0x2e0] sm:$0xff]
  %v2103 = vld [vmem:[%s5 + $0x2e8] sm:$0xff]
  %v2104 = vld [vmem:[%s5 + $0x2f0] sm:$0xff]
  %v2105 = vld [vmem:[%s5 + $0x2f8] sm:$0xff]
  %v2106 = vpack.c.bf16 %v2099, %v2098
  %v2107 = vpack.c.bf16 %v2101, %v2100
  %v2108 = vpack.c.bf16 %v2103, %v2102
  %v2109 = vpack.c.bf16 %v2105, %v2104
  %v2110 = vld [vmem:[%s5 + $0x300] sm:$0x1]
  %v2111 = vperm.slane %v2110, 0
  %v2113 = vsel %vm230, %v2106, 0
  %v2116 = vsel %vm230, %v2107, 0
  %2118 = vmatpush.bf16.msra.mxu0 0
  %2119 = vmatpush.bf16.msra.mxu0 0
  %2120 = vmatpush.bf16.msra.mxu0 0
  %2121 = vmatpush.bf16.msra.mxu0 0
  %2122 = vmatpush.bf16.msra.mxu0 0
  %2123 = vmatpush.bf16.msra.mxu0 0
  %2124 = vmatpush.bf16.msra.mxu0 %v2109
  %2125 = vmatpush.bf16.msra.mxu0 %v2108
  %2126 = vmatmul.bf16.gmra.mxu0 %v2113
  %v2127 = vpop.f32.mrf.mxu0
  %v2128 = vadd.f32 %v2111, %v2127
  %v2129 = vpop.f32.mrf.mxu0
  %v2130 = vadd.f32 %v2111, %v2129
  %2131 = vmatmul.bf16.gmra.mxu0 %v2116
  %v2132 = vpop.f32.mrf.mxu0
  %v2133 = vadd.f32 %v2111, %v2132
  %v2134 = vpop.f32.mrf.mxu0
  %v2135 = vadd.f32 %v2111, %v2134
  %2136 = vdwg.mxu0
  %vm2137 = vcmask 64512
  %2138 = vst.msk [vmem:[%s6] sm:$0xff] %vm2137, %v2128
  %2139 = vst.msk [vmem:[%s6 + $0x8] sm:$0xff] %vm2137, %v2130
  %2140 = vst.msk [vmem:[%s6 + $0x10] sm:$0xff] %vm2137, %v2133
  %2141 = vst.msk [vmem:[%s6 + $0x18] sm:$0xff] %vm2137, %v2135
  // Predicated region
  $region26: #{convnext_forward.1} parent=0 // pred_check
    _
  $region27: #{convnext_forward.1} parent=0 // pred_check_branch
    %2143 = sbr.rel (0) target = $region29
  $region28: #{convnext_forward.1} parent=0 // pred_region
    _
  $region29: #{convnext_forward.1} parent=0 // pred_fallthru
    _
  // Predicated region
  $region30: #{convnext_forward.1} parent=0 // pred_check
    _
  $region31: #{convnext_forward.1} parent=0 // pred_check_branch
    %2145 = sbr.rel (0) target = $region33
  $region32: #{convnext_forward.1} parent=0 // pred_region
    _
  $region33: #{convnext_forward.1} parent=0 // pred_fallthru
    _

</llo_original>
